<compile_context>
chip_gen: v7x
topology: tpu7x:2x2x1
jax: 0.10.0
libtpu: 0.0.40
codegen_flags: <defaults>
</compile_context>

<pallas_src>
import functools
import math

import jax
import jax.numpy as jnp
from jax.experimental import pallas as pl
from jax.experimental.pallas import tpu as pltpu


def _layer_norm(x, w, b, eps=1e-12):
    mu = jnp.mean(x, axis=-1, keepdims=True)
    var = jnp.mean(jnp.square(x - mu), axis=-1, keepdims=True)
    return (x - mu) * jax.lax.rsqrt(var + eps) * w + b


def _gelu(x):
    # tanh approximation of GELU (avoids erf lowering issues on Mosaic).
    c = math.sqrt(2.0 / math.pi)
    return 0.5 * x * (1.0 + jnp.tanh(c * (x + 0.044715 * x * x * x)))


def _sent_agg_kernel(num_heads,
                     h0_ref, mask_ref,
                     wqkv_ref, bqkv_ref, wo_ref, bo_ref, ln1_w_ref, ln1_b_ref,
                     wi_ref, bi_ref, wo2_ref, bo2_ref, ln2_w_ref, ln2_b_ref,
                     out_ref):
    """One encoder layer per grid step; h carried in the resident out block."""
    l = pl.program_id(1)
    bt, seq, hidden = out_ref.shape
    head_dim = hidden // num_heads
    rows = bt * seq
    bh = bt * num_heads

    # Seed the carry with the XLA-computed embedding output at layer 0.
    @pl.when(l == 0)
    def _init():
        out_ref[...] = h0_ref[...]

    h = out_ref[...].reshape(rows, hidden)               # f32 carry, [Bt*S, H]
    hb = h.astype(jnp.bfloat16)

    # ---- self-attention ----------------------------------------------------
    # Fused QKV projection: one (rows, H) x (H, 3H) MXU matmul.
    qkv = jnp.dot(hb, wqkv_ref[0],
                  preferred_element_type=jnp.float32) + bqkv_ref[0]

    def split_heads(x):
        # (rows, H) -> (Bt*heads, S, head_dim), head_dim lane-dense last.
        x = x.astype(jnp.bfloat16).reshape(bt, seq, num_heads, head_dim)
        return jnp.transpose(x, (0, 2, 1, 3)).reshape(bh, seq, head_dim)

    q = split_heads(qkv[:, :hidden])
    k = split_heads(qkv[:, hidden:2 * hidden])
    v = split_heads(qkv[:, 2 * hidden:])

    # Additive mask bias, kept (Bt*heads, 1, S); broadcast happens in the add.
    neg = (1.0 - mask_ref[...]) * -10000.0               # (Bt, 1, S)
    bias = jnp.broadcast_to(neg[:, None, :, :],
                            (bt, num_heads, 1, seq)).reshape(bh, 1, seq)

    scale = 1.0 / math.sqrt(head_dim)
    # Heads-batched scores + context: one dot_general each (batch = Bt*heads).
    sc = jnp.einsum('bqd,bkd->bqk', q, k,
                    preferred_element_type=jnp.float32) * scale + bias
    sc = sc - jnp.max(sc, axis=-1, keepdims=True)
    p = jnp.exp(sc)
    p = p * pl.reciprocal(jnp.sum(p, axis=-1, keepdims=True), approx=True)
    ctx = jnp.einsum('bqk,bkd->bqd', p.astype(jnp.bfloat16), v,
                     preferred_element_type=jnp.float32)
    # Back to one lane-dense (rows, H) slab — single unmasked store pattern.
    ctx = jnp.transpose(ctx.reshape(bt, num_heads, seq, head_dim),
                        (0, 2, 1, 3)).reshape(rows, hidden)

    attn = jnp.dot(ctx.astype(jnp.bfloat16), wo_ref[0],
                   preferred_element_type=jnp.float32) + bo_ref[0]
    h = _layer_norm(attn + h, ln1_w_ref[0], ln1_b_ref[0])

    # ---- feed-forward --------------------------------------------------------
    inter = _gelu(jnp.dot(h.astype(jnp.bfloat16), wi_ref[0],
                          preferred_element_type=jnp.float32) + bi_ref[0])
    ffn = jnp.dot(inter.astype(jnp.bfloat16), wo2_ref[0],
                  preferred_element_type=jnp.float32) + bo2_ref[0]
    h = _layer_norm(ffn + h, ln2_w_ref[0], ln2_b_ref[0])

    out_ref[...] = h.reshape(bt, seq, hidden)


_LAYER_PARAMS = ("wqkv", "bqkv", "wo", "bo", "ln1_w", "ln1_b",
                 "wi", "bi", "wo2", "bo2", "ln2_w", "ln2_b")


def _default_vmem_limit():
    # 75% of physical VMEM (headroom for Mosaic scratch/semaphores):
    # ~96 MiB on v5e/v6e (128 MiB parts), ~48 MiB on v7x (64 MiB / TensorCore).
    try:
        return int(pltpu.get_tpu_info().vmem_capacity_bytes * 3 // 4)
    except Exception:
        return 48 * 1024 * 1024


def sent_agg_forward(sent_embs, sents_mask, params, num_heads, *, batch_tile=None):
    """Pallas implementation of SentAgg.forward (returns last-layer hidden states)."""
    B, S, H = sent_embs.shape
    L = params["wqkv"].shape[0]
    assert H % num_heads == 0

    # Full batch per tile by default: layer weights are DMA'd from HBM exactly
    # once.  Use batch_tile only when activations don't fit VMEM.
    Bt = B if batch_tile is None else min(batch_tile, B)
    assert B % Bt == 0, "batch must be divisible by the batch tile"

    # Embedding step in plain XLA (bandwidth-bound; no reason to hold it in
    # VMEM for all layer steps).  token_type_id == 0 at every position, which
    # matches SentAgg's usage of inputs_embeds with skip_word_embedding.
    x = sent_embs.astype(jnp.float32)
    h0 = _layer_norm(x + params["pos"][None, :, :] + params["type"][None, :, :],
                     params["eln_w"], params["eln_b"])
    mask3 = sents_mask.astype(jnp.float32).reshape(B, 1, S)

    def per_layer_spec(arr):
        nd = arr.ndim
        return pl.BlockSpec((1,) + arr.shape[1:],
                            lambda b, l, _nd=nd: (l,) + (0,) * (_nd - 1))

    layer_arrs = [params[k] for k in _LAYER_PARAMS]
    in_specs = ([pl.BlockSpec((Bt, S, H), lambda b, l: (b, 0, 0)),
                 pl.BlockSpec((Bt, 1, S), lambda b, l: (b, 0, 0))]
                + [per_layer_spec(a) for a in layer_arrs])

    return pl.pallas_call(
        functools.partial(_sent_agg_kernel, num_heads),
        out_shape=jax.ShapeDtypeStruct((B, S, H), jnp.float32),
        grid=(B // Bt, L),
        in_specs=in_specs,
        out_specs=pl.BlockSpec((Bt, S, H), lambda b, l: (b, 0, 0)),
        input_output_aliases={0: 0},      # h0 seeds / becomes the output buffer
        compiler_params=pltpu.CompilerParams(
            dimension_semantics=("parallel", "arbitrary"),
            vmem_limit_bytes=_default_vmem_limit()),
    )(h0, mask3, *layer_arrs)


def init_params(key, L, S, H, I):
    """Deterministic synthetic BERT-encoder weights (no checkpoint load)."""
    std = 0.02
    ks = jax.random.split(key, 8)

    def n(k, shape, dtype=jnp.float32):
        return (jax.random.normal(k, shape, jnp.float32) * std).astype(dtype)

    bf16 = jnp.bfloat16  # matmul weights stored bf16 (MXU-native, half the DMA)
    return {
        "pos":   n(ks[0], (S, H)),
        "type":  n(ks[1], (1, H)),
        "eln_w": jnp.ones((1, H), jnp.float32),
        "eln_b": jnp.zeros((1, H), jnp.float32),
        # Fused Q/K/V: columns are [Wq | Wk | Wv].
        "wqkv":  n(ks[2], (L, H, 3 * H), bf16),
        "bqkv":  jnp.zeros((L, 1, 3 * H), jnp.float32),
        "wo":    n(ks[3], (L, H, H), bf16),
        "bo":    jnp.zeros((L, 1, H), jnp.float32),
        "ln1_w": jnp.ones((L, 1, H), jnp.float32),
        "ln1_b": jnp.zeros((L, 1, H), jnp.float32),
        "wi":    n(ks[4], (L, H, I), bf16),
        "bi":    jnp.zeros((L, 1, I), jnp.float32),
        "wo2":   n(ks[5], (L, I, H), bf16),
        "bo2":   jnp.zeros((L, 1, H), jnp.float32),
        "ln2_w": jnp.ones((L, 1, H), jnp.float32),
        "ln2_b": jnp.zeros((L, 1, H), jnp.float32),
    }


if __name__ == "__main__":
    # Small config consistent with SentAgg: bert_output_layer == num_hidden_layers == 2.
    B, S, H, I, NUM_HEADS, L = 4, 8, 32, 64, 4, 2

    key = jax.random.PRNGKey(0)
    k_x, k_p = jax.random.split(key)

    sent_embs = jax.random.normal(k_x, (B, S, H), jnp.float32)
    sents_mask = (jnp.ones((B, S), jnp.float32)
                  .at[1, 6:].set(0.0)
                  .at[3, 4:].set(0.0))

    params = init_params(k_p, L, S, H, I)

    fwd = jax.jit(lambda e, m, p: sent_agg_forward(e, m, p, NUM_HEADS))
    out = jax.block_until_ready(fwd(sent_embs, sents_mask, params))

    assert out.shape == (B, S, H) and out.dtype == jnp.float32
    assert bool(jnp.all(jnp.isfinite(out)))
    print("KERNEL_OK")
</pallas_src>

<mosaic_0001>
module attributes {stable_mosaic.version = 11 : i64} {
  func.func @_sent_agg_kernel(%arg0: i32, %arg1: i32, %arg2: memref<4x8x32xf32, #tpu.memory_space<vmem>>, %arg3: memref<4x1x8xf32, #tpu.memory_space<vmem>>, %arg4: memref<1x32x96xbf16, #tpu.memory_space<vmem>>, %arg5: memref<1x1x96xf32, #tpu.memory_space<vmem>>, %arg6: memref<1x32x32xbf16, #tpu.memory_space<vmem>>, %arg7: memref<1x1x32xf32, #tpu.memory_space<vmem>>, %arg8: memref<1x1x32xf32, #tpu.memory_space<vmem>>, %arg9: memref<1x1x32xf32, #tpu.memory_space<vmem>>, %arg10: memref<1x32x64xbf16, #tpu.memory_space<vmem>>, %arg11: memref<1x1x64xf32, #tpu.memory_space<vmem>>, %arg12: memref<1x64x32xbf16, #tpu.memory_space<vmem>>, %arg13: memref<1x1x32xf32, #tpu.memory_space<vmem>>, %arg14: memref<1x1x32xf32, #tpu.memory_space<vmem>>, %arg15: memref<1x1x32xf32, #tpu.memory_space<vmem>>, %arg16: memref<4x8x32xf32, #tpu.memory_space<vmem>>) attributes {dimension_semantics = [#tpu.dimension_semantics<parallel>, #tpu.dimension_semantics<arbitrary>], iteration_bounds = array<i64: 1, 2>, scalar_prefetch = 0 : i64, scratch_operands = 0 : i64, tpu.core_type = #tpu.core_type<tc>, window_params = [{transform_indices = @transform_0, window_bounds = array<i64: 4, 8, 32>}, {transform_indices = @transform_1, window_bounds = array<i64: 4, 1, 8>}, {transform_indices = @transform_2, window_bounds = array<i64: 1, 32, 96>}, {transform_indices = @transform_3, window_bounds = array<i64: 1, 1, 96>}, {transform_indices = @transform_4, window_bounds = array<i64: 1, 32, 32>}, {transform_indices = @transform_5, window_bounds = array<i64: 1, 1, 32>}, {transform_indices = @transform_6, window_bounds = array<i64: 1, 1, 32>}, {transform_indices = @transform_7, window_bounds = array<i64: 1, 1, 32>}, {transform_indices = @transform_8, window_bounds = array<i64: 1, 32, 64>}, {transform_indices = @transform_9, window_bounds = array<i64: 1, 1, 64>}, {transform_indices = @transform_10, window_bounds = array<i64: 1, 64, 32>}, {transform_indices = @transform_11, window_bounds = array<i64: 1, 1, 32>}, {transform_indices = @transform_12, window_bounds = array<i64: 1, 1, 32>}, {transform_indices = @transform_13, window_bounds = array<i64: 1, 1, 32>}, {transform_indices = @transform_14, window_bounds = array<i64: 4, 8, 32>}]} {
    %c0_i32 = arith.constant 0 : i32
    %0 = arith.cmpi eq, %arg1, %c0_i32 : i32
    %1 = arith.extui %0 : i1 to i32
    %c0_i32_0 = arith.constant 0 : i32
    %2 = arith.cmpi ne, %1, %c0_i32_0 : i32
    scf.if %2 {
      %c0_69 = arith.constant 0 : index
      %c0_70 = arith.constant 0 : index
      %c0_71 = arith.constant 0 : index
      %150 = vector.load %arg2[%c0_69, %c0_70, %c0_71] : memref<4x8x32xf32, #tpu.memory_space<vmem>>, vector<4x8x32xf32>
      %c0_72 = arith.constant 0 : index
      %c0_73 = arith.constant 0 : index
      %c0_74 = arith.constant 0 : index
      %151 = vector.load %arg16[%c0_72, %c0_73, %c0_74] : memref<4x8x32xf32, #tpu.memory_space<vmem>>, vector<4x8x32xf32>
      tpu.vector_store %arg16[%c0_72, %c0_73, %c0_74], %150 {strides = array<i32>} : memref<4x8x32xf32, #tpu.memory_space<vmem>>, vector<4x8x32xf32>,
    } else {
    }
    %c0 = arith.constant 0 : index
    %c0_1 = arith.constant 0 : index
    %c0_2 = arith.constant 0 : index
    %3 = vector.load %arg16[%c0, %c0_1, %c0_2] : memref<4x8x32xf32, #tpu.memory_space<vmem>>, vector<4x8x32xf32>
    %4 = vector.shape_cast %3 : vector<4x8x32xf32> to vector<32x32xf32>
    %5 = arith.truncf %4 : vector<32x32xf32> to vector<32x32xbf16>
    %c0_3 = arith.constant 0 : index
    %c0_4 = arith.constant 0 : index
    %c0_5 = arith.constant 0 : index
    %6 = vector.load %arg4[%c0_3, %c0_4, %c0_5] : memref<1x32x96xbf16, #tpu.memory_space<vmem>>, vector<1x32x96xbf16>
    %7 = vector.shape_cast %6 : vector<1x32x96xbf16> to vector<32x96xbf16>
    %cst = arith.constant dense<0.000000e+00> : vector<32x96xf32>
    %8 = tpu.matmul %5, %7, %cst {dimension_numbers = #tpu.dot_dimension_numbers<[1], [0], [0], [1], [0, 0, 1, 1], [], []>} : vector<32x32xbf16>, vector<32x96xbf16>, vector<32x96xf32> -> vector<32x96xf32>
    %c0_6 = arith.constant 0 : index
    %c0_7 = arith.constant 0 : index
    %c0_8 = arith.constant 0 : index
    %9 = vector.load %arg5[%c0_6, %c0_7, %c0_8] : memref<1x1x96xf32, #tpu.memory_space<vmem>>, vector<1x1x96xf32>
    %10 = vector.shape_cast %9 : vector<1x1x96xf32> to vector<1x96xf32>
    %11 = vector.broadcast %10 : vector<1x96xf32> to vector<32x96xf32>
    %12 = arith.addf %8, %11 : vector<32x96xf32>
    %13 = vector.extract_strided_slice %12 {offsets = [0, 0], sizes = [32, 32], strides = [1, 1]} : vector<32x96xf32> to vector<32x32xf32>
    %14 = arith.truncf %13 : vector<32x32xf32> to vector<32x32xbf16>
    %15 = vector.shape_cast %14 : vector<32x32xbf16> to vector<4x8x4x8xbf16>
    %16 = tpu.transpose %15, [0, 2, 1, 3] : vector<4x8x4x8xbf16> -> vector<4x4x8x8xbf16>
    %17 = vector.shape_cast %16 : vector<4x4x8x8xbf16> to vector<16x8x8xbf16>
    %18 = vector.extract_strided_slice %12 {offsets = [0, 32], sizes = [32, 32], strides = [1, 1]} : vector<32x96xf32> to vector<32x32xf32>
    %19 = arith.truncf %18 : vector<32x32xf32> to vector<32x32xbf16>
    %20 = vector.shape_cast %19 : vector<32x32xbf16> to vector<4x8x4x8xbf16>
    %21 = tpu.transpose %20, [0, 2, 1, 3] : vector<4x8x4x8xbf16> -> vector<4x4x8x8xbf16>
    %22 = vector.shape_cast %21 : vector<4x4x8x8xbf16> to vector<16x8x8xbf16>
    %23 = vector.extract_strided_slice %12 {offsets = [0, 64], sizes = [32, 32], strides = [1, 1]} : vector<32x96xf32> to vector<32x32xf32>
    %24 = arith.truncf %23 : vector<32x32xf32> to vector<32x32xbf16>
    %25 = vector.shape_cast %24 : vector<32x32xbf16> to vector<4x8x4x8xbf16>
    %26 = tpu.transpose %25, [0, 2, 1, 3] : vector<4x8x4x8xbf16> -> vector<4x4x8x8xbf16>
    %27 = vector.shape_cast %26 : vector<4x4x8x8xbf16> to vector<16x8x8xbf16>
    %c0_9 = arith.constant 0 : index
    %c0_10 = arith.constant 0 : index
    %c0_11 = arith.constant 0 : index
    %28 = vector.load %arg3[%c0_9, %c0_10, %c0_11] : memref<4x1x8xf32, #tpu.memory_space<vmem>>, vector<4x1x8xf32>
    %cst_12 = arith.constant 1.000000e+00 : f32
    %29 = vector.broadcast %cst_12 : f32 to vector<4x1x8xf32>
    %30 = arith.subf %29, %28 : vector<4x1x8xf32>
    %cst_13 = arith.constant -1.000000e+04 : f32
    %31 = vector.broadcast %cst_13 : f32 to vector<4x1x8xf32>
    %32 = arith.mulf %30, %31 : vector<4x1x8xf32>
    %33 = vector.shape_cast %32 : vector<4x1x8xf32> to vector<4x1x1x8xf32>
    %34 = vector.shape_cast %33 : vector<4x1x1x8xf32> to vector<4x1x1x8xf32>
    %35 = vector.broadcast %34 : vector<4x1x1x8xf32> to vector<4x4x1x8xf32>
    %36 = vector.shape_cast %35 : vector<4x4x1x8xf32> to vector<16x1x8xf32>
    "tpu.trace_start"() <{level = 10 : i32, message = "bqd,bkd->bqk"}> : () -> ()
    %cst_14 = arith.constant dense<0.000000e+00> : vector<16x8x8xf32>
    %37 = tpu.matmul %17, %22, %cst_14 {dimension_numbers = #tpu.dot_dimension_numbers<[2], [2], [1], [1], [0, 0, 0, 1, 1, 1], [0], [0]>} : vector<16x8x8xbf16>, vector<16x8x8xbf16>, vector<16x8x8xf32> -> vector<16x8x8xf32>
    "tpu.trace_stop"() : () -> ()
    %cst_15 = arith.constant 0.353553385 : f32
    %38 = vector.broadcast %cst_15 : f32 to vector<16x8x8xf32>
    %39 = arith.mulf %37, %38 : vector<16x8x8xf32>
    %40 = vector.broadcast %36 : vector<16x1x8xf32> to vector<16x8x8xf32>
    %41 = arith.addf %39, %40 : vector<16x8x8xf32>
    %cst_16 = arith.constant dense<0xFF800000> : vector<16x8xf32>
    %42 = vector.multi_reduction <maximumf>, %41, %cst_16 [2] : vector<16x8x8xf32> to vector<16x8xf32>
    %43 = vector.shape_cast %42 : vector<16x8xf32> to vector<16x8x1xf32>
    %44 = vector.broadcast %43 : vector<16x8x1xf32> to vector<16x8x8xf32>
    %45 = arith.subf %41, %44 : vector<16x8x8xf32>
    %46 = math.exp %45 : vector<16x8x8xf32>
    %cst_17 = arith.constant dense<0.000000e+00> : vector<16x8xf32>
    %47 = vector.multi_reduction <add>, %46, %cst_17 [2] : vector<16x8x8xf32> to vector<16x8xf32>
    %48 = vector.shape_cast %47 : vector<16x8xf32> to vector<16x8x1xf32>
    %49 = tpu.reciprocal %48 {approx = true} : vector<16x8x1xf32> -> vector<16x8x1xf32>
    %50 = vector.broadcast %49 : vector<16x8x1xf32> to vector<16x8x8xf32>
    %51 = arith.mulf %46, %50 : vector<16x8x8xf32>
    %52 = arith.truncf %51 : vector<16x8x8xf32> to vector<16x8x8xbf16>
    "tpu.trace_start"() <{level = 10 : i32, message = "bqk,bkd->bqd"}> : () -> ()
    %cst_18 = arith.constant dense<0.000000e+00> : vector<16x8x8xf32>
    %53 = tpu.matmul %52, %27, %cst_18 {dimension_numbers = #tpu.dot_dimension_numbers<[2], [1], [1], [2], [0, 0, 0, 1, 1, 2], [0], [0]>} : vector<16x8x8xbf16>, vector<16x8x8xbf16>, vector<16x8x8xf32> -> vector<16x8x8xf32>
    "tpu.trace_stop"() : () -> ()
    %54 = vector.shape_cast %53 : vector<16x8x8xf32> to vector<4x4x8x8xf32>
    %55 = tpu.transpose %54, [0, 2, 1, 3] : vector<4x4x8x8xf32> -> vector<4x8x4x8xf32>
    %56 = vector.shape_cast %55 : vector<4x8x4x8xf32> to vector<32x32xf32>
    %57 = arith.truncf %56 : vector<32x32xf32> to vector<32x32xbf16>
    %c0_19 = arith.constant 0 : index
    %c0_20 = arith.constant 0 : index
    %c0_21 = arith.constant 0 : index
    %58 = vector.load %arg6[%c0_19, %c0_20, %c0_21] : memref<1x32x32xbf16, #tpu.memory_space<vmem>>, vector<1x32x32xbf16>
    %59 = vector.shape_cast %58 : vector<1x32x32xbf16> to vector<32x32xbf16>
    %cst_22 = arith.constant dense<0.000000e+00> : vector<32x32xf32>
    %60 = tpu.matmul %57, %59, %cst_22 {dimension_numbers = #tpu.dot_dimension_numbers<[1], [0], [0], [1], [0, 0, 1, 1], [], []>} : vector<32x32xbf16>, vector<32x32xbf16>, vector<32x32xf32> -> vector<32x32xf32>
    %c0_23 = arith.constant 0 : index
    %c0_24 = arith.constant 0 : index
    %c0_25 = arith.constant 0 : index
    %61 = vector.load %arg7[%c0_23, %c0_24, %c0_25] : memref<1x1x32xf32, #tpu.memory_space<vmem>>, vector<1x1x32xf32>
    %62 = vector.shape_cast %61 : vector<1x1x32xf32> to vector<1x32xf32>
    %63 = vector.broadcast %62 : vector<1x32xf32> to vector<32x32xf32>
    %64 = arith.addf %60, %63 : vector<32x32xf32>
    %65 = arith.addf %64, %4 : vector<32x32xf32>
    %c0_26 = arith.constant 0 : index
    %c0_27 = arith.constant 0 : index
    %c0_28 = arith.constant 0 : index
    %66 = vector.load %arg8[%c0_26, %c0_27, %c0_28] : memref<1x1x32xf32, #tpu.memory_space<vmem>>, vector<1x1x32xf32>
    %67 = vector.shape_cast %66 : vector<1x1x32xf32> to vector<1x32xf32>
    %c0_29 = arith.constant 0 : index
    %c0_30 = arith.constant 0 : index
    %c0_31 = arith.constant 0 : index
    %68 = vector.load %arg9[%c0_29, %c0_30, %c0_31] : memref<1x1x32xf32, #tpu.memory_space<vmem>>, vector<1x1x32xf32>
    %69 = vector.shape_cast %68 : vector<1x1x32xf32> to vector<1x32xf32>
    %cst_32 = arith.constant dense<0.000000e+00> : vector<32xf32>
    %70 = vector.multi_reduction <add>, %65, %cst_32 [1] : vector<32x32xf32> to vector<32xf32>
    %71 = vector.shape_cast %70 : vector<32xf32> to vector<32x1xf32>
    %cst_33 = arith.constant 3.200000e+01 : f32
    %72 = vector.broadcast %cst_33 : f32 to vector<32x1xf32>
    %73 = arith.divf %71, %72 : vector<32x1xf32>
    %74 = vector.broadcast %73 : vector<32x1xf32> to vector<32x32xf32>
    %75 = arith.subf %65, %74 : vector<32x32xf32>
    %76 = arith.mulf %75, %75 : vector<32x32xf32>
    %cst_34 = arith.constant dense<0.000000e+00> : vector<32xf32>
    %77 = vector.multi_reduction <add>, %76, %cst_34 [1] : vector<32x32xf32> to vector<32xf32>
    %78 = vector.shape_cast %77 : vector<32xf32> to vector<32x1xf32>
    %cst_35 = arith.constant 3.200000e+01 : f32
    %79 = vector.broadcast %cst_35 : f32 to vector<32x1xf32>
    %80 = arith.divf %78, %79 : vector<32x1xf32>
    %81 = vector.broadcast %73 : vector<32x1xf32> to vector<32x32xf32>
    %82 = arith.subf %65, %81 : vector<32x32xf32>
    %cst_36 = arith.constant 9.99999996E-13 : f32
    %83 = vector.broadcast %cst_36 : f32 to vector<32x1xf32>
    %84 = arith.addf %80, %83 : vector<32x1xf32>
    %85 = math.rsqrt %84 : vector<32x1xf32>
    %86 = vector.broadcast %85 : vector<32x1xf32> to vector<32x32xf32>
    %87 = arith.mulf %82, %86 : vector<32x32xf32>
    %88 = vector.broadcast %67 : vector<1x32xf32> to vector<32x32xf32>
    %89 = arith.mulf %87, %88 : vector<32x32xf32>
    %90 = vector.broadcast %69 : vector<1x32xf32> to vector<32x32xf32>
    %91 = arith.addf %89, %90 : vector<32x32xf32>
    %92 = arith.truncf %91 : vector<32x32xf32> to vector<32x32xbf16>
    %c0_37 = arith.constant 0 : index
    %c0_38 = arith.constant 0 : index
    %c0_39 = arith.constant 0 : index
    %93 = vector.load %arg10[%c0_37, %c0_38, %c0_39] : memref<1x32x64xbf16, #tpu.memory_space<vmem>>, vector<1x32x64xbf16>
    %94 = vector.shape_cast %93 : vector<1x32x64xbf16> to vector<32x64xbf16>
    %cst_40 = arith.constant dense<0.000000e+00> : vector<32x64xf32>
    %95 = tpu.matmul %92, %94, %cst_40 {dimension_numbers = #tpu.dot_dimension_numbers<[1], [0], [0], [1], [0, 0, 1, 1], [], []>} : vector<32x32xbf16>, vector<32x64xbf16>, vector<32x64xf32> -> vector<32x64xf32>
    %c0_41 = arith.constant 0 : index
    %c0_42 = arith.constant 0 : index
    %c0_43 = arith.constant 0 : index
    %96 = vector.load %arg11[%c0_41, %c0_42, %c0_43] : memref<1x1x64xf32, #tpu.memory_space<vmem>>, vector<1x1x64xf32>
    %97 = vector.shape_cast %96 : vector<1x1x64xf32> to vector<1x64xf32>
    %98 = vector.broadcast %97 : vector<1x64xf32> to vector<32x64xf32>
    %99 = arith.addf %95, %98 : vector<32x64xf32>
    %cst_44 = arith.constant 5.000000e-01 : f32
    %100 = vector.broadcast %cst_44 : f32 to vector<32x64xf32>
    %101 = arith.mulf %100, %99 : vector<32x64xf32>
    %cst_45 = arith.constant 4.471500e-02 : f32
    %102 = vector.broadcast %cst_45 : f32 to vector<32x64xf32>
    %103 = arith.mulf %102, %99 : vector<32x64xf32>
    %104 = arith.mulf %103, %99 : vector<32x64xf32>
    %105 = arith.mulf %104, %99 : vector<32x64xf32>
    %106 = arith.addf %99, %105 : vector<32x64xf32>
    %cst_46 = arith.constant 0.797884583 : f32
    %107 = vector.broadcast %cst_46 : f32 to vector<32x64xf32>
    %108 = arith.mulf %107, %106 : vector<32x64xf32>
    %109 = math.tanh %108 : vector<32x64xf32>
    %cst_47 = arith.constant 1.000000e+00 : f32
    %110 = vector.broadcast %cst_47 : f32 to vector<32x64xf32>
    %111 = arith.addf %110, %109 : vector<32x64xf32>
    %112 = arith.mulf %101, %111 : vector<32x64xf32>
    %113 = arith.truncf %112 : vector<32x64xf32> to vector<32x64xbf16>
    %c0_48 = arith.constant 0 : index
    %c0_49 = arith.constant 0 : index
    %c0_50 = arith.constant 0 : index
    %114 = vector.load %arg12[%c0_48, %c0_49, %c0_50] : memref<1x64x32xbf16, #tpu.memory_space<vmem>>, vector<1x64x32xbf16>
    %115 = vector.shape_cast %114 : vector<1x64x32xbf16> to vector<64x32xbf16>
    %cst_51 = arith.constant dense<0.000000e+00> : vector<32x32xf32>
    %116 = tpu.matmul %113, %115, %cst_51 {dimension_numbers = #tpu.dot_dimension_numbers<[1], [0], [0], [1], [0, 0, 1, 1], [], []>} : vector<32x64xbf16>, vector<64x32xbf16>, vector<32x32xf32> -> vector<32x32xf32>
    %c0_52 = arith.constant 0 : index
    %c0_53 = arith.constant 0 : index
    %c0_54 = arith.constant 0 : index
    %117 = vector.load %arg13[%c0_52, %c0_53, %c0_54] : memref<1x1x32xf32, #tpu.memory_space<vmem>>, vector<1x1x32xf32>
    %118 = vector.shape_cast %117 : vector<1x1x32xf32> to vector<1x32xf32>
    %119 = vector.broadcast %118 : vector<1x32xf32> to vector<32x32xf32>
    %120 = arith.addf %116, %119 : vector<32x32xf32>
    %121 = arith.addf %120, %91 : vector<32x32xf32>
    %c0_55 = arith.constant 0 : index
    %c0_56 = arith.constant 0 : index
    %c0_57 = arith.constant 0 : index
    %122 = vector.load %arg14[%c0_55, %c0_56, %c0_57] : memref<1x1x32xf32, #tpu.memory_space<vmem>>, vector<1x1x32xf32>
    %123 = vector.shape_cast %122 : vector<1x1x32xf32> to vector<1x32xf32>
    %c0_58 = arith.constant 0 : index
    %c0_59 = arith.constant 0 : index
    %c0_60 = arith.constant 0 : index
    %124 = vector.load %arg15[%c0_58, %c0_59, %c0_60] : memref<1x1x32xf32, #tpu.memory_space<vmem>>, vector<1x1x32xf32>
    %125 = vector.shape_cast %124 : vector<1x1x32xf32> to vector<1x32xf32>
    %cst_61 = arith.constant dense<0.000000e+00> : vector<32xf32>
    %126 = vector.multi_reduction <add>, %121, %cst_61 [1] : vector<32x32xf32> to vector<32xf32>
    %127 = vector.shape_cast %126 : vector<32xf32> to vector<32x1xf32>
    %cst_62 = arith.constant 3.200000e+01 : f32
    %128 = vector.broadcast %cst_62 : f32 to vector<32x1xf32>
    %129 = arith.divf %127, %128 : vector<32x1xf32>
    %130 = vector.broadcast %129 : vector<32x1xf32> to vector<32x32xf32>
    %131 = arith.subf %121, %130 : vector<32x32xf32>
    %132 = arith.mulf %131, %131 : vector<32x32xf32>
    %cst_63 = arith.constant dense<0.000000e+00> : vector<32xf32>
    %133 = vector.multi_reduction <add>, %132, %cst_63 [1] : vector<32x32xf32> to vector<32xf32>
    %134 = vector.shape_cast %133 : vector<32xf32> to vector<32x1xf32>
    %cst_64 = arith.constant 3.200000e+01 : f32
    %135 = vector.broadcast %cst_64 : f32 to vector<32x1xf32>
    %136 = arith.divf %134, %135 : vector<32x1xf32>
    %137 = vector.broadcast %129 : vector<32x1xf32> to vector<32x32xf32>
    %138 = arith.subf %121, %137 : vector<32x32xf32>
    %cst_65 = arith.constant 9.99999996E-13 : f32
    %139 = vector.broadcast %cst_65 : f32 to vector<32x1xf32>
    %140 = arith.addf %136, %139 : vector<32x1xf32>
    %141 = math.rsqrt %140 : vector<32x1xf32>
    %142 = vector.broadcast %141 : vector<32x1xf32> to vector<32x32xf32>
    %143 = arith.mulf %138, %142 : vector<32x32xf32>
    %144 = vector.broadcast %123 : vector<1x32xf32> to vector<32x32xf32>
    %145 = arith.mulf %143, %144 : vector<32x32xf32>
    %146 = vector.broadcast %125 : vector<1x32xf32> to vector<32x32xf32>
    %147 = arith.addf %145, %146 : vector<32x32xf32>
    %148 = vector.shape_cast %147 : vector<32x32xf32> to vector<4x8x32xf32>
    %c0_66 = arith.constant 0 : index
    %c0_67 = arith.constant 0 : index
    %c0_68 = arith.constant 0 : index
    %149 = vector.load %arg16[%c0_66, %c0_67, %c0_68] : memref<4x8x32xf32, #tpu.memory_space<vmem>>, vector<4x8x32xf32>
    tpu.vector_store %arg16[%c0_66, %c0_67, %c0_68], %148 {strides = array<i32>} : memref<4x8x32xf32, #tpu.memory_space<vmem>>, vector<4x8x32xf32>,
    return
  }
  func.func @transform_0(%arg0: i32, %arg1: i32) -> (i32, i32, i32) {
    %c0_i32 = arith.constant 0 : i32
    %c0_i32_0 = arith.constant 0 : i32
    %c0_i32_1 = arith.constant 0 : i32
    return %arg0, %c0_i32, %c0_i32_0 : i32, i32, i32
  }
  func.func @transform_1(%arg0: i32, %arg1: i32) -> (i32, i32, i32) {
    %c0_i32 = arith.constant 0 : i32
    %c0_i32_0 = arith.constant 0 : i32
    %c0_i32_1 = arith.constant 0 : i32
    return %arg0, %c0_i32, %c0_i32_0 : i32, i32, i32
  }
  func.func @transform_2(%arg0: i32, %arg1: i32) -> (i32, i32, i32) {
    %c0_i32 = arith.constant 0 : i32
    %c0_i32_0 = arith.constant 0 : i32
    %c0_i32_1 = arith.constant 0 : i32
    return %arg1, %c0_i32, %c0_i32_0 : i32, i32, i32
  }
  func.func @transform_3(%arg0: i32, %arg1: i32) -> (i32, i32, i32) {
    %c0_i32 = arith.constant 0 : i32
    %c0_i32_0 = arith.constant 0 : i32
    %c0_i32_1 = arith.constant 0 : i32
    return %arg1, %c0_i32, %c0_i32_0 : i32, i32, i32
  }
  func.func @transform_4(%arg0: i32, %arg1: i32) -> (i32, i32, i32) {
    %c0_i32 = arith.constant 0 : i32
    %c0_i32_0 = arith.constant 0 : i32
    %c0_i32_1 = arith.constant 0 : i32
    return %arg1, %c0_i32, %c0_i32_0 : i32, i32, i32
  }
  func.func @transform_5(%arg0: i32, %arg1: i32) -> (i32, i32, i32) {
    %c0_i32 = arith.constant 0 : i32
    %c0_i32_0 = arith.constant 0 : i32
    %c0_i32_1 = arith.constant 0 : i32
    return %arg1, %c0_i32, %c0_i32_0 : i32, i32, i32
  }
  func.func @transform_6(%arg0: i32, %arg1: i32) -> (i32, i32, i32) {
    %c0_i32 = arith.constant 0 : i32
    %c0_i32_0 = arith.constant 0 : i32
    %c0_i32_1 = arith.constant 0 : i32
    return %arg1, %c0_i32, %c0_i32_0 : i32, i32, i32
  }
  func.func @transform_7(%arg0: i32, %arg1: i32) -> (i32, i32, i32) {
    %c0_i32 = arith.constant 0 : i32
    %c0_i32_0 = arith.constant 0 : i32
    %c0_i32_1 = arith.constant 0 : i32
    return %arg1, %c0_i32, %c0_i32_0 : i32, i32, i32
  }
  func.func @transform_8(%arg0: i32, %arg1: i32) -> (i32, i32, i32) {
    %c0_i32 = arith.constant 0 : i32
    %c0_i32_0 = arith.constant 0 : i32
    %c0_i32_1 = arith.constant 0 : i32
    return %arg1, %c0_i32, %c0_i32_0 : i32, i32, i32
  }
  func.func @transform_9(%arg0: i32, %arg1: i32) -> (i32, i32, i32) {
    %c0_i32 = arith.constant 0 : i32
    %c0_i32_0 = arith.constant 0 : i32
    %c0_i32_1 = arith.constant 0 : i32
    return %arg1, %c0_i32, %c0_i32_0 : i32, i32, i32
  }
  func.func @transform_10(%arg0: i32, %arg1: i32) -> (i32, i32, i32) {
    %c0_i32 = arith.constant 0 : i32
    %c0_i32_0 = arith.constant 0 : i32
    %c0_i32_1 = arith.constant 0 : i32
    return %arg1, %c0_i32, %c0_i32_0 : i32, i32, i32
  }
  func.func @transform_11(%arg0: i32, %arg1: i32) -> (i32, i32, i32) {
    %c0_i32 = arith.constant 0 : i32
    %c0_i32_0 = arith.constant 0 : i32
    %c0_i32_1 = arith.constant 0 : i32
    return %arg1, %c0_i32, %c0_i32_0 : i32, i32, i32
  }
  func.func @transform_12(%arg0: i32, %arg1: i32) -> (i32, i32, i32) {
    %c0_i32 = arith.constant 0 : i32
    %c0_i32_0 = arith.constant 0 : i32
    %c0_i32_1 = arith.constant 0 : i32
    return %arg1, %c0_i32, %c0_i32_0 : i32, i32, i32
  }
  func.func @transform_13(%arg0: i32, %arg1: i32) -> (i32, i32, i32) {
    %c0_i32 = arith.constant 0 : i32
    %c0_i32_0 = arith.constant 0 : i32
    %c0_i32_1 = arith.constant 0 : i32
    return %arg1, %c0_i32, %c0_i32_0 : i32, i32, i32
  }
  func.func @transform_14(%arg0: i32, %arg1: i32) -> (i32, i32, i32) {
    %c0_i32 = arith.constant 0 : i32
    %c0_i32_0 = arith.constant 0 : i32
    %c0_i32_1 = arith.constant 0 : i32
    return %arg0, %c0_i32, %c0_i32_0 : i32, i32, i32
  }
}

</mosaic_0001>

<llo_original>
// kernel: _lambda_.1
$region0: #{_lambda_.1}
  #allocation0 [shape = 'u32[]', space=smem, size = 0x4, offset = 0x4, fixed_abs, tag = 'smem constant byte address 0x4 - core index']
  #allocation1 [shape = 'u32[144,128]{1,0:T(1,128)}', space=vmem, size = 0x12000, scoped, tag = 'internal scratch']
  %s0 = inlined_call_operand.hbm [shape: f32[4,8,32], index: 0, kind: input, shape index: {}, may-alias: {0,14}]
  %s1 = inlined_call_operand.vmem [shape: f32[4,1,8], index: 1, kind: input, shape index: {}]
  %s2 = inlined_call_operand.vmem [shape: bf16[2,32,96], index: 2, kind: input, shape index: {}]
  %s3 = inlined_call_operand.vmem [shape: f32[2,1,96], index: 3, kind: input, shape index: {}]
  %s4 = inlined_call_operand.vmem [shape: bf16[2,32,32], index: 4, kind: input, shape index: {}]
  %s5 = inlined_call_operand.vmem [shape: f32[2,1,32], index: 5, kind: input, shape index: {}]
  %s6 = inlined_call_operand.vmem [shape: f32[2,1,32], index: 6, kind: input, shape index: {}]
  %s7 = inlined_call_operand.vmem [shape: f32[2,1,32], index: 7, kind: input, shape index: {}]
  %s8 = inlined_call_operand.vmem [shape: bf16[2,32,64], index: 8, kind: input, shape index: {}]
  %s9 = inlined_call_operand.vmem [shape: f32[2,1,64], index: 9, kind: input, shape index: {}]
  %s10 = inlined_call_operand.vmem [shape: bf16[2,64,32], index: 10, kind: input, shape index: {}]
  %s11 = inlined_call_operand.vmem [shape: f32[2,1,32], index: 11, kind: input, shape index: {}]
  %s12 = inlined_call_operand.vmem [shape: f32[2,1,32], index: 12, kind: input, shape index: {}]
  %s13 = inlined_call_operand.vmem [shape: f32[2,1,32], index: 13, kind: input, shape index: {}]
  %s14 = inlined_call_operand.hbm [shape: f32[4,8,32], index: 14, kind: output, shape index: {}, may-alias: {0,14}]
  %s15 = sld [smem:[#allocation0]]
  $region97: #{_lambda_.1} parent=0
    _
  %s17 = ssub.s32 1, %s15
  %s18 = scalar_select 0, %s17, %s15
  $region1: #{_lambda_.1} parent=0
    #allocation2 [shape = 'u8[16384]{0}', space=vmem, size = 0x4000, scoped, tag = 'input window, operand 0, single buffered']
    #allocation3 [shape = 's32[2]{0}', space=sflag, size = 0x8, scoped, tag = 'scoped memory for _lambda_.1']
    #allocation4 [shape = 's32[2]{0}', space=sflag, size = 0x8, scoped, tag = 'scoped memory for _lambda_.1']
    #allocation5 [shape = 'u8[16384]{0}', space=vmem, size = 0x4000, scoped, tag = 'output window, operand 0, single buffered']
    %19 = vsyncpa [#allocation3], 0
    %20 = vsyncpa [#allocation4], 0
    loop: start=0, step=1, limit=4
    $region2: #{_lambda_.1} parent=1 // loop_pre_header
      _
    $region3: #{_lambda_.1} parent=1 // loop_header
      %s22 = sphi 0, %s26
      %p23 = scmp.ge.s32.totalorder %s22, 4
      %s29 = sphi 0, %s41
      %s30 = sphi 0, %s37
      %s31 = sphi 0, %s29
      %s32 = sphi 0, %s30
      %s33 = sphi 0, %s31
      %s34 = sphi 0, %s32
      %s44 = sphi 0, %s46
      %s47 = sphi 0, %s44
      %s48 = sphi 0, %s47
      %s64 = sphi 0, %s48
      %s70 = sphi 0, %s72
      %s73 = sphi 0, %s70
      %s74 = sphi 0, %s73
      %s90 = sphi 0, %s74
      %s96 = sphi 0, %s98
      %s99 = sphi 0, %s96
      %s100 = sphi 0, %s99
      %s116 = sphi 0, %s100
      %s122 = sphi 0, %s124
      %s125 = sphi 0, %s122
      %s126 = sphi 0, %s125
      %s142 = sphi 0, %s126
      %s148 = sphi 0, %s150
      %s151 = sphi 0, %s148
      %s152 = sphi 0, %s151
      %s168 = sphi 0, %s152
      %s174 = sphi 0, %s176
      %s177 = sphi 0, %s174
      %s178 = sphi 0, %s177
      %s194 = sphi 0, %s178
      %s200 = sphi 0, %s202
      %s203 = sphi 0, %s200
      %s204 = sphi 0, %s203
      %s220 = sphi 0, %s204
      %s226 = sphi 0, %s228
      %s229 = sphi 0, %s226
      %s230 = sphi 0, %s229
      %s246 = sphi 0, %s230
      %s252 = sphi 0, %s254
      %s255 = sphi 0, %s252
      %s256 = sphi 0, %s255
      %s272 = sphi 0, %s256
      %s278 = sphi 0, %s280
      %s281 = sphi 0, %s278
      %s282 = sphi 0, %s281
      %s298 = sphi 0, %s282
      %s304 = sphi 0, %s306
      %s307 = sphi 0, %s304
      %s308 = sphi 0, %s307
      %s324 = sphi 0, %s308
      %s330 = sphi 0, %s332
      %s333 = sphi 0, %s330
      %s334 = sphi 0, %s333
      %s350 = sphi 0, %s334
      %s356 = sphi 0, %s358
      %s359 = sphi 0, %s356
      %s360 = sphi 0, %s359
      %s376 = sphi 0, %s360
      %s382 = sphi 0, %s384
      %s385 = sphi 0, %s382
      %s386 = sphi 0, %s385
      %s402 = sphi 0, %s386
      %s408 = sphi 0, %s410
      %s411 = sphi 0, %s408
      %s412 = sphi 0, %s411
      %s428 = sphi 0, %s412
    $region4: #{_lambda_.1} parent=1 // loop_header_branch
      %25 = sbr.rel (%p23) target = $region8
    $region5: #{_lambda_.1} parent=1 // loop_body
      %s27 = ssub.s32 %s22, 1
      %s28 = ssub.s32 %s22, 2
      %s35 = sadd.s32 1, %s30
      %p36 = scmp.ge.s32.totalorder %s35, 2
      %s37 = scalar_select %p36, 0, %s35
      %s38 = sadd.s32 1, %s29
      %s39 = scalar_select %p36, %s38, %s29
      %p40 = scmp.ge.s32.totalorder %s39, 1
      %s41 = scalar_select %p40, 0, %s39
      %s42 = ssub.s32 %s29, %s41
      %p43 = scmp.eq.s32.totalorder %s42, 0
      %s45 = sadd.s32 %s44, 1
      %s46 = scalar_select %p43, %s44, %s45
      %p49 = pneg %p43
      %p50 = scmp.eq.s32.totalorder %s22, 1
      %p51 = por %p49, %p50
      %p52 = scmp.ne.s32.totalorder %s44, %s47
      %p53 = scmp.eq.s32.totalorder %s22, 0
      %p54 = por %p52, %p53
      %p55 = scmp.ne.s32.totalorder %s44, %s47
      %p56 = scmp.eq.s32.totalorder %s27, 1
      %p57 = por %p55, %p56
      %p58 = scmp.ne.s32.totalorder %s47, %s48
      %p59 = scmp.eq.s32.totalorder %s27, 0
      %p60 = por %p58, %p59
      %p61 = scmp.ne.s32.totalorder %s47, %s48
      %p62 = scmp.eq.s32.totalorder %s28, 1
      %p63 = por %p61, %p62
      %p65 = scmp.ne.s32.totalorder %s48, %s64
      %p66 = scmp.eq.s32.totalorder %s28, 0
      %p67 = por %p65, %p66
      %s68 = ssub.s32 %s29, %s41
      %p69 = scmp.eq.s32.totalorder %s68, 0
      %s71 = sadd.s32 %s70, 1
      %s72 = scalar_select %p69, %s70, %s71
      %p75 = pneg %p69
      %p76 = scmp.eq.s32.totalorder %s22, 1
      %p77 = por %p75, %p76
      %p78 = scmp.ne.s32.totalorder %s70, %s73
      %p79 = scmp.eq.s32.totalorder %s22, 0
      %p80 = por %p78, %p79
      %p81 = scmp.ne.s32.totalorder %s70, %s73
      %p82 = scmp.eq.s32.totalorder %s27, 1
      %p83 = por %p81, %p82
      %p84 = scmp.ne.s32.totalorder %s73, %s74
      %p85 = scmp.eq.s32.totalorder %s27, 0
      %p86 = por %p84, %p85
      %p87 = scmp.ne.s32.totalorder %s73, %s74
      %p88 = scmp.eq.s32.totalorder %s28, 1
      %p89 = por %p87, %p88
      %p91 = scmp.ne.s32.totalorder %s74, %s90
      %p92 = scmp.eq.s32.totalorder %s28, 0
      %p93 = por %p91, %p92
      %s94 = ssub.s32 %s30, %s37
      %p95 = scmp.eq.s32.totalorder %s94, 0
      %s97 = sadd.s32 %s96, 1
      %s98 = scalar_select %p95, %s96, %s97
      %p101 = pneg %p95
      %p102 = scmp.eq.s32.totalorder %s22, 1
      %p103 = por %p101, %p102
      %p104 = scmp.ne.s32.totalorder %s96, %s99
      %p105 = scmp.eq.s32.totalorder %s22, 0
      %p106 = por %p104, %p105
      %p107 = scmp.ne.s32.totalorder %s96, %s99
      %p108 = scmp.eq.s32.totalorder %s27, 1
      %p109 = por %p107, %p108
      %p110 = scmp.ne.s32.totalorder %s99, %s100
      %p111 = scmp.eq.s32.totalorder %s27, 0
      %p112 = por %p110, %p111
      %p113 = scmp.ne.s32.totalorder %s99, %s100
      %p114 = scmp.eq.s32.totalorder %s28, 1
      %p115 = por %p113, %p114
      %p117 = scmp.ne.s32.totalorder %s100, %s116
      %p118 = scmp.eq.s32.totalorder %s28, 0
      %p119 = por %p117, %p118
      %s120 = ssub.s32 %s30, %s37
      %p121 = scmp.eq.s32.totalorder %s120, 0
      %s123 = sadd.s32 %s122, 1
      %s124 = scalar_select %p121, %s122, %s123
      %p127 = pneg %p121
      %p128 = scmp.eq.s32.totalorder %s22, 1
      %p129 = por %p127, %p128
      %p130 = scmp.ne.s32.totalorder %s122, %s125
      %p131 = scmp.eq.s32.totalorder %s22, 0
      %p132 = por %p130, %p131
      %p133 = scmp.ne.s32.totalorder %s122, %s125
      %p134 = scmp.eq.s32.totalorder %s27, 1
      %p135 = por %p133, %p134
      %p136 = scmp.ne.s32.totalorder %s125, %s126
      %p137 = scmp.eq.s32.totalorder %s27, 0
      %p138 = por %p136, %p137
      %p139 = scmp.ne.s32.totalorder %s125, %s126
      %p140 = scmp.eq.s32.totalorder %s28, 1
      %p141 = por %p139, %p140
      %p143 = scmp.ne.s32.totalorder %s126, %s142
      %p144 = scmp.eq.s32.totalorder %s28, 0
      %p145 = por %p143, %p144
      %s146 = ssub.s32 %s30, %s37
      %p147 = scmp.eq.s32.totalorder %s146, 0
      %s149 = sadd.s32 %s148, 1
      %s150 = scalar_select %p147, %s148, %s149
      %p153 = pneg %p147
      %p154 = scmp.eq.s32.totalorder %s22, 1
      %p155 = por %p153, %p154
      %p156 = scmp.ne.s32.totalorder %s148, %s151
      %p157 = scmp.eq.s32.totalorder %s22, 0
      %p158 = por %p156, %p157
      %p159 = scmp.ne.s32.totalorder %s148, %s151
      %p160 = scmp.eq.s32.totalorder %s27, 1
      %p161 = por %p159, %p160
      %p162 = scmp.ne.s32.totalorder %s151, %s152
      %p163 = scmp.eq.s32.totalorder %s27, 0
      %p164 = por %p162, %p163
      %p165 = scmp.ne.s32.totalorder %s151, %s152
      %p166 = scmp.eq.s32.totalorder %s28, 1
      %p167 = por %p165, %p166
      %p169 = scmp.ne.s32.totalorder %s152, %s168
      %p170 = scmp.eq.s32.totalorder %s28, 0
      %p171 = por %p169, %p170
      %s172 = ssub.s32 %s30, %s37
      %p173 = scmp.eq.s32.totalorder %s172, 0
      %s175 = sadd.s32 %s174, 1
      %s176 = scalar_select %p173, %s174, %s175
      %p179 = pneg %p173
      %p180 = scmp.eq.s32.totalorder %s22, 1
      %p181 = por %p179, %p180
      %p182 = scmp.ne.s32.totalorder %s174, %s177
      %p183 = scmp.eq.s32.totalorder %s22, 0
      %p184 = por %p182, %p183
      %p185 = scmp.ne.s32.totalorder %s174, %s177
      %p186 = scmp.eq.s32.totalorder %s27, 1
      %p187 = por %p185, %p186
      %p188 = scmp.ne.s32.totalorder %s177, %s178
      %p189 = scmp.eq.s32.totalorder %s27, 0
      %p190 = por %p188, %p189
      %p191 = scmp.ne.s32.totalorder %s177, %s178
      %p192 = scmp.eq.s32.totalorder %s28, 1
      %p193 = por %p191, %p192
      %p195 = scmp.ne.s32.totalorder %s178, %s194
      %p196 = scmp.eq.s32.totalorder %s28, 0
      %p197 = por %p195, %p196
      %s198 = ssub.s32 %s30, %s37
      %p199 = scmp.eq.s32.totalorder %s198, 0
      %s201 = sadd.s32 %s200, 1
      %s202 = scalar_select %p199, %s200, %s201
      %p205 = pneg %p199
      %p206 = scmp.eq.s32.totalorder %s22, 1
      %p207 = por %p205, %p206
      %p208 = scmp.ne.s32.totalorder %s200, %s203
      %p209 = scmp.eq.s32.totalorder %s22, 0
      %p210 = por %p208, %p209
      %p211 = scmp.ne.s32.totalorder %s200, %s203
      %p212 = scmp.eq.s32.totalorder %s27, 1
      %p213 = por %p211, %p212
      %p214 = scmp.ne.s32.totalorder %s203, %s204
      %p215 = scmp.eq.s32.totalorder %s27, 0
      %p216 = por %p214, %p215
      %p217 = scmp.ne.s32.totalorder %s203, %s204
      %p218 = scmp.eq.s32.totalorder %s28, 1
      %p219 = por %p217, %p218
      %p221 = scmp.ne.s32.totalorder %s204, %s220
      %p222 = scmp.eq.s32.totalorder %s28, 0
      %p223 = por %p221, %p222
      %s224 = ssub.s32 %s30, %s37
      %p225 = scmp.eq.s32.totalorder %s224, 0
      %s227 = sadd.s32 %s226, 1
      %s228 = scalar_select %p225, %s226, %s227
      %p231 = pneg %p225
      %p232 = scmp.eq.s32.totalorder %s22, 1
      %p233 = por %p231, %p232
      %p234 = scmp.ne.s32.totalorder %s226, %s229
      %p235 = scmp.eq.s32.totalorder %s22, 0
      %p236 = por %p234, %p235
      %p237 = scmp.ne.s32.totalorder %s226, %s229
      %p238 = scmp.eq.s32.totalorder %s27, 1
      %p239 = por %p237, %p238
      %p240 = scmp.ne.s32.totalorder %s229, %s230
      %p241 = scmp.eq.s32.totalorder %s27, 0
      %p242 = por %p240, %p241
      %p243 = scmp.ne.s32.totalorder %s229, %s230
      %p244 = scmp.eq.s32.totalorder %s28, 1
      %p245 = por %p243, %p244
      %p247 = scmp.ne.s32.totalorder %s230, %s246
      %p248 = scmp.eq.s32.totalorder %s28, 0
      %p249 = por %p247, %p248
      %s250 = ssub.s32 %s30, %s37
      %p251 = scmp.eq.s32.totalorder %s250, 0
      %s253 = sadd.s32 %s252, 1
      %s254 = scalar_select %p251, %s252, %s253
      %p257 = pneg %p251
      %p258 = scmp.eq.s32.totalorder %s22, 1
      %p259 = por %p257, %p258
      %p260 = scmp.ne.s32.totalorder %s252, %s255
      %p261 = scmp.eq.s32.totalorder %s22, 0
      %p262 = por %p260, %p261
      %p263 = scmp.ne.s32.totalorder %s252, %s255
      %p264 = scmp.eq.s32.totalorder %s27, 1
      %p265 = por %p263, %p264
      %p266 = scmp.ne.s32.totalorder %s255, %s256
      %p267 = scmp.eq.s32.totalorder %s27, 0
      %p268 = por %p266, %p267
      %p269 = scmp.ne.s32.totalorder %s255, %s256
      %p270 = scmp.eq.s32.totalorder %s28, 1
      %p271 = por %p269, %p270
      %p273 = scmp.ne.s32.totalorder %s256, %s272
      %p274 = scmp.eq.s32.totalorder %s28, 0
      %p275 = por %p273, %p274
      %s276 = ssub.s32 %s30, %s37
      %p277 = scmp.eq.s32.totalorder %s276, 0
      %s279 = sadd.s32 %s278, 1
      %s280 = scalar_select %p277, %s278, %s279
      %p283 = pneg %p277
      %p284 = scmp.eq.s32.totalorder %s22, 1
      %p285 = por %p283, %p284
      %p286 = scmp.ne.s32.totalorder %s278, %s281
      %p287 = scmp.eq.s32.totalorder %s22, 0
      %p288 = por %p286, %p287
      %p289 = scmp.ne.s32.totalorder %s278, %s281
      %p290 = scmp.eq.s32.totalorder %s27, 1
      %p291 = por %p289, %p290
      %p292 = scmp.ne.s32.totalorder %s281, %s282
      %p293 = scmp.eq.s32.totalorder %s27, 0
      %p294 = por %p292, %p293
      %p295 = scmp.ne.s32.totalorder %s281, %s282
      %p296 = scmp.eq.s32.totalorder %s28, 1
      %p297 = por %p295, %p296
      %p299 = scmp.ne.s32.totalorder %s282, %s298
      %p300 = scmp.eq.s32.totalorder %s28, 0
      %p301 = por %p299, %p300
      %s302 = ssub.s32 %s30, %s37
      %p303 = scmp.eq.s32.totalorder %s302, 0
      %s305 = sadd.s32 %s304, 1
      %s306 = scalar_select %p303, %s304, %s305
      %p309 = pneg %p303
      %p310 = scmp.eq.s32.totalorder %s22, 1
      %p311 = por %p309, %p310
      %p312 = scmp.ne.s32.totalorder %s304, %s307
      %p313 = scmp.eq.s32.totalorder %s22, 0
      %p314 = por %p312, %p313
      %p315 = scmp.ne.s32.totalorder %s304, %s307
      %p316 = scmp.eq.s32.totalorder %s27, 1
      %p317 = por %p315, %p316
      %p318 = scmp.ne.s32.totalorder %s307, %s308
      %p319 = scmp.eq.s32.totalorder %s27, 0
      %p320 = por %p318, %p319
      %p321 = scmp.ne.s32.totalorder %s307, %s308
      %p322 = scmp.eq.s32.totalorder %s28, 1
      %p323 = por %p321, %p322
      %p325 = scmp.ne.s32.totalorder %s308, %s324
      %p326 = scmp.eq.s32.totalorder %s28, 0
      %p327 = por %p325, %p326
      %s328 = ssub.s32 %s30, %s37
      %p329 = scmp.eq.s32.totalorder %s328, 0
      %s331 = sadd.s32 %s330, 1
      %s332 = scalar_select %p329, %s330, %s331
      %p335 = pneg %p329
      %p336 = scmp.eq.s32.totalorder %s22, 1
      %p337 = por %p335, %p336
      %p338 = scmp.ne.s32.totalorder %s330, %s333
      %p339 = scmp.eq.s32.totalorder %s22, 0
      %p340 = por %p338, %p339
      %p341 = scmp.ne.s32.totalorder %s330, %s333
      %p342 = scmp.eq.s32.totalorder %s27, 1
      %p343 = por %p341, %p342
      %p344 = scmp.ne.s32.totalorder %s333, %s334
      %p345 = scmp.eq.s32.totalorder %s27, 0
      %p346 = por %p344, %p345
      %p347 = scmp.ne.s32.totalorder %s333, %s334
      %p348 = scmp.eq.s32.totalorder %s28, 1
      %p349 = por %p347, %p348
      %p351 = scmp.ne.s32.totalorder %s334, %s350
      %p352 = scmp.eq.s32.totalorder %s28, 0
      %p353 = por %p351, %p352
      %s354 = ssub.s32 %s30, %s37
      %p355 = scmp.eq.s32.totalorder %s354, 0
      %s357 = sadd.s32 %s356, 1
      %s358 = scalar_select %p355, %s356, %s357
      %p361 = pneg %p355
      %p362 = scmp.eq.s32.totalorder %s22, 1
      %p363 = por %p361, %p362
      %p364 = scmp.ne.s32.totalorder %s356, %s359
      %p365 = scmp.eq.s32.totalorder %s22, 0
      %p366 = por %p364, %p365
      %p367 = scmp.ne.s32.totalorder %s356, %s359
      %p368 = scmp.eq.s32.totalorder %s27, 1
      %p369 = por %p367, %p368
      %p370 = scmp.ne.s32.totalorder %s359, %s360
      %p371 = scmp.eq.s32.totalorder %s27, 0
      %p372 = por %p370, %p371
      %p373 = scmp.ne.s32.totalorder %s359, %s360
      %p374 = scmp.eq.s32.totalorder %s28, 1
      %p375 = por %p373, %p374
      %p377 = scmp.ne.s32.totalorder %s360, %s376
      %p378 = scmp.eq.s32.totalorder %s28, 0
      %p379 = por %p377, %p378
      %s380 = ssub.s32 %s30, %s37
      %p381 = scmp.eq.s32.totalorder %s380, 0
      %s383 = sadd.s32 %s382, 1
      %s384 = scalar_select %p381, %s382, %s383
      %p387 = pneg %p381
      %p388 = scmp.eq.s32.totalorder %s22, 1
      %p389 = por %p387, %p388
      %p390 = scmp.ne.s32.totalorder %s382, %s385
      %p391 = scmp.eq.s32.totalorder %s22, 0
      %p392 = por %p390, %p391
      %p393 = scmp.ne.s32.totalorder %s382, %s385
      %p394 = scmp.eq.s32.totalorder %s27, 1
      %p395 = por %p393, %p394
      %p396 = scmp.ne.s32.totalorder %s385, %s386
      %p397 = scmp.eq.s32.totalorder %s27, 0
      %p398 = por %p396, %p397
      %p399 = scmp.ne.s32.totalorder %s385, %s386
      %p400 = scmp.eq.s32.totalorder %s28, 1
      %p401 = por %p399, %p400
      %p403 = scmp.ne.s32.totalorder %s386, %s402
      %p404 = scmp.eq.s32.totalorder %s28, 0
      %p405 = por %p403, %p404
      %s406 = ssub.s32 %s29, %s41
      %p407 = scmp.eq.s32.totalorder %s406, 0
      %s409 = sadd.s32 %s408, 1
      %s410 = scalar_select %p407, %s408, %s409
      %p413 = pneg %p407
      %p414 = scmp.eq.s32.totalorder %s22, 1
      %p415 = por %p413, %p414
      %p416 = scmp.ne.s32.totalorder %s408, %s411
      %p417 = scmp.eq.s32.totalorder %s22, 0
      %p418 = por %p416, %p417
      %p419 = scmp.ne.s32.totalorder %s408, %s411
      %p420 = scmp.eq.s32.totalorder %s27, 1
      %p421 = por %p419, %p420
      %p422 = scmp.ne.s32.totalorder %s411, %s412
      %p423 = scmp.eq.s32.totalorder %s27, 0
      %p424 = por %p422, %p423
      %p425 = scmp.ne.s32.totalorder %s411, %s412
      %p426 = scmp.eq.s32.totalorder %s28, 1
      %p427 = por %p425, %p426
      %p429 = scmp.ne.s32.totalorder %s412, %s428
      %p430 = scmp.eq.s32.totalorder %s28, 0
      %p431 = por %p429, %p430
      %p432 = scmp.le.s32.totalorder 1, %s22
      %p433 = scmp.lt.s32.totalorder %s22, 3
      %p434 = pnand %p432, %p433
      %p435 = pneg %p434
      // Predicated region
      $region9: #{_lambda_.1} parent=5 // pred_check
        _
      $region10: #{_lambda_.1} parent=5 // pred_check_branch
        %437 = sbr.rel (%p434) target = $region12
      $region11: #{_lambda_.1} parent=5 // pred_region
        %s438 = ssub.s32 %s22, 1
        // Predicated region
        $region13: #{_lambda_.1} parent=11 // pred_check
          %p439 = pneg %p60
        $region14: #{_lambda_.1} parent=11 // pred_check_branch
          %441 = sbr.rel (%p439) target = $region16
        $region15: #{_lambda_.1} parent=11 // pred_region
          %s442 = smul.u32 4, %s31
          %s444 = ssub.s32 512, 512
          %445 = vsyncadd [#allocation3], %s444
          %s446 = smul.addr %s442, 128
          %s447 = scalar_lea.hbm %s0, %s446
          %s448 = sshll.u32 [#allocation2], 4
          %s449 = int_to_ptr.vmem [resolvable:$true] %s448
          %454 = dma.hbm_to_vmem [thread:$0]  %s447, 512, %s449, [#allocation3], 128, 128, 8
        $region16: #{_lambda_.1} parent=11 // pred_fallthru
          _
        // Predicated region
        $region17: #{_lambda_.1} parent=11 // pred_check
          %p455 = pneg %p86
        $region18: #{_lambda_.1} parent=11 // pred_check_branch
          %457 = sbr.rel (%p455) target = $region20
        $region19: #{_lambda_.1} parent=11 // pred_region
          %s458 = smul.u32 4, %s31
          %p459 = scmp.lt.s32.totalorder %s458, 3
          %s460 = scalar_select %p459, %s458, 3
          %s461 = scalar_lea.vmem %s1, %s460
          %s462 = smul.u32 4, %s31
        $region20: #{_lambda_.1} parent=11 // pred_fallthru
          _
      $region12: #{_lambda_.1} parent=5 // pred_fallthru
        _
      %p463 = scmp.lt.s32.totalorder %s22, 2
      // Predicated region
      $region21: #{_lambda_.1} parent=5 // pred_check
        %p464 = pneg %p463
      $region22: #{_lambda_.1} parent=5 // pred_check_branch
        %466 = sbr.rel (%p464) target = $region24
      $region23: #{_lambda_.1} parent=5 // pred_region
        // Predicated region
        $region25: #{_lambda_.1} parent=23 // pred_check
          %p467 = pneg %p106
        $region26: #{_lambda_.1} parent=23 // pred_check_branch
          %469 = sbr.rel (%p467) target = $region28
        $region27: #{_lambda_.1} parent=23 // pred_region
          %p470 = scmp.lt.s32.totalorder %s30, 1
          %s471 = scalar_select %p470, %s30, 1
          %s472 = smul.addr %s471, 4
          %s473 = smul.addr %s472, 4
          %s474 = scalar_lea.vmem %s2, %s473
        $region28: #{_lambda_.1} parent=23 // pred_fallthru
          _
        // Predicated region
        $region29: #{_lambda_.1} parent=23 // pred_check
          %p475 = pneg %p132
        $region30: #{_lambda_.1} parent=23 // pred_check_branch
          %477 = sbr.rel (%p475) target = $region32
        $region31: #{_lambda_.1} parent=23 // pred_region
          %p478 = scmp.lt.s32.totalorder %s30, 1
          %s479 = scalar_select %p478, %s30, 1
          %s480 = scalar_lea.vmem %s3, %s479
        $region32: #{_lambda_.1} parent=23 // pred_fallthru
          _
        // Predicated region
        $region33: #{_lambda_.1} parent=23 // pred_check
          %p481 = pneg %p158
        $region34: #{_lambda_.1} parent=23 // pred_check_branch
          %483 = sbr.rel (%p481) target = $region36
        $region35: #{_lambda_.1} parent=23 // pred_region
          %p484 = scmp.lt.s32.totalorder %s30, 1
          %s485 = scalar_select %p484, %s30, 1
          %s486 = smul.addr %s485, 4
          %s487 = smul.addr %s486, 4
          %s488 = scalar_lea.vmem %s4, %s487
        $region36: #{_lambda_.1} parent=23 // pred_fallthru
          _
        // Predicated region
        $region37: #{_lambda_.1} parent=23 // pred_check
          %p489 = pneg %p184
        $region38: #{_lambda_.1} parent=23 // pred_check_branch
          %491 = sbr.rel (%p489) target = $region40
        $region39: #{_lambda_.1} parent=23 // pred_region
          %p492 = scmp.lt.s32.totalorder %s30, 1
          %s493 = scalar_select %p492, %s30, 1
          %s494 = scalar_lea.vmem %s5, %s493
        $region40: #{_lambda_.1} parent=23 // pred_fallthru
          _
        // Predicated region
        $region41: #{_lambda_.1} parent=23 // pred_check
          %p495 = pneg %p210
        $region42: #{_lambda_.1} parent=23 // pred_check_branch
          %497 = sbr.rel (%p495) target = $region44
        $region43: #{_lambda_.1} parent=23 // pred_region
          %p498 = scmp.lt.s32.totalorder %s30, 1
          %s499 = scalar_select %p498, %s30, 1
          %s500 = scalar_lea.vmem %s6, %s499
        $region44: #{_lambda_.1} parent=23 // pred_fallthru
          _
        // Predicated region
        $region45: #{_lambda_.1} parent=23 // pred_check
          %p501 = pneg %p236
        $region46: #{_lambda_.1} parent=23 // pred_check_branch
          %503 = sbr.rel (%p501) target = $region48
        $region47: #{_lambda_.1} parent=23 // pred_region
          %p504 = scmp.lt.s32.totalorder %s30, 1
          %s505 = scalar_select %p504, %s30, 1
          %s506 = scalar_lea.vmem %s7, %s505
        $region48: #{_lambda_.1} parent=23 // pred_fallthru
          _
        // Predicated region
        $region49: #{_lambda_.1} parent=23 // pred_check
          %p507 = pneg %p262
        $region50: #{_lambda_.1} parent=23 // pred_check_branch
          %509 = sbr.rel (%p507) target = $region52
        $region51: #{_lambda_.1} parent=23 // pred_region
          %p510 = scmp.lt.s32.totalorder %s30, 1
          %s511 = scalar_select %p510, %s30, 1
          %s512 = smul.addr %s511, 4
          %s513 = smul.addr %s512, 4
          %s514 = scalar_lea.vmem %s8, %s513
        $region52: #{_lambda_.1} parent=23 // pred_fallthru
          _
        // Predicated region
        $region53: #{_lambda_.1} parent=23 // pred_check
          %p515 = pneg %p288
        $region54: #{_lambda_.1} parent=23 // pred_check_branch
          %517 = sbr.rel (%p515) target = $region56
        $region55: #{_lambda_.1} parent=23 // pred_region
          %p518 = scmp.lt.s32.totalorder %s30, 1
          %s519 = scalar_select %p518, %s30, 1
          %s520 = scalar_lea.vmem %s9, %s519
        $region56: #{_lambda_.1} parent=23 // pred_fallthru
          _
        // Predicated region
        $region57: #{_lambda_.1} parent=23 // pred_check
          %p521 = pneg %p314
        $region58: #{_lambda_.1} parent=23 // pred_check_branch
          %523 = sbr.rel (%p521) target = $region60
        $region59: #{_lambda_.1} parent=23 // pred_region
          %p524 = scmp.lt.s32.totalorder %s30, 1
          %s525 = scalar_select %p524, %s30, 1
          %s526 = smul.addr %s525, 8
          %s527 = smul.addr %s526, 4
          %s528 = scalar_lea.vmem %s10, %s527
        $region60: #{_lambda_.1} parent=23 // pred_fallthru
          _
        // Predicated region
        $region61: #{_lambda_.1} parent=23 // pred_check
          %p529 = pneg %p340
        $region62: #{_lambda_.1} parent=23 // pred_check_branch
          %531 = sbr.rel (%p529) target = $region64
        $region63: #{_lambda_.1} parent=23 // pred_region
          %p532 = scmp.lt.s32.totalorder %s30, 1
          %s533 = scalar_select %p532, %s30, 1
          %s534 = scalar_lea.vmem %s11, %s533
        $region64: #{_lambda_.1} parent=23 // pred_fallthru
          _
        // Predicated region
        $region65: #{_lambda_.1} parent=23 // pred_check
          %p535 = pneg %p366
        $region66: #{_lambda_.1} parent=23 // pred_check_branch
          %537 = sbr.rel (%p535) target = $region68
        $region67: #{_lambda_.1} parent=23 // pred_region
          %p538 = scmp.lt.s32.totalorder %s30, 1
          %s539 = scalar_select %p538, %s30, 1
          %s540 = scalar_lea.vmem %s12, %s539
        $region68: #{_lambda_.1} parent=23 // pred_fallthru
          _
        // Predicated region
        $region69: #{_lambda_.1} parent=23 // pred_check
          %p541 = pneg %p392
        $region70: #{_lambda_.1} parent=23 // pred_check_branch
          %543 = sbr.rel (%p541) target = $region72
        $region71: #{_lambda_.1} parent=23 // pred_region
          %p544 = scmp.lt.s32.totalorder %s30, 1
          %s545 = scalar_select %p544, %s30, 1
          %s546 = scalar_lea.vmem %s13, %s545
        $region72: #{_lambda_.1} parent=23 // pred_fallthru
          _
      $region24: #{_lambda_.1} parent=5 // pred_fallthru
        _
      %p547 = scmp.le.s32.totalorder 1, %s22
      %p548 = scmp.lt.s32.totalorder %s22, 3
      %p549 = pnand %p547, %p548
      %p550 = pneg %p549
      // Predicated region
      $region73: #{_lambda_.1} parent=5 // pred_check
        _
      $region74: #{_lambda_.1} parent=5 // pred_check_branch
        %552 = sbr.rel (%p549) target = $region76
      $region75: #{_lambda_.1} parent=5 // pred_region
        %s553 = ssub.s32 %s22, 1
        // Predicated region
        $region77: #{_lambda_.1} parent=75 // pred_check
          %p554 = pneg %p60
        $region78: #{_lambda_.1} parent=75 // pred_check_branch
          %556 = sbr.rel (%p554) target = $region80
        $region79: #{_lambda_.1} parent=75 // pred_region
          %557 = dma.done [#allocation3], 512
        $region80: #{_lambda_.1} parent=75 // pred_fallthru
          _
        %p558 = pneg %p60
        %p559 = pneg %p57
        %s560 = smul.u32 4, %s31
        %p561 = scmp.lt.s32.totalorder %s560, 3
        %s562 = scalar_select %p561, %s560, 3
        %s563 = scalar_lea.vmem %s1, %s562
        %p564 = pneg %p86
        %p565 = pneg %p83
        %p566 = scmp.lt.s32.totalorder %s32, 1
        %s567 = scalar_select %p566, %s32, 1
        %s568 = smul.addr %s567, 4
        %s569 = smul.addr %s568, 4
        %s570 = scalar_lea.vmem %s2, %s569
        %p571 = pneg %p112
        %p572 = pneg %p109
        %p573 = scmp.lt.s32.totalorder %s32, 1
        %s574 = scalar_select %p573, %s32, 1
        %s575 = scalar_lea.vmem %s3, %s574
        %p576 = pneg %p138
        %p577 = pneg %p135
        %p578 = scmp.lt.s32.totalorder %s32, 1
        %s579 = scalar_select %p578, %s32, 1
        %s580 = smul.addr %s579, 4
        %s581 = smul.addr %s580, 4
        %s582 = scalar_lea.vmem %s4, %s581
        %p583 = pneg %p164
        %p584 = pneg %p161
        %p585 = scmp.lt.s32.totalorder %s32, 1
        %s586 = scalar_select %p585, %s32, 1
        %s587 = scalar_lea.vmem %s5, %s586
        %p588 = pneg %p190
        %p589 = pneg %p187
        %p590 = scmp.lt.s32.totalorder %s32, 1
        %s591 = scalar_select %p590, %s32, 1
        %s592 = scalar_lea.vmem %s6, %s591
        %p593 = pneg %p216
        %p594 = pneg %p213
        %p595 = scmp.lt.s32.totalorder %s32, 1
        %s596 = scalar_select %p595, %s32, 1
        %s597 = scalar_lea.vmem %s7, %s596
        %p598 = pneg %p242
        %p599 = pneg %p239
        %p600 = scmp.lt.s32.totalorder %s32, 1
        %s601 = scalar_select %p600, %s32, 1
        %s602 = smul.addr %s601, 4
        %s603 = smul.addr %s602, 4
        %s604 = scalar_lea.vmem %s8, %s603
        %p605 = pneg %p268
        %p606 = pneg %p265
        %p607 = scmp.lt.s32.totalorder %s32, 1
        %s608 = scalar_select %p607, %s32, 1
        %s609 = scalar_lea.vmem %s9, %s608
        %p610 = pneg %p294
        %p611 = pneg %p291
        %p612 = scmp.lt.s32.totalorder %s32, 1
        %s613 = scalar_select %p612, %s32, 1
        %s614 = smul.addr %s613, 8
        %s615 = smul.addr %s614, 4
        %s616 = scalar_lea.vmem %s10, %s615
        %p617 = pneg %p320
        %p618 = pneg %p317
        %p619 = scmp.lt.s32.totalorder %s32, 1
        %s620 = scalar_select %p619, %s32, 1
        %s621 = scalar_lea.vmem %s11, %s620
        %p622 = pneg %p346
        %p623 = pneg %p343
        %p624 = scmp.lt.s32.totalorder %s32, 1
        %s625 = scalar_select %p624, %s32, 1
        %s626 = scalar_lea.vmem %s12, %s625
        %p627 = pneg %p372
        %p628 = pneg %p369
        %p629 = scmp.lt.s32.totalorder %s32, 1
        %s630 = scalar_select %p629, %s32, 1
        %s631 = scalar_lea.vmem %s13, %s630
        %p632 = pneg %p398
        %p633 = pneg %p395
        %p634 = pneg %p424
        %p635 = pneg %p421
        %s636 = smul.u32 4, %s31
        %s637 = smul.u32 4, %s31
        %p638 = scmp.lt.s32.totalorder %s637, 3
        %s639 = scalar_select %p638, %s637, 3
        %s640 = scalar_lea.vmem %s1, %s639
        %s641 = smul.u32 4, %s31
        %p642 = scmp.lt.s32.totalorder %s32, 1
        %s643 = scalar_select %p642, %s32, 1
        %s644 = smul.addr %s643, 4
        %s645 = smul.addr %s644, 4
        %s646 = scalar_lea.vmem %s2, %s645
        %p647 = scmp.lt.s32.totalorder %s32, 1
        %s648 = scalar_select %p647, %s32, 1
        %s649 = scalar_lea.vmem %s3, %s648
        %p650 = scmp.lt.s32.totalorder %s32, 1
        %s651 = scalar_select %p650, %s32, 1
        %s652 = smul.addr %s651, 4
        %s653 = smul.addr %s652, 4
        %s654 = scalar_lea.vmem %s4, %s653
        %p655 = scmp.lt.s32.totalorder %s32, 1
        %s656 = scalar_select %p655, %s32, 1
        %s657 = scalar_lea.vmem %s5, %s656
        %p658 = scmp.lt.s32.totalorder %s32, 1
        %s659 = scalar_select %p658, %s32, 1
        %s660 = scalar_lea.vmem %s6, %s659
        %p661 = scmp.lt.s32.totalorder %s32, 1
        %s662 = scalar_select %p661, %s32, 1
        %s663 = scalar_lea.vmem %s7, %s662
        %p664 = scmp.lt.s32.totalorder %s32, 1
        %s665 = scalar_select %p664, %s32, 1
        %s666 = smul.addr %s665, 4
        %s667 = smul.addr %s666, 4
        %s668 = scalar_lea.vmem %s8, %s667
        %p669 = scmp.lt.s32.totalorder %s32, 1
        %s670 = scalar_select %p669, %s32, 1
        %s671 = scalar_lea.vmem %s9, %s670
        %p672 = scmp.lt.s32.totalorder %s32, 1
        %s673 = scalar_select %p672, %s32, 1
        %s674 = smul.addr %s673, 8
        %s675 = smul.addr %s674, 4
        %s676 = scalar_lea.vmem %s10, %s675
        %p677 = scmp.lt.s32.totalorder %s32, 1
        %s678 = scalar_select %p677, %s32, 1
        %s679 = scalar_lea.vmem %s11, %s678
        %p680 = scmp.lt.s32.totalorder %s32, 1
        %s681 = scalar_select %p680, %s32, 1
        %s682 = scalar_lea.vmem %s12, %s681
        %p683 = scmp.lt.s32.totalorder %s32, 1
        %s684 = scalar_select %p683, %s32, 1
        %s685 = scalar_lea.vmem %s13, %s684
        %s686 = smul.u32 4, %s31
        %p688 = scmp.eq.s32.totalorder %s32, 0
        // Predicated region
        $region81: #{_lambda_.1} parent=75 // pred_check
          %p689 = pneg %p688
        $region82: #{_lambda_.1} parent=75 // pred_check_branch
          %691 = sbr.rel (%p689) target = $region84
        $region83: #{_lambda_.1} parent=75 // pred_region
          %v692 = vld [vmem:[#allocation2] sm:$0xff]
          %v693 = vld [vmem:[#allocation2 + $0x8] sm:$0xff]
          %v694 = vld [vmem:[#allocation2 + $0x10] sm:$0xff]
          %v695 = vld [vmem:[#allocation2 + $0x18] sm:$0xff]
          %vm696 = vcmask 261120
          %697 = vst.msk [vmem:[#allocation5] sm:$0xff] %vm696, %v692
          %698 = vst.msk [vmem:[#allocation5 + $0x8] sm:$0xff] %vm696, %v693
          %699 = vst.msk [vmem:[#allocation5 + $0x10] sm:$0xff] %vm696, %v694
          %700 = vst.msk [vmem:[#allocation5 + $0x18] sm:$0xff] %vm696, %v695
        $region84: #{_lambda_.1} parent=75 // pred_fallthru
          _
        %v701 = vld [vmem:[#allocation5] sm:$0xff]
        %v702 = vld [vmem:[#allocation5 + $0x8] sm:$0xff]
        %v703 = vld [vmem:[#allocation5 + $0x10] sm:$0xff]
        %v704 = vld [vmem:[#allocation5 + $0x18] sm:$0xff]
        %v705 = vpack.c.bf16 %v702, %v701
        %v706 = vpack.c.bf16 %v704, %v703
        %v707 = vld [vmem:[%s646] sm:$0xf]
        %v708 = vld [vmem:[%s646 + $0x4] sm:$0xf]
        %v709 = vld [vmem:[%s646 + $0x8] sm:$0xf]
        %v710 = vld [vmem:[%s646 + $0xc] sm:$0xf]
        %v711 = vld [vmem:[%s649] sm:$0x1]
        %v713 = vlaneseq
        %v714 = vshrl.u32 %v713, 7
        %v715 = vsub.s32 0, %v714
        %v716 = vrot.slane %v711, %v715
        %v722 = vunpack.c.l.b16 %v707
        %v723 = vunpack.c.l.b16 %v708
        %v724 = vunpack.c.l.b16 %v709
        %v725 = vunpack.c.l.b16 %v710
        %v726 = vpack.c.b16 %v723, %v722
        %v727 = vpack.c.b16 %v725, %v724
        %vm730 = vcmask 261120
        %v732 = vsel %vm730, %v705, 0
        %v735 = vsel %vm730, %v706, 0
        %737 = vmatprep.subr.bf16.mxu0 0
        %738 = vmatpush1.bf16.msra.mxu0 %v726
        %739 = vmatprep.subr.bf16.mxu0 0
        %740 = vmatpush1.bf16.msra.mxu0 %v727
        %741 = vmatprep.subr.bf16.mxu0 0
        %742 = vmatpush1.bf16.msra.mxu0 0
        %743 = vmatprep.subr.bf16.mxu0 0
        %744 = vmatpush1.bf16.msra.mxu0 0
        %745 = vmatprep.subr.bf16.mxu0 0
        %746 = vmatpush1.bf16.msra.mxu0 0
        %747 = vmatprep.subr.bf16.mxu0 0
        %748 = vmatpush1.bf16.msra.mxu0 0
        %749 = vmatprep.subr.bf16.mxu0 0
        %750 = vmatpush1.bf16.msra.mxu0 0
        %751 = vmatprep.subr.bf16.mxu0 0
        %752 = vmatpush1.bf16.msra.mxu0 0
        %753 = vmatprep.subr.bf16.mxu0 0
        %754 = vmatpush1.bf16.msra.mxu0 0
        %755 = vmatprep.subr.bf16.mxu0 0
        %756 = vmatpush1.bf16.msra.mxu0 0
        %757 = vmatprep.subr.bf16.mxu0 0
        %758 = vmatpush1.bf16.msra.mxu0 0
        %759 = vmatprep.subr.bf16.mxu0 0
        %760 = vmatpush1.bf16.msra.mxu0 0
        %761 = vmatprep.subr.bf16.mxu0 0
        %762 = vmatpush1.bf16.msra.mxu0 0
        %763 = vmatprep.subr.bf16.mxu0 0
        %764 = vmatpush1.bf16.msra.mxu0 0
        %765 = vmatprep.subr.bf16.mxu0 0
        %766 = vmatpush1.bf16.msra.mxu0 0
        %767 = vmatprep.subr.bf16.mxu0 0
        %768 = vmatpush1.bf16.msra.mxu0 0
        %769 = vmatprep.mubr.bf16.mxu0 0
        %770 = vmatmul.mubr.bf16.gmra.mrb[0].mxu0 %v732
        %v771 = vpop.f32.mrb[0].mxu0
        %v772 = vadd.f32 %v716, %v771
        %v773 = vpop.f32.mrb[0].mxu0
        %v774 = vpop.f32.mrb[0].mxu0
        %v775 = vadd.f32 %v716, %v774
        %v776 = vpop.f32.mrb[0].mxu0
        %777 = vmatprep.mubr.bf16.mxu0 0
        %778 = vmatmul.mubr.bf16.gmra.mrb[0].mxu0 %v735
        %v779 = vpop.f32.mrb[0].mxu0
        %v780 = vadd.f32 %v716, %v779
        %v781 = vpop.f32.mrb[0].mxu0
        %v782 = vpop.f32.mrb[0].mxu0
        %v783 = vadd.f32 %v716, %v782
        %v784 = vpop.f32.mrb[0].mxu0
        %785 = vdwg.mxu0
        %v786 = vpack.c.bf16 %v775, %v772
        %v787 = vpack.c.bf16 %v783, %v780
        %790 = vrot.lane.b32.xlu0 %v786, 120
        %v791 = vpop.permute.xlu0 %790
        %792 = vrot.lane.b32.xlu0 %v787, 120
        %v793 = vpop.permute.xlu0 %792
        %794 = vrot.lane.b32.xlu0 %v786, 112
        %v795 = vpop.permute.xlu0 %794
        %796 = vrot.lane.b32.xlu0 %v787, 112
        %v797 = vpop.permute.xlu0 %796
        %798 = vrot.lane.b32.xlu0 %v786, 104
        %v799 = vpop.permute.xlu0 %798
        %800 = vrot.lane.b32.xlu0 %v787, 104
        %v801 = vpop.permute.xlu0 %800
        %v804 = vpack.i.b16 %v791, %v786
        %v806 = vshrl.u32 %v786, 16
        %v807 = vshrl.u32 %v791, 16
        %v808 = vpack.i.b16 %v807, %v806
        %v812 = vpack.i.b16 %v799, %v795
        %v814 = vshrl.u32 %v795, 16
        %v815 = vshrl.u32 %v799, 16
        %v816 = vpack.i.b16 %v815, %v814
        %v819 = vpack.i.b16 0, 0
        %v821 = vshrl.u32 0, 16
        %v822 = vpack.i.b16 %v821, %v821
        %v826 = vpack.i.b16 %v793, %v787
        %v828 = vshrl.u32 %v787, 16
        %v829 = vshrl.u32 %v793, 16
        %v830 = vpack.i.b16 %v829, %v828
        %v834 = vpack.i.b16 %v801, %v797
        %v836 = vshrl.u32 %v797, 16
        %v837 = vshrl.u32 %v801, 16
        %v838 = vpack.i.b16 %v837, %v836
        %v840 = vcombine.high %v804, %v819
        %v842 = vunpack.c.l.s4 1983009808
        %v843 = vunpack.c.0.s8 %v842
        %v844 = vlaneseq
        %v845 = vshrl.u32 %v844, 7
        %v846 = vsub.s32 %v843, %v845
        %v847 = vrot.slane %v804, %v846
        %v849 = vunpack.c.l.s4 1983009808
        %v850 = vunpack.c.0.s8 %v849
        %v851 = vlaneseq
        %v852 = vshrl.u32 %v851, 7
        %v853 = vsub.s32 %v850, %v852
        %v854 = vrot.slane %v840, %v853
        %v855 = vcombine.high %v812, %v819
        %v857 = vunpack.c.l.s4 1983009808
        %v858 = vunpack.c.0.s8 %v857
        %v859 = vlaneseq
        %v860 = vshrl.u32 %v859, 7
        %v861 = vsub.s32 %v858, %v860
        %v862 = vrot.slane %v812, %v861
        %v864 = vunpack.c.l.s4 1983009808
        %v865 = vunpack.c.0.s8 %v864
        %v866 = vlaneseq
        %v867 = vshrl.u32 %v866, 7
        %v868 = vsub.s32 %v865, %v867
        %v869 = vrot.slane %v855, %v868
        %v870 = vcombine.low %v847, %v862
        %v871 = vcombine.high %v847, %v862
        %v873 = vunpack.c.l.s4 1934713408
        %v874 = vunpack.c.0.s8 %v873
        %v875 = vlaneseq
        %v876 = vshrl.u32 %v875, 7
        %v877 = vsub.s32 %v874, %v876
        %v878 = vrot.slane %v870, %v877
        %v880 = vunpack.c.l.s4 1934713408
        %v881 = vunpack.c.0.s8 %v880
        %v882 = vlaneseq
        %v883 = vshrl.u32 %v882, 7
        %v884 = vsub.s32 %v881, %v883
        %v885 = vrot.slane %v871, %v884
        %v886 = vcombine.low %v854, %v869
        %v887 = vcombine.high %v854, %v869
        %v889 = vunpack.c.l.s4 1934713408
        %v890 = vunpack.c.0.s8 %v889
        %v891 = vlaneseq
        %v892 = vshrl.u32 %v891, 7
        %v893 = vsub.s32 %v890, %v892
        %v894 = vrot.slane %v886, %v893
        %v896 = vunpack.c.l.s4 1934713408
        %v897 = vunpack.c.0.s8 %v896
        %v898 = vlaneseq
        %v899 = vshrl.u32 %v898, 7
        %v900 = vsub.s32 %v897, %v899
        %v901 = vrot.slane %v887, %v900
        %v902 = vcombine.high %v878, 0
        %v903 = vcombine.high %v885, 0
        %v904 = vcombine.high %v894, 0
        %v905 = vcombine.high %v901, 0
        %v906 = vcombine.high %v808, %v822
        %v908 = vunpack.c.l.s4 1983009808
        %v909 = vunpack.c.0.s8 %v908
        %v910 = vlaneseq
        %v911 = vshrl.u32 %v910, 7
        %v912 = vsub.s32 %v909, %v911
        %v913 = vrot.slane %v808, %v912
        %v915 = vunpack.c.l.s4 1983009808
        %v916 = vunpack.c.0.s8 %v915
        %v917 = vlaneseq
        %v918 = vshrl.u32 %v917, 7
        %v919 = vsub.s32 %v916, %v918
        %v920 = vrot.slane %v906, %v919
        %v921 = vcombine.high %v816, %v822
        %v923 = vunpack.c.l.s4 1983009808
        %v924 = vunpack.c.0.s8 %v923
        %v925 = vlaneseq
        %v926 = vshrl.u32 %v925, 7
        %v927 = vsub.s32 %v924, %v926
        %v928 = vrot.slane %v816, %v927
        %v930 = vunpack.c.l.s4 1983009808
        %v931 = vunpack.c.0.s8 %v930
        %v932 = vlaneseq
        %v933 = vshrl.u32 %v932, 7
        %v934 = vsub.s32 %v931, %v933
        %v935 = vrot.slane %v921, %v934
        %v936 = vcombine.low %v913, %v928
        %v937 = vcombine.high %v913, %v928
        %v939 = vunpack.c.l.s4 1934713408
        %v940 = vunpack.c.0.s8 %v939
        %v941 = vlaneseq
        %v942 = vshrl.u32 %v941, 7
        %v943 = vsub.s32 %v940, %v942
        %v944 = vrot.slane %v936, %v943
        %v946 = vunpack.c.l.s4 1934713408
        %v947 = vunpack.c.0.s8 %v946
        %v948 = vlaneseq
        %v949 = vshrl.u32 %v948, 7
        %v950 = vsub.s32 %v947, %v949
        %v951 = vrot.slane %v937, %v950
        %v952 = vcombine.low %v920, %v935
        %v953 = vcombine.high %v920, %v935
        %v955 = vunpack.c.l.s4 1934713408
        %v956 = vunpack.c.0.s8 %v955
        %v957 = vlaneseq
        %v958 = vshrl.u32 %v957, 7
        %v959 = vsub.s32 %v956, %v958
        %v960 = vrot.slane %v952, %v959
        %v962 = vunpack.c.l.s4 1934713408
        %v963 = vunpack.c.0.s8 %v962
        %v964 = vlaneseq
        %v965 = vshrl.u32 %v964, 7
        %v966 = vsub.s32 %v963, %v965
        %v967 = vrot.slane %v953, %v966
        %v968 = vcombine.high %v944, 0
        %v969 = vcombine.high %v951, 0
        %v970 = vcombine.high %v960, 0
        %v971 = vcombine.high %v967, 0
        %v972 = vcombine.high %v826, %v819
        %v974 = vunpack.c.l.s4 1983009808
        %v975 = vunpack.c.0.s8 %v974
        %v976 = vlaneseq
        %v977 = vshrl.u32 %v976, 7
        %v978 = vsub.s32 %v975, %v977
        %v979 = vrot.slane %v826, %v978
        %v981 = vunpack.c.l.s4 1983009808
        %v982 = vunpack.c.0.s8 %v981
        %v983 = vlaneseq
        %v984 = vshrl.u32 %v983, 7
        %v985 = vsub.s32 %v982, %v984
        %v986 = vrot.slane %v972, %v985
        %v987 = vcombine.high %v834, %v819
        %v989 = vunpack.c.l.s4 1983009808
        %v990 = vunpack.c.0.s8 %v989
        %v991 = vlaneseq
        %v992 = vshrl.u32 %v991, 7
        %v993 = vsub.s32 %v990, %v992
        %v994 = vrot.slane %v834, %v993
        %v996 = vunpack.c.l.s4 1983009808
        %v997 = vunpack.c.0.s8 %v996
        %v998 = vlaneseq
        %v999 = vshrl.u32 %v998, 7
        %v1000 = vsub.s32 %v997, %v999
        %v1001 = vrot.slane %v987, %v1000
        %v1002 = vcombine.low %v979, %v994
        %v1003 = vcombine.high %v979, %v994
        %v1005 = vunpack.c.l.s4 1934713408
        %v1006 = vunpack.c.0.s8 %v1005
        %v1007 = vlaneseq
        %v1008 = vshrl.u32 %v1007, 7
        %v1009 = vsub.s32 %v1006, %v1008
        %v1010 = vrot.slane %v1002, %v1009
        %v1012 = vunpack.c.l.s4 1934713408
        %v1013 = vunpack.c.0.s8 %v1012
        %v1014 = vlaneseq
        %v1015 = vshrl.u32 %v1014, 7
        %v1016 = vsub.s32 %v1013, %v1015
        %v1017 = vrot.slane %v1003, %v1016
        %v1018 = vcombine.low %v986, %v1001
        %v1019 = vcombine.high %v986, %v1001
        %v1021 = vunpack.c.l.s4 1934713408
        %v1022 = vunpack.c.0.s8 %v1021
        %v1023 = vlaneseq
        %v1024 = vshrl.u32 %v1023, 7
        %v1025 = vsub.s32 %v1022, %v1024
        %v1026 = vrot.slane %v1018, %v1025
        %v1028 = vunpack.c.l.s4 1934713408
        %v1029 = vunpack.c.0.s8 %v1028
        %v1030 = vlaneseq
        %v1031 = vshrl.u32 %v1030, 7
        %v1032 = vsub.s32 %v1029, %v1031
        %v1033 = vrot.slane %v1019, %v1032
        %v1034 = vcombine.high %v1010, 0
        %v1035 = vcombine.high %v1017, 0
        %v1036 = vcombine.high %v1026, 0
        %v1037 = vcombine.high %v1033, 0
        %v1038 = vcombine.high %v830, %v822
        %v1040 = vunpack.c.l.s4 1983009808
        %v1041 = vunpack.c.0.s8 %v1040
        %v1042 = vlaneseq
        %v1043 = vshrl.u32 %v1042, 7
        %v1044 = vsub.s32 %v1041, %v1043
        %v1045 = vrot.slane %v830, %v1044
        %v1047 = vunpack.c.l.s4 1983009808
        %v1048 = vunpack.c.0.s8 %v1047
        %v1049 = vlaneseq
        %v1050 = vshrl.u32 %v1049, 7
        %v1051 = vsub.s32 %v1048, %v1050
        %v1052 = vrot.slane %v1038, %v1051
        %v1053 = vcombine.high %v838, %v822
        %v1055 = vunpack.c.l.s4 1983009808
        %v1056 = vunpack.c.0.s8 %v1055
        %v1057 = vlaneseq
        %v1058 = vshrl.u32 %v1057, 7
        %v1059 = vsub.s32 %v1056, %v1058
        %v1060 = vrot.slane %v838, %v1059
        %v1062 = vunpack.c.l.s4 1983009808
        %v1063 = vunpack.c.0.s8 %v1062
        %v1064 = vlaneseq
        %v1065 = vshrl.u32 %v1064, 7
        %v1066 = vsub.s32 %v1063, %v1065
        %v1067 = vrot.slane %v1053, %v1066
        %v1068 = vcombine.low %v1045, %v1060
        %v1069 = vcombine.high %v1045, %v1060
        %v1071 = vunpack.c.l.s4 1934713408
        %v1072 = vunpack.c.0.s8 %v1071
        %v1073 = vlaneseq
        %v1074 = vshrl.u32 %v1073, 7
        %v1075 = vsub.s32 %v1072, %v1074
        %v1076 = vrot.slane %v1068, %v1075
        %v1078 = vunpack.c.l.s4 1934713408
        %v1079 = vunpack.c.0.s8 %v1078
        %v1080 = vlaneseq
        %v1081 = vshrl.u32 %v1080, 7
        %v1082 = vsub.s32 %v1079, %v1081
        %v1083 = vrot.slane %v1069, %v1082
        %v1084 = vcombine.low %v1052, %v1067
        %v1085 = vcombine.high %v1052, %v1067
        %v1087 = vunpack.c.l.s4 1934713408
        %v1088 = vunpack.c.0.s8 %v1087
        %v1089 = vlaneseq
        %v1090 = vshrl.u32 %v1089, 7
        %v1091 = vsub.s32 %v1088, %v1090
        %v1092 = vrot.slane %v1084, %v1091
        %v1094 = vunpack.c.l.s4 1934713408
        %v1095 = vunpack.c.0.s8 %v1094
        %v1096 = vlaneseq
        %v1097 = vshrl.u32 %v1096, 7
        %v1098 = vsub.s32 %v1095, %v1097
        %v1099 = vrot.slane %v1085, %v1098
        %v1100 = vcombine.high %v1076, 0
        %v1101 = vcombine.high %v1083, 0
        %v1102 = vcombine.high %v1092, 0
        %v1103 = vcombine.high %v1099, 0
        %v1104 = vcombine.low %v878, %v885
        %v1106 = vunpack.c.l.s4 1983009808
        %v1107 = vunpack.c.0.s8 %v1106
        %v1108 = vlaneseq
        %v1109 = vshrl.u32 %v1108, 7
        %v1110 = vsub.s32 %v1107, %v1109
        %v1111 = vrot.slane %v1104, %v1110
        %v1112 = vcombine.low %v902, %v903
        %v1114 = vunpack.c.l.s4 1983009808
        %v1115 = vunpack.c.0.s8 %v1114
        %v1116 = vlaneseq
        %v1117 = vshrl.u32 %v1116, 7
        %v1118 = vsub.s32 %v1115, %v1117
        %v1119 = vrot.slane %v1112, %v1118
        %v1120 = vcombine.low %v1111, %v1119
        %v1122 = vunpack.c.l.s4 1934713408
        %v1123 = vunpack.c.0.s8 %v1122
        %v1124 = vlaneseq
        %v1125 = vshrl.u32 %v1124, 7
        %v1126 = vsub.s32 %v1123, %v1125
        %v1127 = vrot.slane %v1120, %v1126
        %v1128 = vcombine.high %v1127, 0
        %v1129 = vcombine.low %v944, %v951
        %v1131 = vunpack.c.l.s4 1983009808
        %v1132 = vunpack.c.0.s8 %v1131
        %v1133 = vlaneseq
        %v1134 = vshrl.u32 %v1133, 7
        %v1135 = vsub.s32 %v1132, %v1134
        %v1136 = vrot.slane %v1129, %v1135
        %v1137 = vcombine.low %v968, %v969
        %v1139 = vunpack.c.l.s4 1983009808
        %v1140 = vunpack.c.0.s8 %v1139
        %v1141 = vlaneseq
        %v1142 = vshrl.u32 %v1141, 7
        %v1143 = vsub.s32 %v1140, %v1142
        %v1144 = vrot.slane %v1137, %v1143
        %v1145 = vcombine.low %v1136, %v1144
        %v1147 = vunpack.c.l.s4 1934713408
        %v1148 = vunpack.c.0.s8 %v1147
        %v1149 = vlaneseq
        %v1150 = vshrl.u32 %v1149, 7
        %v1151 = vsub.s32 %v1148, %v1150
        %v1152 = vrot.slane %v1145, %v1151
        %v1153 = vcombine.high %v1152, 0
        %v1154 = vcombine.low %v894, %v901
        %v1156 = vunpack.c.l.s4 1983009808
        %v1157 = vunpack.c.0.s8 %v1156
        %v1158 = vlaneseq
        %v1159 = vshrl.u32 %v1158, 7
        %v1160 = vsub.s32 %v1157, %v1159
        %v1161 = vrot.slane %v1154, %v1160
        %v1162 = vcombine.low %v904, %v905
        %v1164 = vunpack.c.l.s4 1983009808
        %v1165 = vunpack.c.0.s8 %v1164
        %v1166 = vlaneseq
        %v1167 = vshrl.u32 %v1166, 7
        %v1168 = vsub.s32 %v1165, %v1167
        %v1169 = vrot.slane %v1162, %v1168
        %v1170 = vcombine.low %v1161, %v1169
        %v1172 = vunpack.c.l.s4 1934713408
        %v1173 = vunpack.c.0.s8 %v1172
        %v1174 = vlaneseq
        %v1175 = vshrl.u32 %v1174, 7
        %v1176 = vsub.s32 %v1173, %v1175
        %v1177 = vrot.slane %v1170, %v1176
        %v1178 = vcombine.high %v1177, 0
        %v1179 = vcombine.low %v960, %v967
        %v1181 = vunpack.c.l.s4 1983009808
        %v1182 = vunpack.c.0.s8 %v1181
        %v1183 = vlaneseq
        %v1184 = vshrl.u32 %v1183, 7
        %v1185 = vsub.s32 %v1182, %v1184
        %v1186 = vrot.slane %v1179, %v1185
        %v1187 = vcombine.low %v970, %v971
        %v1189 = vunpack.c.l.s4 1983009808
        %v1190 = vunpack.c.0.s8 %v1189
        %v1191 = vlaneseq
        %v1192 = vshrl.u32 %v1191, 7
        %v1193 = vsub.s32 %v1190, %v1192
        %v1194 = vrot.slane %v1187, %v1193
        %v1195 = vcombine.low %v1186, %v1194
        %v1197 = vunpack.c.l.s4 1934713408
        %v1198 = vunpack.c.0.s8 %v1197
        %v1199 = vlaneseq
        %v1200 = vshrl.u32 %v1199, 7
        %v1201 = vsub.s32 %v1198, %v1200
        %v1202 = vrot.slane %v1195, %v1201
        %v1203 = vcombine.high %v1202, 0
        %v1204 = vcombine.low %v1010, %v1017
        %v1206 = vunpack.c.l.s4 1983009808
        %v1207 = vunpack.c.0.s8 %v1206
        %v1208 = vlaneseq
        %v1209 = vshrl.u32 %v1208, 7
        %v1210 = vsub.s32 %v1207, %v1209
        %v1211 = vrot.slane %v1204, %v1210
        %v1212 = vcombine.low %v1034, %v1035
        %v1214 = vunpack.c.l.s4 1983009808
        %v1215 = vunpack.c.0.s8 %v1214
        %v1216 = vlaneseq
        %v1217 = vshrl.u32 %v1216, 7
        %v1218 = vsub.s32 %v1215, %v1217
        %v1219 = vrot.slane %v1212, %v1218
        %v1220 = vcombine.low %v1211, %v1219
        %v1222 = vunpack.c.l.s4 1934713408
        %v1223 = vunpack.c.0.s8 %v1222
        %v1224 = vlaneseq
        %v1225 = vshrl.u32 %v1224, 7
        %v1226 = vsub.s32 %v1223, %v1225
        %v1227 = vrot.slane %v1220, %v1226
        %v1228 = vcombine.high %v1227, 0
        %v1229 = vcombine.low %v1076, %v1083
        %v1231 = vunpack.c.l.s4 1983009808
        %v1232 = vunpack.c.0.s8 %v1231
        %v1233 = vlaneseq
        %v1234 = vshrl.u32 %v1233, 7
        %v1235 = vsub.s32 %v1232, %v1234
        %v1236 = vrot.slane %v1229, %v1235
        %v1237 = vcombine.low %v1100, %v1101
        %v1239 = vunpack.c.l.s4 1983009808
        %v1240 = vunpack.c.0.s8 %v1239
        %v1241 = vlaneseq
        %v1242 = vshrl.u32 %v1241, 7
        %v1243 = vsub.s32 %v1240, %v1242
        %v1244 = vrot.slane %v1237, %v1243
        %v1245 = vcombine.low %v1236, %v1244
        %v1247 = vunpack.c.l.s4 1934713408
        %v1248 = vunpack.c.0.s8 %v1247
        %v1249 = vlaneseq
        %v1250 = vshrl.u32 %v1249, 7
        %v1251 = vsub.s32 %v1248, %v1250
        %v1252 = vrot.slane %v1245, %v1251
        %v1253 = vcombine.high %v1252, 0
        %v1254 = vcombine.low %v1026, %v1033
        %v1256 = vunpack.c.l.s4 1983009808
        %v1257 = vunpack.c.0.s8 %v1256
        %v1258 = vlaneseq
        %v1259 = vshrl.u32 %v1258, 7
        %v1260 = vsub.s32 %v1257, %v1259
        %v1261 = vrot.slane %v1254, %v1260
        %v1262 = vcombine.low %v1036, %v1037
        %v1264 = vunpack.c.l.s4 1983009808
        %v1265 = vunpack.c.0.s8 %v1264
        %v1266 = vlaneseq
        %v1267 = vshrl.u32 %v1266, 7
        %v1268 = vsub.s32 %v1265, %v1267
        %v1269 = vrot.slane %v1262, %v1268
        %v1270 = vcombine.low %v1261, %v1269
        %v1272 = vunpack.c.l.s4 1934713408
        %v1273 = vunpack.c.0.s8 %v1272
        %v1274 = vlaneseq
        %v1275 = vshrl.u32 %v1274, 7
        %v1276 = vsub.s32 %v1273, %v1275
        %v1277 = vrot.slane %v1270, %v1276
        %v1278 = vcombine.high %v1277, 0
        %v1279 = vcombine.low %v1092, %v1099
        %v1281 = vunpack.c.l.s4 1983009808
        %v1282 = vunpack.c.0.s8 %v1281
        %v1283 = vlaneseq
        %v1284 = vshrl.u32 %v1283, 7
        %v1285 = vsub.s32 %v1282, %v1284
        %v1286 = vrot.slane %v1279, %v1285
        %v1287 = vcombine.low %v1102, %v1103
        %v1289 = vunpack.c.l.s4 1983009808
        %v1290 = vunpack.c.0.s8 %v1289
        %v1291 = vlaneseq
        %v1292 = vshrl.u32 %v1291, 7
        %v1293 = vsub.s32 %v1290, %v1292
        %v1294 = vrot.slane %v1287, %v1293
        %v1295 = vcombine.low %v1286, %v1294
        %v1297 = vunpack.c.l.s4 1934713408
        %v1298 = vunpack.c.0.s8 %v1297
        %v1299 = vlaneseq
        %v1300 = vshrl.u32 %v1299, 7
        %v1301 = vsub.s32 %v1298, %v1300
        %v1302 = vrot.slane %v1295, %v1301
        %v1303 = vcombine.high %v1302, 0
        %v1306 = vpack.i.b16 %v1152, %v1127
        %v1307 = vshrl.u32 %v1127, 16
        %v1308 = vshrl.u32 %v1152, 16
        %v1309 = vpack.i.b16 %v1308, %v1307
        %v1312 = vpack.i.b16 %v1153, %v1128
        %v1313 = vshrl.u32 %v1128, 16
        %v1314 = vshrl.u32 %v1153, 16
        %v1315 = vpack.i.b16 %v1314, %v1313
        %v1318 = vpack.i.b16 %v1202, %v1177
        %v1319 = vshrl.u32 %v1177, 16
        %v1320 = vshrl.u32 %v1202, 16
        %v1321 = vpack.i.b16 %v1320, %v1319
        %v1324 = vpack.i.b16 %v1203, %v1178
        %v1325 = vshrl.u32 %v1178, 16
        %v1326 = vshrl.u32 %v1203, 16
        %v1327 = vpack.i.b16 %v1326, %v1325
        %v1330 = vpack.i.b16 %v1252, %v1227
        %v1331 = vshrl.u32 %v1227, 16
        %v1332 = vshrl.u32 %v1252, 16
        %v1333 = vpack.i.b16 %v1332, %v1331
        %v1336 = vpack.i.b16 %v1253, %v1228
        %v1337 = vshrl.u32 %v1228, 16
        %v1338 = vshrl.u32 %v1253, 16
        %v1339 = vpack.i.b16 %v1338, %v1337
        %v1342 = vpack.i.b16 %v1302, %v1277
        %v1343 = vshrl.u32 %v1277, 16
        %v1344 = vshrl.u32 %v1302, 16
        %v1345 = vpack.i.b16 %v1344, %v1343
        %v1348 = vpack.i.b16 %v1303, %v1278
        %v1349 = vshrl.u32 %v1278, 16
        %v1350 = vshrl.u32 %v1303, 16
        %v1351 = vpack.i.b16 %v1350, %v1349
        %1352 = vrot.lane.b32.xlu0 %v786, 96
        %v1353 = vpop.permute.xlu0 %1352
        %1354 = vrot.lane.b32.xlu0 %v787, 96
        %v1355 = vpop.permute.xlu0 %1354
        %1356 = vrot.lane.b32.xlu0 %v791, 96
        %v1357 = vpop.permute.xlu0 %1356
        %1358 = vrot.lane.b32.xlu0 %v793, 96
        %v1359 = vpop.permute.xlu0 %1358
        %1360 = vrot.lane.b32.xlu0 %v795, 96
        %v1361 = vpop.permute.xlu0 %1360
        %1362 = vrot.lane.b32.xlu0 %v797, 96
        %v1363 = vpop.permute.xlu0 %1362
        %1364 = vrot.lane.b32.xlu0 %v799, 96
        %v1365 = vpop.permute.xlu0 %1364
        %1366 = vrot.lane.b32.xlu0 %v801, 96
        %v1367 = vpop.permute.xlu0 %1366
        %v1370 = vpack.i.b16 %v1357, %v1353
        %v1372 = vshrl.u32 %v1353, 16
        %v1373 = vshrl.u32 %v1357, 16
        %v1374 = vpack.i.b16 %v1373, %v1372
        %v1378 = vpack.i.b16 %v1365, %v1361
        %v1380 = vshrl.u32 %v1361, 16
        %v1381 = vshrl.u32 %v1365, 16
        %v1382 = vpack.i.b16 %v1381, %v1380
        %v1386 = vpack.i.b16 %v1359, %v1355
        %v1388 = vshrl.u32 %v1355, 16
        %v1389 = vshrl.u32 %v1359, 16
        %v1390 = vpack.i.b16 %v1389, %v1388
        %v1394 = vpack.i.b16 %v1367, %v1363
        %v1396 = vshrl.u32 %v1363, 16
        %v1397 = vshrl.u32 %v1367, 16
        %v1398 = vpack.i.b16 %v1397, %v1396
        %v1400 = vcombine.high %v1370, %v819
        %v1402 = vunpack.c.l.s4 1983009808
        %v1403 = vunpack.c.0.s8 %v1402
        %v1404 = vlaneseq
        %v1405 = vshrl.u32 %v1404, 7
        %v1406 = vsub.s32 %v1403, %v1405
        %v1407 = vrot.slane %v1370, %v1406
        %v1409 = vunpack.c.l.s4 1983009808
        %v1410 = vunpack.c.0.s8 %v1409
        %v1411 = vlaneseq
        %v1412 = vshrl.u32 %v1411, 7
        %v1413 = vsub.s32 %v1410, %v1412
        %v1414 = vrot.slane %v1400, %v1413
        %v1415 = vcombine.high %v1378, %v819
        %v1417 = vunpack.c.l.s4 1983009808
        %v1418 = vunpack.c.0.s8 %v1417
        %v1419 = vlaneseq
        %v1420 = vshrl.u32 %v1419, 7
        %v1421 = vsub.s32 %v1418, %v1420
        %v1422 = vrot.slane %v1378, %v1421
        %v1424 = vunpack.c.l.s4 1983009808
        %v1425 = vunpack.c.0.s8 %v1424
        %v1426 = vlaneseq
        %v1427 = vshrl.u32 %v1426, 7
        %v1428 = vsub.s32 %v1425, %v1427
        %v1429 = vrot.slane %v1415, %v1428
        %v1430 = vcombine.low %v1407, %v1422
        %v1431 = vcombine.high %v1407, %v1422
        %v1433 = vunpack.c.l.s4 1934713408
        %v1434 = vunpack.c.0.s8 %v1433
        %v1435 = vlaneseq
        %v1436 = vshrl.u32 %v1435, 7
        %v1437 = vsub.s32 %v1434, %v1436
        %v1438 = vrot.slane %v1430, %v1437
        %v1440 = vunpack.c.l.s4 1934713408
        %v1441 = vunpack.c.0.s8 %v1440
        %v1442 = vlaneseq
        %v1443 = vshrl.u32 %v1442, 7
        %v1444 = vsub.s32 %v1441, %v1443
        %v1445 = vrot.slane %v1431, %v1444
        %v1446 = vcombine.low %v1414, %v1429
        %v1447 = vcombine.high %v1414, %v1429
        %v1449 = vunpack.c.l.s4 1934713408
        %v1450 = vunpack.c.0.s8 %v1449
        %v1451 = vlaneseq
        %v1452 = vshrl.u32 %v1451, 7
        %v1453 = vsub.s32 %v1450, %v1452
        %v1454 = vrot.slane %v1446, %v1453
        %v1456 = vunpack.c.l.s4 1934713408
        %v1457 = vunpack.c.0.s8 %v1456
        %v1458 = vlaneseq
        %v1459 = vshrl.u32 %v1458, 7
        %v1460 = vsub.s32 %v1457, %v1459
        %v1461 = vrot.slane %v1447, %v1460
        %v1462 = vcombine.high %v1438, 0
        %v1463 = vcombine.high %v1445, 0
        %v1464 = vcombine.high %v1454, 0
        %v1465 = vcombine.high %v1461, 0
        %v1466 = vcombine.high %v1374, %v822
        %v1468 = vunpack.c.l.s4 1983009808
        %v1469 = vunpack.c.0.s8 %v1468
        %v1470 = vlaneseq
        %v1471 = vshrl.u32 %v1470, 7
        %v1472 = vsub.s32 %v1469, %v1471
        %v1473 = vrot.slane %v1374, %v1472
        %v1475 = vunpack.c.l.s4 1983009808
        %v1476 = vunpack.c.0.s8 %v1475
        %v1477 = vlaneseq
        %v1478 = vshrl.u32 %v1477, 7
        %v1479 = vsub.s32 %v1476, %v1478
        %v1480 = vrot.slane %v1466, %v1479
        %v1481 = vcombine.high %v1382, %v822
        %v1483 = vunpack.c.l.s4 1983009808
        %v1484 = vunpack.c.0.s8 %v1483
        %v1485 = vlaneseq
        %v1486 = vshrl.u32 %v1485, 7
        %v1487 = vsub.s32 %v1484, %v1486
        %v1488 = vrot.slane %v1382, %v1487
        %v1490 = vunpack.c.l.s4 1983009808
        %v1491 = vunpack.c.0.s8 %v1490
        %v1492 = vlaneseq
        %v1493 = vshrl.u32 %v1492, 7
        %v1494 = vsub.s32 %v1491, %v1493
        %v1495 = vrot.slane %v1481, %v1494
        %v1496 = vcombine.low %v1473, %v1488
        %v1497 = vcombine.high %v1473, %v1488
        %v1499 = vunpack.c.l.s4 1934713408
        %v1500 = vunpack.c.0.s8 %v1499
        %v1501 = vlaneseq
        %v1502 = vshrl.u32 %v1501, 7
        %v1503 = vsub.s32 %v1500, %v1502
        %v1504 = vrot.slane %v1496, %v1503
        %v1506 = vunpack.c.l.s4 1934713408
        %v1507 = vunpack.c.0.s8 %v1506
        %v1508 = vlaneseq
        %v1509 = vshrl.u32 %v1508, 7
        %v1510 = vsub.s32 %v1507, %v1509
        %v1511 = vrot.slane %v1497, %v1510
        %v1512 = vcombine.low %v1480, %v1495
        %v1513 = vcombine.high %v1480, %v1495
        %v1515 = vunpack.c.l.s4 1934713408
        %v1516 = vunpack.c.0.s8 %v1515
        %v1517 = vlaneseq
        %v1518 = vshrl.u32 %v1517, 7
        %v1519 = vsub.s32 %v1516, %v1518
        %v1520 = vrot.slane %v1512, %v1519
        %v1522 = vunpack.c.l.s4 1934713408
        %v1523 = vunpack.c.0.s8 %v1522
        %v1524 = vlaneseq
        %v1525 = vshrl.u32 %v1524, 7
        %v1526 = vsub.s32 %v1523, %v1525
        %v1527 = vrot.slane %v1513, %v1526
        %v1528 = vcombine.high %v1504, 0
        %v1529 = vcombine.high %v1511, 0
        %v1530 = vcombine.high %v1520, 0
        %v1531 = vcombine.high %v1527, 0
        %v1532 = vcombine.high %v1386, %v819
        %v1534 = vunpack.c.l.s4 1983009808
        %v1535 = vunpack.c.0.s8 %v1534
        %v1536 = vlaneseq
        %v1537 = vshrl.u32 %v1536, 7
        %v1538 = vsub.s32 %v1535, %v1537
        %v1539 = vrot.slane %v1386, %v1538
        %v1541 = vunpack.c.l.s4 1983009808
        %v1542 = vunpack.c.0.s8 %v1541
        %v1543 = vlaneseq
        %v1544 = vshrl.u32 %v1543, 7
        %v1545 = vsub.s32 %v1542, %v1544
        %v1546 = vrot.slane %v1532, %v1545
        %v1547 = vcombine.high %v1394, %v819
        %v1549 = vunpack.c.l.s4 1983009808
        %v1550 = vunpack.c.0.s8 %v1549
        %v1551 = vlaneseq
        %v1552 = vshrl.u32 %v1551, 7
        %v1553 = vsub.s32 %v1550, %v1552
        %v1554 = vrot.slane %v1394, %v1553
        %v1556 = vunpack.c.l.s4 1983009808
        %v1557 = vunpack.c.0.s8 %v1556
        %v1558 = vlaneseq
        %v1559 = vshrl.u32 %v1558, 7
        %v1560 = vsub.s32 %v1557, %v1559
        %v1561 = vrot.slane %v1547, %v1560
        %v1562 = vcombine.low %v1539, %v1554
        %v1563 = vcombine.high %v1539, %v1554
        %v1565 = vunpack.c.l.s4 1934713408
        %v1566 = vunpack.c.0.s8 %v1565
        %v1567 = vlaneseq
        %v1568 = vshrl.u32 %v1567, 7
        %v1569 = vsub.s32 %v1566, %v1568
        %v1570 = vrot.slane %v1562, %v1569
        %v1572 = vunpack.c.l.s4 1934713408
        %v1573 = vunpack.c.0.s8 %v1572
        %v1574 = vlaneseq
        %v1575 = vshrl.u32 %v1574, 7
        %v1576 = vsub.s32 %v1573, %v1575
        %v1577 = vrot.slane %v1563, %v1576
        %v1578 = vcombine.low %v1546, %v1561
        %v1579 = vcombine.high %v1546, %v1561
        %v1581 = vunpack.c.l.s4 1934713408
        %v1582 = vunpack.c.0.s8 %v1581
        %v1583 = vlaneseq
        %v1584 = vshrl.u32 %v1583, 7
        %v1585 = vsub.s32 %v1582, %v1584
        %v1586 = vrot.slane %v1578, %v1585
        %v1588 = vunpack.c.l.s4 1934713408
        %v1589 = vunpack.c.0.s8 %v1588
        %v1590 = vlaneseq
        %v1591 = vshrl.u32 %v1590, 7
        %v1592 = vsub.s32 %v1589, %v1591
        %v1593 = vrot.slane %v1579, %v1592
        %v1594 = vcombine.high %v1570, 0
        %v1595 = vcombine.high %v1577, 0
        %v1596 = vcombine.high %v1586, 0
        %v1597 = vcombine.high %v1593, 0
        %v1598 = vcombine.high %v1390, %v822
        %v1600 = vunpack.c.l.s4 1983009808
        %v1601 = vunpack.c.0.s8 %v1600
        %v1602 = vlaneseq
        %v1603 = vshrl.u32 %v1602, 7
        %v1604 = vsub.s32 %v1601, %v1603
        %v1605 = vrot.slane %v1390, %v1604
        %v1607 = vunpack.c.l.s4 1983009808
        %v1608 = vunpack.c.0.s8 %v1607
        %v1609 = vlaneseq
        %v1610 = vshrl.u32 %v1609, 7
        %v1611 = vsub.s32 %v1608, %v1610
        %v1612 = vrot.slane %v1598, %v1611
        %v1613 = vcombine.high %v1398, %v822
        %v1615 = vunpack.c.l.s4 1983009808
        %v1616 = vunpack.c.0.s8 %v1615
        %v1617 = vlaneseq
        %v1618 = vshrl.u32 %v1617, 7
        %v1619 = vsub.s32 %v1616, %v1618
        %v1620 = vrot.slane %v1398, %v1619
        %v1622 = vunpack.c.l.s4 1983009808
        %v1623 = vunpack.c.0.s8 %v1622
        %v1624 = vlaneseq
        %v1625 = vshrl.u32 %v1624, 7
        %v1626 = vsub.s32 %v1623, %v1625
        %v1627 = vrot.slane %v1613, %v1626
        %v1628 = vcombine.low %v1605, %v1620
        %v1629 = vcombine.high %v1605, %v1620
        %v1631 = vunpack.c.l.s4 1934713408
        %v1632 = vunpack.c.0.s8 %v1631
        %v1633 = vlaneseq
        %v1634 = vshrl.u32 %v1633, 7
        %v1635 = vsub.s32 %v1632, %v1634
        %v1636 = vrot.slane %v1628, %v1635
        %v1638 = vunpack.c.l.s4 1934713408
        %v1639 = vunpack.c.0.s8 %v1638
        %v1640 = vlaneseq
        %v1641 = vshrl.u32 %v1640, 7
        %v1642 = vsub.s32 %v1639, %v1641
        %v1643 = vrot.slane %v1629, %v1642
        %v1644 = vcombine.low %v1612, %v1627
        %v1645 = vcombine.high %v1612, %v1627
        %v1647 = vunpack.c.l.s4 1934713408
        %v1648 = vunpack.c.0.s8 %v1647
        %v1649 = vlaneseq
        %v1650 = vshrl.u32 %v1649, 7
        %v1651 = vsub.s32 %v1648, %v1650
        %v1652 = vrot.slane %v1644, %v1651
        %v1654 = vunpack.c.l.s4 1934713408
        %v1655 = vunpack.c.0.s8 %v1654
        %v1656 = vlaneseq
        %v1657 = vshrl.u32 %v1656, 7
        %v1658 = vsub.s32 %v1655, %v1657
        %v1659 = vrot.slane %v1645, %v1658
        %v1660 = vcombine.high %v1636, 0
        %v1661 = vcombine.high %v1643, 0
        %v1662 = vcombine.high %v1652, 0
        %v1663 = vcombine.high %v1659, 0
        %v1664 = vcombine.low %v1438, %v1445
        %v1666 = vunpack.c.l.s4 1983009808
        %v1667 = vunpack.c.0.s8 %v1666
        %v1668 = vlaneseq
        %v1669 = vshrl.u32 %v1668, 7
        %v1670 = vsub.s32 %v1667, %v1669
        %v1671 = vrot.slane %v1664, %v1670
        %v1672 = vcombine.low %v1462, %v1463
        %v1674 = vunpack.c.l.s4 1983009808
        %v1675 = vunpack.c.0.s8 %v1674
        %v1676 = vlaneseq
        %v1677 = vshrl.u32 %v1676, 7
        %v1678 = vsub.s32 %v1675, %v1677
        %v1679 = vrot.slane %v1672, %v1678
        %v1680 = vcombine.low %v1671, %v1679
        %v1682 = vunpack.c.l.s4 1934713408
        %v1683 = vunpack.c.0.s8 %v1682
        %v1684 = vlaneseq
        %v1685 = vshrl.u32 %v1684, 7
        %v1686 = vsub.s32 %v1683, %v1685
        %v1687 = vrot.slane %v1680, %v1686
        %v1688 = vcombine.high %v1687, 0
        %v1689 = vcombine.low %v1504, %v1511
        %v1691 = vunpack.c.l.s4 1983009808
        %v1692 = vunpack.c.0.s8 %v1691
        %v1693 = vlaneseq
        %v1694 = vshrl.u32 %v1693, 7
        %v1695 = vsub.s32 %v1692, %v1694
        %v1696 = vrot.slane %v1689, %v1695
        %v1697 = vcombine.low %v1528, %v1529
        %v1699 = vunpack.c.l.s4 1983009808
        %v1700 = vunpack.c.0.s8 %v1699
        %v1701 = vlaneseq
        %v1702 = vshrl.u32 %v1701, 7
        %v1703 = vsub.s32 %v1700, %v1702
        %v1704 = vrot.slane %v1697, %v1703
        %v1705 = vcombine.low %v1696, %v1704
        %v1707 = vunpack.c.l.s4 1934713408
        %v1708 = vunpack.c.0.s8 %v1707
        %v1709 = vlaneseq
        %v1710 = vshrl.u32 %v1709, 7
        %v1711 = vsub.s32 %v1708, %v1710
        %v1712 = vrot.slane %v1705, %v1711
        %v1713 = vcombine.high %v1712, 0
        %v1714 = vcombine.low %v1454, %v1461
        %v1716 = vunpack.c.l.s4 1983009808
        %v1717 = vunpack.c.0.s8 %v1716
        %v1718 = vlaneseq
        %v1719 = vshrl.u32 %v1718, 7
        %v1720 = vsub.s32 %v1717, %v1719
        %v1721 = vrot.slane %v1714, %v1720
        %v1722 = vcombine.low %v1464, %v1465
        %v1724 = vunpack.c.l.s4 1983009808
        %v1725 = vunpack.c.0.s8 %v1724
        %v1726 = vlaneseq
        %v1727 = vshrl.u32 %v1726, 7
        %v1728 = vsub.s32 %v1725, %v1727
        %v1729 = vrot.slane %v1722, %v1728
        %v1730 = vcombine.low %v1721, %v1729
        %v1732 = vunpack.c.l.s4 1934713408
        %v1733 = vunpack.c.0.s8 %v1732
        %v1734 = vlaneseq
        %v1735 = vshrl.u32 %v1734, 7
        %v1736 = vsub.s32 %v1733, %v1735
        %v1737 = vrot.slane %v1730, %v1736
        %v1738 = vcombine.high %v1737, 0
        %v1739 = vcombine.low %v1520, %v1527
        %v1741 = vunpack.c.l.s4 1983009808
        %v1742 = vunpack.c.0.s8 %v1741
        %v1743 = vlaneseq
        %v1744 = vshrl.u32 %v1743, 7
        %v1745 = vsub.s32 %v1742, %v1744
        %v1746 = vrot.slane %v1739, %v1745
        %v1747 = vcombine.low %v1530, %v1531
        %v1749 = vunpack.c.l.s4 1983009808
        %v1750 = vunpack.c.0.s8 %v1749
        %v1751 = vlaneseq
        %v1752 = vshrl.u32 %v1751, 7
        %v1753 = vsub.s32 %v1750, %v1752
        %v1754 = vrot.slane %v1747, %v1753
        %v1755 = vcombine.low %v1746, %v1754
        %v1757 = vunpack.c.l.s4 1934713408
        %v1758 = vunpack.c.0.s8 %v1757
        %v1759 = vlaneseq
        %v1760 = vshrl.u32 %v1759, 7
        %v1761 = vsub.s32 %v1758, %v1760
        %v1762 = vrot.slane %v1755, %v1761
        %v1763 = vcombine.high %v1762, 0
        %v1764 = vcombine.low %v1570, %v1577
        %v1766 = vunpack.c.l.s4 1983009808
        %v1767 = vunpack.c.0.s8 %v1766
        %v1768 = vlaneseq
        %v1769 = vshrl.u32 %v1768, 7
        %v1770 = vsub.s32 %v1767, %v1769
        %v1771 = vrot.slane %v1764, %v1770
        %v1772 = vcombine.low %v1594, %v1595
        %v1774 = vunpack.c.l.s4 1983009808
        %v1775 = vunpack.c.0.s8 %v1774
        %v1776 = vlaneseq
        %v1777 = vshrl.u32 %v1776, 7
        %v1778 = vsub.s32 %v1775, %v1777
        %v1779 = vrot.slane %v1772, %v1778
        %v1780 = vcombine.low %v1771, %v1779
        %v1782 = vunpack.c.l.s4 1934713408
        %v1783 = vunpack.c.0.s8 %v1782
        %v1784 = vlaneseq
        %v1785 = vshrl.u32 %v1784, 7
        %v1786 = vsub.s32 %v1783, %v1785
        %v1787 = vrot.slane %v1780, %v1786
        %v1788 = vcombine.high %v1787, 0
        %v1789 = vcombine.low %v1636, %v1643
        %v1791 = vunpack.c.l.s4 1983009808
        %v1792 = vunpack.c.0.s8 %v1791
        %v1793 = vlaneseq
        %v1794 = vshrl.u32 %v1793, 7
        %v1795 = vsub.s32 %v1792, %v1794
        %v1796 = vrot.slane %v1789, %v1795
        %v1797 = vcombine.low %v1660, %v1661
        %v1799 = vunpack.c.l.s4 1983009808
        %v1800 = vunpack.c.0.s8 %v1799
        %v1801 = vlaneseq
        %v1802 = vshrl.u32 %v1801, 7
        %v1803 = vsub.s32 %v1800, %v1802
        %v1804 = vrot.slane %v1797, %v1803
        %v1805 = vcombine.low %v1796, %v1804
        %v1807 = vunpack.c.l.s4 1934713408
        %v1808 = vunpack.c.0.s8 %v1807
        %v1809 = vlaneseq
        %v1810 = vshrl.u32 %v1809, 7
        %v1811 = vsub.s32 %v1808, %v1810
        %v1812 = vrot.slane %v1805, %v1811
        %v1813 = vcombine.high %v1812, 0
        %v1814 = vcombine.low %v1586, %v1593
        %v1816 = vunpack.c.l.s4 1983009808
        %v1817 = vunpack.c.0.s8 %v1816
        %v1818 = vlaneseq
        %v1819 = vshrl.u32 %v1818, 7
        %v1820 = vsub.s32 %v1817, %v1819
        %v1821 = vrot.slane %v1814, %v1820
        %v1822 = vcombine.low %v1596, %v1597
        %v1824 = vunpack.c.l.s4 1983009808
        %v1825 = vunpack.c.0.s8 %v1824
        %v1826 = vlaneseq
        %v1827 = vshrl.u32 %v1826, 7
        %v1828 = vsub.s32 %v1825, %v1827
        %v1829 = vrot.slane %v1822, %v1828
        %v1830 = vcombine.low %v1821, %v1829
        %v1832 = vunpack.c.l.s4 1934713408
        %v1833 = vunpack.c.0.s8 %v1832
        %v1834 = vlaneseq
        %v1835 = vshrl.u32 %v1834, 7
        %v1836 = vsub.s32 %v1833, %v1835
        %v1837 = vrot.slane %v1830, %v1836
        %v1838 = vcombine.high %v1837, 0
        %v1839 = vcombine.low %v1652, %v1659
        %v1841 = vunpack.c.l.s4 1983009808
        %v1842 = vunpack.c.0.s8 %v1841
        %v1843 = vlaneseq
        %v1844 = vshrl.u32 %v1843, 7
        %v1845 = vsub.s32 %v1842, %v1844
        %v1846 = vrot.slane %v1839, %v1845
        %v1847 = vcombine.low %v1662, %v1663
        %v1849 = vunpack.c.l.s4 1983009808
        %v1850 = vunpack.c.0.s8 %v1849
        %v1851 = vlaneseq
        %v1852 = vshrl.u32 %v1851, 7
        %v1853 = vsub.s32 %v1850, %v1852
        %v1854 = vrot.slane %v1847, %v1853
        %v1855 = vcombine.low %v1846, %v1854
        %v1857 = vunpack.c.l.s4 1934713408
        %v1858 = vunpack.c.0.s8 %v1857
        %v1859 = vlaneseq
        %v1860 = vshrl.u32 %v1859, 7
        %v1861 = vsub.s32 %v1858, %v1860
        %v1862 = vrot.slane %v1855, %v1861
        %v1863 = vcombine.high %v1862, 0
        %v1866 = vpack.i.b16 %v1712, %v1687
        %v1867 = vshrl.u32 %v1687, 16
        %v1868 = vshrl.u32 %v1712, 16
        %v1869 = vpack.i.b16 %v1868, %v1867
        %v1872 = vpack.i.b16 %v1713, %v1688
        %v1873 = vshrl.u32 %v1688, 16
        %v1874 = vshrl.u32 %v1713, 16
        %v1875 = vpack.i.b16 %v1874, %v1873
        %v1878 = vpack.i.b16 %v1762, %v1737
        %v1879 = vshrl.u32 %v1737, 16
        %v1880 = vshrl.u32 %v1762, 16
        %v1881 = vpack.i.b16 %v1880, %v1879
        %v1884 = vpack.i.b16 %v1763, %v1738
        %v1885 = vshrl.u32 %v1738, 16
        %v1886 = vshrl.u32 %v1763, 16
        %v1887 = vpack.i.b16 %v1886, %v1885
        %v1890 = vpack.i.b16 %v1812, %v1787
        %v1891 = vshrl.u32 %v1787, 16
        %v1892 = vshrl.u32 %v1812, 16
        %v1893 = vpack.i.b16 %v1892, %v1891
        %v1896 = vpack.i.b16 %v1813, %v1788
        %v1897 = vshrl.u32 %v1788, 16
        %v1898 = vshrl.u32 %v1813, 16
        %v1899 = vpack.i.b16 %v1898, %v1897
        %v1902 = vpack.i.b16 %v1862, %v1837
        %v1903 = vshrl.u32 %v1837, 16
        %v1904 = vshrl.u32 %v1862, 16
        %v1905 = vpack.i.b16 %v1904, %v1903
        %v1908 = vpack.i.b16 %v1863, %v1838
        %v1909 = vshrl.u32 %v1838, 16
        %v1910 = vshrl.u32 %v1863, 16
        %v1911 = vpack.i.b16 %v1910, %v1909
        %1912 = vrot.lane.b32.xlu0 %v786, 64
        %v1913 = vpop.permute.xlu0 %1912
        %1914 = vrot.lane.b32.xlu0 %v787, 64
        %v1915 = vpop.permute.xlu0 %1914
        %1916 = vrot.lane.b32.xlu0 %v791, 64
        %v1917 = vpop.permute.xlu0 %1916
        %1918 = vrot.lane.b32.xlu0 %v793, 64
        %v1919 = vpop.permute.xlu0 %1918
        %1920 = vrot.lane.b32.xlu0 %v795, 64
        %v1921 = vpop.permute.xlu0 %1920
        %1922 = vrot.lane.b32.xlu0 %v797, 64
        %v1923 = vpop.permute.xlu0 %1922
        %1924 = vrot.lane.b32.xlu0 %v799, 64
        %v1925 = vpop.permute.xlu0 %1924
        %1926 = vrot.lane.b32.xlu0 %v801, 64
        %v1927 = vpop.permute.xlu0 %1926
        %v1930 = vpack.i.b16 %v1917, %v1913
        %v1932 = vshrl.u32 %v1913, 16
        %v1933 = vshrl.u32 %v1917, 16
        %v1934 = vpack.i.b16 %v1933, %v1932
        %v1938 = vpack.i.b16 %v1925, %v1921
        %v1940 = vshrl.u32 %v1921, 16
        %v1941 = vshrl.u32 %v1925, 16
        %v1942 = vpack.i.b16 %v1941, %v1940
        %v1946 = vpack.i.b16 %v1919, %v1915
        %v1948 = vshrl.u32 %v1915, 16
        %v1949 = vshrl.u32 %v1919, 16
        %v1950 = vpack.i.b16 %v1949, %v1948
        %v1954 = vpack.i.b16 %v1927, %v1923
        %v1956 = vshrl.u32 %v1923, 16
        %v1957 = vshrl.u32 %v1927, 16
        %v1958 = vpack.i.b16 %v1957, %v1956
        %v1960 = vcombine.high %v1930, %v819
        %v1962 = vunpack.c.l.s4 1983009808
        %v1963 = vunpack.c.0.s8 %v1962
        %v1964 = vlaneseq
        %v1965 = vshrl.u32 %v1964, 7
        %v1966 = vsub.s32 %v1963, %v1965
        %v1967 = vrot.slane %v1930, %v1966
        %v1969 = vunpack.c.l.s4 1983009808
        %v1970 = vunpack.c.0.s8 %v1969
        %v1971 = vlaneseq
        %v1972 = vshrl.u32 %v1971, 7
        %v1973 = vsub.s32 %v1970, %v1972
        %v1974 = vrot.slane %v1960, %v1973
        %v1975 = vcombine.high %v1938, %v819
        %v1977 = vunpack.c.l.s4 1983009808
        %v1978 = vunpack.c.0.s8 %v1977
        %v1979 = vlaneseq
        %v1980 = vshrl.u32 %v1979, 7
        %v1981 = vsub.s32 %v1978, %v1980
        %v1982 = vrot.slane %v1938, %v1981
        %v1984 = vunpack.c.l.s4 1983009808
        %v1985 = vunpack.c.0.s8 %v1984
        %v1986 = vlaneseq
        %v1987 = vshrl.u32 %v1986, 7
        %v1988 = vsub.s32 %v1985, %v1987
        %v1989 = vrot.slane %v1975, %v1988
        %v1990 = vcombine.low %v1967, %v1982
        %v1991 = vcombine.high %v1967, %v1982
        %v1993 = vunpack.c.l.s4 1934713408
        %v1994 = vunpack.c.0.s8 %v1993
        %v1995 = vlaneseq
        %v1996 = vshrl.u32 %v1995, 7
        %v1997 = vsub.s32 %v1994, %v1996
        %v1998 = vrot.slane %v1990, %v1997
        %v2000 = vunpack.c.l.s4 1934713408
        %v2001 = vunpack.c.0.s8 %v2000
        %v2002 = vlaneseq
        %v2003 = vshrl.u32 %v2002, 7
        %v2004 = vsub.s32 %v2001, %v2003
        %v2005 = vrot.slane %v1991, %v2004
        %v2006 = vcombine.low %v1974, %v1989
        %v2007 = vcombine.high %v1974, %v1989
        %v2009 = vunpack.c.l.s4 1934713408
        %v2010 = vunpack.c.0.s8 %v2009
        %v2011 = vlaneseq
        %v2012 = vshrl.u32 %v2011, 7
        %v2013 = vsub.s32 %v2010, %v2012
        %v2014 = vrot.slane %v2006, %v2013
        %v2016 = vunpack.c.l.s4 1934713408
        %v2017 = vunpack.c.0.s8 %v2016
        %v2018 = vlaneseq
        %v2019 = vshrl.u32 %v2018, 7
        %v2020 = vsub.s32 %v2017, %v2019
        %v2021 = vrot.slane %v2007, %v2020
        %v2022 = vcombine.high %v1998, 0
        %v2023 = vcombine.high %v2005, 0
        %v2024 = vcombine.high %v2014, 0
        %v2025 = vcombine.high %v2021, 0
        %v2026 = vcombine.high %v1934, %v822
        %v2028 = vunpack.c.l.s4 1983009808
        %v2029 = vunpack.c.0.s8 %v2028
        %v2030 = vlaneseq
        %v2031 = vshrl.u32 %v2030, 7
        %v2032 = vsub.s32 %v2029, %v2031
        %v2033 = vrot.slane %v1934, %v2032
        %v2035 = vunpack.c.l.s4 1983009808
        %v2036 = vunpack.c.0.s8 %v2035
        %v2037 = vlaneseq
        %v2038 = vshrl.u32 %v2037, 7
        %v2039 = vsub.s32 %v2036, %v2038
        %v2040 = vrot.slane %v2026, %v2039
        %v2041 = vcombine.high %v1942, %v822
        %v2043 = vunpack.c.l.s4 1983009808
        %v2044 = vunpack.c.0.s8 %v2043
        %v2045 = vlaneseq
        %v2046 = vshrl.u32 %v2045, 7
        %v2047 = vsub.s32 %v2044, %v2046
        %v2048 = vrot.slane %v1942, %v2047
        %v2050 = vunpack.c.l.s4 1983009808
        %v2051 = vunpack.c.0.s8 %v2050
        %v2052 = vlaneseq
        %v2053 = vshrl.u32 %v2052, 7
        %v2054 = vsub.s32 %v2051, %v2053
        %v2055 = vrot.slane %v2041, %v2054
        %v2056 = vcombine.low %v2033, %v2048
        %v2057 = vcombine.high %v2033, %v2048
        %v2059 = vunpack.c.l.s4 1934713408
        %v2060 = vunpack.c.0.s8 %v2059
        %v2061 = vlaneseq
        %v2062 = vshrl.u32 %v2061, 7
        %v2063 = vsub.s32 %v2060, %v2062
        %v2064 = vrot.slane %v2056, %v2063
        %v2066 = vunpack.c.l.s4 1934713408
        %v2067 = vunpack.c.0.s8 %v2066
        %v2068 = vlaneseq
        %v2069 = vshrl.u32 %v2068, 7
        %v2070 = vsub.s32 %v2067, %v2069
        %v2071 = vrot.slane %v2057, %v2070
        %v2072 = vcombine.low %v2040, %v2055
        %v2073 = vcombine.high %v2040, %v2055
        %v2075 = vunpack.c.l.s4 1934713408
        %v2076 = vunpack.c.0.s8 %v2075
        %v2077 = vlaneseq
        %v2078 = vshrl.u32 %v2077, 7
        %v2079 = vsub.s32 %v2076, %v2078
        %v2080 = vrot.slane %v2072, %v2079
        %v2082 = vunpack.c.l.s4 1934713408
        %v2083 = vunpack.c.0.s8 %v2082
        %v2084 = vlaneseq
        %v2085 = vshrl.u32 %v2084, 7
        %v2086 = vsub.s32 %v2083, %v2085
        %v2087 = vrot.slane %v2073, %v2086
        %v2088 = vcombine.high %v2064, 0
        %v2089 = vcombine.high %v2071, 0
        %v2090 = vcombine.high %v2080, 0
        %v2091 = vcombine.high %v2087, 0
        %v2092 = vcombine.high %v1946, %v819
        %v2094 = vunpack.c.l.s4 1983009808
        %v2095 = vunpack.c.0.s8 %v2094
        %v2096 = vlaneseq
        %v2097 = vshrl.u32 %v2096, 7
        %v2098 = vsub.s32 %v2095, %v2097
        %v2099 = vrot.slane %v1946, %v2098
        %v2101 = vunpack.c.l.s4 1983009808
        %v2102 = vunpack.c.0.s8 %v2101
        %v2103 = vlaneseq
        %v2104 = vshrl.u32 %v2103, 7
        %v2105 = vsub.s32 %v2102, %v2104
        %v2106 = vrot.slane %v2092, %v2105
        %v2107 = vcombine.high %v1954, %v819
        %v2109 = vunpack.c.l.s4 1983009808
        %v2110 = vunpack.c.0.s8 %v2109
        %v2111 = vlaneseq
        %v2112 = vshrl.u32 %v2111, 7
        %v2113 = vsub.s32 %v2110, %v2112
        %v2114 = vrot.slane %v1954, %v2113
        %v2116 = vunpack.c.l.s4 1983009808
        %v2117 = vunpack.c.0.s8 %v2116
        %v2118 = vlaneseq
        %v2119 = vshrl.u32 %v2118, 7
        %v2120 = vsub.s32 %v2117, %v2119
        %v2121 = vrot.slane %v2107, %v2120
        %v2122 = vcombine.low %v2099, %v2114
        %v2123 = vcombine.high %v2099, %v2114
        %v2125 = vunpack.c.l.s4 1934713408
        %v2126 = vunpack.c.0.s8 %v2125
        %v2127 = vlaneseq
        %v2128 = vshrl.u32 %v2127, 7
        %v2129 = vsub.s32 %v2126, %v2128
        %v2130 = vrot.slane %v2122, %v2129
        %v2132 = vunpack.c.l.s4 1934713408
        %v2133 = vunpack.c.0.s8 %v2132
        %v2134 = vlaneseq
        %v2135 = vshrl.u32 %v2134, 7
        %v2136 = vsub.s32 %v2133, %v2135
        %v2137 = vrot.slane %v2123, %v2136
        %v2138 = vcombine.low %v2106, %v2121
        %v2139 = vcombine.high %v2106, %v2121
        %v2141 = vunpack.c.l.s4 1934713408
        %v2142 = vunpack.c.0.s8 %v2141
        %v2143 = vlaneseq
        %v2144 = vshrl.u32 %v2143, 7
        %v2145 = vsub.s32 %v2142, %v2144
        %v2146 = vrot.slane %v2138, %v2145
        %v2148 = vunpack.c.l.s4 1934713408
        %v2149 = vunpack.c.0.s8 %v2148
        %v2150 = vlaneseq
        %v2151 = vshrl.u32 %v2150, 7
        %v2152 = vsub.s32 %v2149, %v2151
        %v2153 = vrot.slane %v2139, %v2152
        %v2154 = vcombine.high %v2130, 0
        %v2155 = vcombine.high %v2137, 0
        %v2156 = vcombine.high %v2146, 0
        %v2157 = vcombine.high %v2153, 0
        %v2158 = vcombine.high %v1950, %v822
        %v2160 = vunpack.c.l.s4 1983009808
        %v2161 = vunpack.c.0.s8 %v2160
        %v2162 = vlaneseq
        %v2163 = vshrl.u32 %v2162, 7
        %v2164 = vsub.s32 %v2161, %v2163
        %v2165 = vrot.slane %v1950, %v2164
        %v2167 = vunpack.c.l.s4 1983009808
        %v2168 = vunpack.c.0.s8 %v2167
        %v2169 = vlaneseq
        %v2170 = vshrl.u32 %v2169, 7
        %v2171 = vsub.s32 %v2168, %v2170
        %v2172 = vrot.slane %v2158, %v2171
        %v2173 = vcombine.high %v1958, %v822
        %v2175 = vunpack.c.l.s4 1983009808
        %v2176 = vunpack.c.0.s8 %v2175
        %v2177 = vlaneseq
        %v2178 = vshrl.u32 %v2177, 7
        %v2179 = vsub.s32 %v2176, %v2178
        %v2180 = vrot.slane %v1958, %v2179
        %v2182 = vunpack.c.l.s4 1983009808
        %v2183 = vunpack.c.0.s8 %v2182
        %v2184 = vlaneseq
        %v2185 = vshrl.u32 %v2184, 7
        %v2186 = vsub.s32 %v2183, %v2185
        %v2187 = vrot.slane %v2173, %v2186
        %v2188 = vcombine.low %v2165, %v2180
        %v2189 = vcombine.high %v2165, %v2180
        %v2191 = vunpack.c.l.s4 1934713408
        %v2192 = vunpack.c.0.s8 %v2191
        %v2193 = vlaneseq
        %v2194 = vshrl.u32 %v2193, 7
        %v2195 = vsub.s32 %v2192, %v2194
        %v2196 = vrot.slane %v2188, %v2195
        %v2198 = vunpack.c.l.s4 1934713408
        %v2199 = vunpack.c.0.s8 %v2198
        %v2200 = vlaneseq
        %v2201 = vshrl.u32 %v2200, 7
        %v2202 = vsub.s32 %v2199, %v2201
        %v2203 = vrot.slane %v2189, %v2202
        %v2204 = vcombine.low %v2172, %v2187
        %v2205 = vcombine.high %v2172, %v2187
        %v2207 = vunpack.c.l.s4 1934713408
        %v2208 = vunpack.c.0.s8 %v2207
        %v2209 = vlaneseq
        %v2210 = vshrl.u32 %v2209, 7
        %v2211 = vsub.s32 %v2208, %v2210
        %v2212 = vrot.slane %v2204, %v2211
        %v2214 = vunpack.c.l.s4 1934713408
        %v2215 = vunpack.c.0.s8 %v2214
        %v2216 = vlaneseq
        %v2217 = vshrl.u32 %v2216, 7
        %v2218 = vsub.s32 %v2215, %v2217
        %v2219 = vrot.slane %v2205, %v2218
        %v2220 = vcombine.high %v2196, 0
        %v2221 = vcombine.high %v2203, 0
        %v2222 = vcombine.high %v2212, 0
        %v2223 = vcombine.high %v2219, 0
        %v2224 = vcombine.low %v1998, %v2005
        %v2226 = vunpack.c.l.s4 1983009808
        %v2227 = vunpack.c.0.s8 %v2226
        %v2228 = vlaneseq
        %v2229 = vshrl.u32 %v2228, 7
        %v2230 = vsub.s32 %v2227, %v2229
        %v2231 = vrot.slane %v2224, %v2230
        %v2232 = vcombine.low %v2022, %v2023
        %v2234 = vunpack.c.l.s4 1983009808
        %v2235 = vunpack.c.0.s8 %v2234
        %v2236 = vlaneseq
        %v2237 = vshrl.u32 %v2236, 7
        %v2238 = vsub.s32 %v2235, %v2237
        %v2239 = vrot.slane %v2232, %v2238
        %v2240 = vcombine.low %v2231, %v2239
        %v2242 = vunpack.c.l.s4 1934713408
        %v2243 = vunpack.c.0.s8 %v2242
        %v2244 = vlaneseq
        %v2245 = vshrl.u32 %v2244, 7
        %v2246 = vsub.s32 %v2243, %v2245
        %v2247 = vrot.slane %v2240, %v2246
        %v2248 = vcombine.high %v2247, 0
        %v2249 = vcombine.low %v2064, %v2071
        %v2251 = vunpack.c.l.s4 1983009808
        %v2252 = vunpack.c.0.s8 %v2251
        %v2253 = vlaneseq
        %v2254 = vshrl.u32 %v2253, 7
        %v2255 = vsub.s32 %v2252, %v2254
        %v2256 = vrot.slane %v2249, %v2255
        %v2257 = vcombine.low %v2088, %v2089
        %v2259 = vunpack.c.l.s4 1983009808
        %v2260 = vunpack.c.0.s8 %v2259
        %v2261 = vlaneseq
        %v2262 = vshrl.u32 %v2261, 7
        %v2263 = vsub.s32 %v2260, %v2262
        %v2264 = vrot.slane %v2257, %v2263
        %v2265 = vcombine.low %v2256, %v2264
        %v2267 = vunpack.c.l.s4 1934713408
        %v2268 = vunpack.c.0.s8 %v2267
        %v2269 = vlaneseq
        %v2270 = vshrl.u32 %v2269, 7
        %v2271 = vsub.s32 %v2268, %v2270
        %v2272 = vrot.slane %v2265, %v2271
        %v2273 = vcombine.high %v2272, 0
        %v2274 = vcombine.low %v2014, %v2021
        %v2276 = vunpack.c.l.s4 1983009808
        %v2277 = vunpack.c.0.s8 %v2276
        %v2278 = vlaneseq
        %v2279 = vshrl.u32 %v2278, 7
        %v2280 = vsub.s32 %v2277, %v2279
        %v2281 = vrot.slane %v2274, %v2280
        %v2282 = vcombine.low %v2024, %v2025
        %v2284 = vunpack.c.l.s4 1983009808
        %v2285 = vunpack.c.0.s8 %v2284
        %v2286 = vlaneseq
        %v2287 = vshrl.u32 %v2286, 7
        %v2288 = vsub.s32 %v2285, %v2287
        %v2289 = vrot.slane %v2282, %v2288
        %v2290 = vcombine.low %v2281, %v2289
        %v2292 = vunpack.c.l.s4 1934713408
        %v2293 = vunpack.c.0.s8 %v2292
        %v2294 = vlaneseq
        %v2295 = vshrl.u32 %v2294, 7
        %v2296 = vsub.s32 %v2293, %v2295
        %v2297 = vrot.slane %v2290, %v2296
        %v2298 = vcombine.high %v2297, 0
        %v2299 = vcombine.low %v2080, %v2087
        %v2301 = vunpack.c.l.s4 1983009808
        %v2302 = vunpack.c.0.s8 %v2301
        %v2303 = vlaneseq
        %v2304 = vshrl.u32 %v2303, 7
        %v2305 = vsub.s32 %v2302, %v2304
        %v2306 = vrot.slane %v2299, %v2305
        %v2307 = vcombine.low %v2090, %v2091
        %v2309 = vunpack.c.l.s4 1983009808
        %v2310 = vunpack.c.0.s8 %v2309
        %v2311 = vlaneseq
        %v2312 = vshrl.u32 %v2311, 7
        %v2313 = vsub.s32 %v2310, %v2312
        %v2314 = vrot.slane %v2307, %v2313
        %v2315 = vcombine.low %v2306, %v2314
        %v2317 = vunpack.c.l.s4 1934713408
        %v2318 = vunpack.c.0.s8 %v2317
        %v2319 = vlaneseq
        %v2320 = vshrl.u32 %v2319, 7
        %v2321 = vsub.s32 %v2318, %v2320
        %v2322 = vrot.slane %v2315, %v2321
        %v2323 = vcombine.high %v2322, 0
        %v2324 = vcombine.low %v2130, %v2137
        %v2326 = vunpack.c.l.s4 1983009808
        %v2327 = vunpack.c.0.s8 %v2326
        %v2328 = vlaneseq
        %v2329 = vshrl.u32 %v2328, 7
        %v2330 = vsub.s32 %v2327, %v2329
        %v2331 = vrot.slane %v2324, %v2330
        %v2332 = vcombine.low %v2154, %v2155
        %v2334 = vunpack.c.l.s4 1983009808
        %v2335 = vunpack.c.0.s8 %v2334
        %v2336 = vlaneseq
        %v2337 = vshrl.u32 %v2336, 7
        %v2338 = vsub.s32 %v2335, %v2337
        %v2339 = vrot.slane %v2332, %v2338
        %v2340 = vcombine.low %v2331, %v2339
        %v2342 = vunpack.c.l.s4 1934713408
        %v2343 = vunpack.c.0.s8 %v2342
        %v2344 = vlaneseq
        %v2345 = vshrl.u32 %v2344, 7
        %v2346 = vsub.s32 %v2343, %v2345
        %v2347 = vrot.slane %v2340, %v2346
        %v2348 = vcombine.high %v2347, 0
        %v2349 = vcombine.low %v2196, %v2203
        %v2351 = vunpack.c.l.s4 1983009808
        %v2352 = vunpack.c.0.s8 %v2351
        %v2353 = vlaneseq
        %v2354 = vshrl.u32 %v2353, 7
        %v2355 = vsub.s32 %v2352, %v2354
        %v2356 = vrot.slane %v2349, %v2355
        %v2357 = vcombine.low %v2220, %v2221
        %v2359 = vunpack.c.l.s4 1983009808
        %v2360 = vunpack.c.0.s8 %v2359
        %v2361 = vlaneseq
        %v2362 = vshrl.u32 %v2361, 7
        %v2363 = vsub.s32 %v2360, %v2362
        %v2364 = vrot.slane %v2357, %v2363
        %v2365 = vcombine.low %v2356, %v2364
        %v2367 = vunpack.c.l.s4 1934713408
        %v2368 = vunpack.c.0.s8 %v2367
        %v2369 = vlaneseq
        %v2370 = vshrl.u32 %v2369, 7
        %v2371 = vsub.s32 %v2368, %v2370
        %v2372 = vrot.slane %v2365, %v2371
        %v2373 = vcombine.high %v2372, 0
        %v2374 = vcombine.low %v2146, %v2153
        %v2376 = vunpack.c.l.s4 1983009808
        %v2377 = vunpack.c.0.s8 %v2376
        %v2378 = vlaneseq
        %v2379 = vshrl.u32 %v2378, 7
        %v2380 = vsub.s32 %v2377, %v2379
        %v2381 = vrot.slane %v2374, %v2380
        %v2382 = vcombine.low %v2156, %v2157
        %v2384 = vunpack.c.l.s4 1983009808
        %v2385 = vunpack.c.0.s8 %v2384
        %v2386 = vlaneseq
        %v2387 = vshrl.u32 %v2386, 7
        %v2388 = vsub.s32 %v2385, %v2387
        %v2389 = vrot.slane %v2382, %v2388
        %v2390 = vcombine.low %v2381, %v2389
        %v2392 = vunpack.c.l.s4 1934713408
        %v2393 = vunpack.c.0.s8 %v2392
        %v2394 = vlaneseq
        %v2395 = vshrl.u32 %v2394, 7
        %v2396 = vsub.s32 %v2393, %v2395
        %v2397 = vrot.slane %v2390, %v2396
        %v2398 = vcombine.high %v2397, 0
        %v2399 = vcombine.low %v2212, %v2219
        %v2401 = vunpack.c.l.s4 1983009808
        %v2402 = vunpack.c.0.s8 %v2401
        %v2403 = vlaneseq
        %v2404 = vshrl.u32 %v2403, 7
        %v2405 = vsub.s32 %v2402, %v2404
        %v2406 = vrot.slane %v2399, %v2405
        %v2407 = vcombine.low %v2222, %v2223
        %v2409 = vunpack.c.l.s4 1983009808
        %v2410 = vunpack.c.0.s8 %v2409
        %v2411 = vlaneseq
        %v2412 = vshrl.u32 %v2411, 7
        %v2413 = vsub.s32 %v2410, %v2412
        %v2414 = vrot.slane %v2407, %v2413
        %v2415 = vcombine.low %v2406, %v2414
        %v2417 = vunpack.c.l.s4 1934713408
        %v2418 = vunpack.c.0.s8 %v2417
        %v2419 = vlaneseq
        %v2420 = vshrl.u32 %v2419, 7
        %v2421 = vsub.s32 %v2418, %v2420
        %v2422 = vrot.slane %v2415, %v2421
        %v2423 = vcombine.high %v2422, 0
        %v2426 = vpack.i.b16 %v2272, %v2247
        %v2427 = vshrl.u32 %v2247, 16
        %v2428 = vshrl.u32 %v2272, 16
        %v2429 = vpack.i.b16 %v2428, %v2427
        %v2432 = vpack.i.b16 %v2273, %v2248
        %v2433 = vshrl.u32 %v2248, 16
        %v2434 = vshrl.u32 %v2273, 16
        %v2435 = vpack.i.b16 %v2434, %v2433
        %v2438 = vpack.i.b16 %v2322, %v2297
        %v2439 = vshrl.u32 %v2297, 16
        %v2440 = vshrl.u32 %v2322, 16
        %v2441 = vpack.i.b16 %v2440, %v2439
        %v2444 = vpack.i.b16 %v2323, %v2298
        %v2445 = vshrl.u32 %v2298, 16
        %v2446 = vshrl.u32 %v2323, 16
        %v2447 = vpack.i.b16 %v2446, %v2445
        %v2450 = vpack.i.b16 %v2372, %v2347
        %v2451 = vshrl.u32 %v2347, 16
        %v2452 = vshrl.u32 %v2372, 16
        %v2453 = vpack.i.b16 %v2452, %v2451
        %v2456 = vpack.i.b16 %v2373, %v2348
        %v2457 = vshrl.u32 %v2348, 16
        %v2458 = vshrl.u32 %v2373, 16
        %v2459 = vpack.i.b16 %v2458, %v2457
        %v2462 = vpack.i.b16 %v2422, %v2397
        %v2463 = vshrl.u32 %v2397, 16
        %v2464 = vshrl.u32 %v2422, 16
        %v2465 = vpack.i.b16 %v2464, %v2463
        %v2468 = vpack.i.b16 %v2423, %v2398
        %v2469 = vshrl.u32 %v2398, 16
        %v2470 = vshrl.u32 %v2423, 16
        %v2471 = vpack.i.b16 %v2470, %v2469
        %v2472 = vld [vmem:[%s640] sm:$0x1]
        %v2473 = vld [vmem:[%s640 + $0x1] sm:$0x1]
        %v2474 = vld [vmem:[%s640 + $0x2] sm:$0x1]
        %v2475 = vld [vmem:[%s640 + $0x3] sm:$0x1]
        %v2476 = vsub.f32 1.0, %v2472
        %v2477 = vsub.f32 1.0, %v2473
        %v2478 = vsub.f32 1.0, %v2474
        %v2479 = vsub.f32 1.0, %v2475
        %v2480 = vmul.f32 %v2476, -10000.0
        %v2481 = vmul.f32 %v2477, -10000.0
        %v2482 = vmul.f32 %v2478, -10000.0
        %v2483 = vmul.f32 %v2479, -10000.0
        %vm2484 = vcmask 64512
        %v2486 = vsel %vm2484, %v1306, 0
        %v2489 = vsel %vm2484, %v1866, 0
        %2491 = vmatprep.subr.bf16.mxu0 0
        %2492 = vmatpush1.bf16.xpose.msra.mxu0 %v2489
        %2493 = vmatprep.subr.bf16.mxu0 0
        %2494 = vmatpush1.bf16.xpose.msra.mxu0 0
        %2495 = vmatprep.subr.bf16.mxu0 0
        %2496 = vmatpush1.bf16.xpose.msra.mxu0 0
        %2497 = vmatprep.subr.bf16.mxu0 0
        %2498 = vmatpush1.bf16.xpose.msra.mxu0 0
        %2499 = vmatprep.subr.bf16.mxu0 0
        %2500 = vmatpush1.bf16.xpose.msra.mxu0 0
        %2501 = vmatprep.subr.bf16.mxu0 0
        %2502 = vmatpush1.bf16.xpose.msra.mxu0 0
        %2503 = vmatprep.subr.bf16.mxu0 0
        %2504 = vmatpush1.bf16.xpose.msra.mxu0 0
        %2505 = vmatprep.subr.bf16.mxu0 0
        %2506 = vmatpush1.bf16.xpose.msra.mxu0 0
        %2507 = vmatprep.subr.bf16.mxu0 0
        %2508 = vmatpush1.bf16.xpose.msra.mxu0 0
        %2509 = vmatprep.subr.bf16.mxu0 0
        %2510 = vmatpush1.bf16.xpose.msra.mxu0 0
        %2511 = vmatprep.subr.bf16.mxu0 0
        %2512 = vmatpush1.bf16.xpose.msra.mxu0 0
        %2513 = vmatprep.subr.bf16.mxu0 0
        %2514 = vmatpush1.bf16.xpose.msra.mxu0 0
        %2515 = vmatprep.subr.bf16.mxu0 0
        %2516 = vmatpush1.bf16.xpose.msra.mxu0 0
        %2517 = vmatprep.subr.bf16.mxu0 0
        %2518 = vmatpush1.bf16.xpose.msra.mxu0 0
        %2519 = vmatprep.subr.bf16.mxu0 0
        %2520 = vmatpush1.bf16.xpose.msra.mxu0 0
        %2521 = vmatprep.subr.bf16.mxu0 0
        %2522 = vmatpush1.bf16.xpose.msra.mxu0 0
        %2523 = vmatprep.mubr.bf16.mxu0 0
        %2524 = vmatmul.mubr.bf16.gmra.mrb[0].mxu0 %v2486
        %v2525 = vpop.f32.mrb[0].mxu0
        %v2526 = vadd.f32 0.0, %v2525
        %v2527 = vpop.f32.mrb[0].mxu0
        %v2528 = vpop.f32.mrb[0].mxu0
        %v2529 = vpop.f32.mrb[0].mxu0
        %2530 = vdwg.mxu0
        %v2532 = vsel %vm2484, %v1309, 0
        %v2535 = vsel %vm2484, %v1869, 0
        %2537 = vmatprep.subr.bf16.mxu0 0
        %2538 = vmatpush1.bf16.xpose.msra.mxu0 %v2535
        %2539 = vmatprep.subr.bf16.mxu0 0
        %2540 = vmatpush1.bf16.xpose.msra.mxu0 0
        %2541 = vmatprep.subr.bf16.mxu0 0
        %2542 = vmatpush1.bf16.xpose.msra.mxu0 0
        %2543 = vmatprep.subr.bf16.mxu0 0
        %2544 = vmatpush1.bf16.xpose.msra.mxu0 0
        %2545 = vmatprep.subr.bf16.mxu0 0
        %2546 = vmatpush1.bf16.xpose.msra.mxu0 0
        %2547 = vmatprep.subr.bf16.mxu0 0
        %2548 = vmatpush1.bf16.xpose.msra.mxu0 0
        %2549 = vmatprep.subr.bf16.mxu0 0
        %2550 = vmatpush1.bf16.xpose.msra.mxu0 0
        %2551 = vmatprep.subr.bf16.mxu0 0
        %2552 = vmatpush1.bf16.xpose.msra.mxu0 0
        %2553 = vmatprep.subr.bf16.mxu0 0
        %2554 = vmatpush1.bf16.xpose.msra.mxu0 0
        %2555 = vmatprep.subr.bf16.mxu0 0
        %2556 = vmatpush1.bf16.xpose.msra.mxu0 0
        %2557 = vmatprep.subr.bf16.mxu0 0
        %2558 = vmatpush1.bf16.xpose.msra.mxu0 0
        %2559 = vmatprep.subr.bf16.mxu0 0
        %2560 = vmatpush1.bf16.xpose.msra.mxu0 0
        %2561 = vmatprep.subr.bf16.mxu0 0
        %2562 = vmatpush1.bf16.xpose.msra.mxu0 0
        %2563 = vmatprep.subr.bf16.mxu0 0
        %2564 = vmatpush1.bf16.xpose.msra.mxu0 0
        %2565 = vmatprep.subr.bf16.mxu0 0
        %2566 = vmatpush1.bf16.xpose.msra.mxu0 0
        %2567 = vmatprep.subr.bf16.mxu0 0
        %2568 = vmatpush1.bf16.xpose.msra.mxu0 0
        %2569 = vmatprep.mubr.bf16.mxu0 0
        %2570 = vmatmul.mubr.bf16.gmra.mrb[0].mxu0 %v2532
        %v2571 = vpop.f32.mrb[0].mxu0
        %v2572 = vadd.f32 0.0, %v2571
        %v2573 = vpop.f32.mrb[0].mxu0
        %v2574 = vpop.f32.mrb[0].mxu0
        %v2575 = vpop.f32.mrb[0].mxu0
        %2576 = vdwg.mxu0
        %v2578 = vsel %vm2484, %v1312, 0
        %v2581 = vsel %vm2484, %v1872, 0
        %2583 = vmatprep.subr.bf16.mxu0 0
        %2584 = vmatpush1.bf16.xpose.msra.mxu0 %v2581
        %2585 = vmatprep.subr.bf16.mxu0 0
        %2586 = vmatpush1.bf16.xpose.msra.mxu0 0
        %2587 = vmatprep.subr.bf16.mxu0 0
        %2588 = vmatpush1.bf16.xpose.msra.mxu0 0
        %2589 = vmatprep.subr.bf16.mxu0 0
        %2590 = vmatpush1.bf16.xpose.msra.mxu0 0
        %2591 = vmatprep.subr.bf16.mxu0 0
        %2592 = vmatpush1.bf16.xpose.msra.mxu0 0
        %2593 = vmatprep.subr.bf16.mxu0 0
        %2594 = vmatpush1.bf16.xpose.msra.mxu0 0
        %2595 = vmatprep.subr.bf16.mxu0 0
        %2596 = vmatpush1.bf16.xpose.msra.mxu0 0
        %2597 = vmatprep.subr.bf16.mxu0 0
        %2598 = vmatpush1.bf16.xpose.msra.mxu0 0
        %2599 = vmatprep.subr.bf16.mxu0 0
        %2600 = vmatpush1.bf16.xpose.msra.mxu0 0
        %2601 = vmatprep.subr.bf16.mxu0 0
        %2602 = vmatpush1.bf16.xpose.msra.mxu0 0
        %2603 = vmatprep.subr.bf16.mxu0 0
        %2604 = vmatpush1.bf16.xpose.msra.mxu0 0
        %2605 = vmatprep.subr.bf16.mxu0 0
        %2606 = vmatpush1.bf16.xpose.msra.mxu0 0
        %2607 = vmatprep.subr.bf16.mxu0 0
        %2608 = vmatpush1.bf16.xpose.msra.mxu0 0
        %2609 = vmatprep.subr.bf16.mxu0 0
        %2610 = vmatpush1.bf16.xpose.msra.mxu0 0
        %2611 = vmatprep.subr.bf16.mxu0 0
        %2612 = vmatpush1.bf16.xpose.msra.mxu0 0
        %2613 = vmatprep.subr.bf16.mxu0 0
        %2614 = vmatpush1.bf16.xpose.msra.mxu0 0
        %2615 = vmatprep.mubr.bf16.mxu0 0
        %2616 = vmatmul.mubr.bf16.gmra.mrb[0].mxu0 %v2578
        %v2617 = vpop.f32.mrb[0].mxu0
        %v2618 = vadd.f32 0.0, %v2617
        %v2619 = vpop.f32.mrb[0].mxu0
        %v2620 = vpop.f32.mrb[0].mxu0
        %v2621 = vpop.f32.mrb[0].mxu0
        %2622 = vdwg.mxu0
        %v2624 = vsel %vm2484, %v1315, 0
        %v2627 = vsel %vm2484, %v1875, 0
        %2629 = vmatprep.subr.bf16.mxu0 0
        %2630 = vmatpush1.bf16.xpose.msra.mxu0 %v2627
        %2631 = vmatprep.subr.bf16.mxu0 0
        %2632 = vmatpush1.bf16.xpose.msra.mxu0 0
        %2633 = vmatprep.subr.bf16.mxu0 0
        %2634 = vmatpush1.bf16.xpose.msra.mxu0 0
        %2635 = vmatprep.subr.bf16.mxu0 0
        %2636 = vmatpush1.bf16.xpose.msra.mxu0 0
        %2637 = vmatprep.subr.bf16.mxu0 0
        %2638 = vmatpush1.bf16.xpose.msra.mxu0 0
        %2639 = vmatprep.subr.bf16.mxu0 0
        %2640 = vmatpush1.bf16.xpose.msra.mxu0 0
        %2641 = vmatprep.subr.bf16.mxu0 0
        %2642 = vmatpush1.bf16.xpose.msra.mxu0 0
        %2643 = vmatprep.subr.bf16.mxu0 0
        %2644 = vmatpush1.bf16.xpose.msra.mxu0 0
        %2645 = vmatprep.subr.bf16.mxu0 0
        %2646 = vmatpush1.bf16.xpose.msra.mxu0 0
        %2647 = vmatprep.subr.bf16.mxu0 0
        %2648 = vmatpush1.bf16.xpose.msra.mxu0 0
        %2649 = vmatprep.subr.bf16.mxu0 0
        %2650 = vmatpush1.bf16.xpose.msra.mxu0 0
        %2651 = vmatprep.subr.bf16.mxu0 0
        %2652 = vmatpush1.bf16.xpose.msra.mxu0 0
        %2653 = vmatprep.subr.bf16.mxu0 0
        %2654 = vmatpush1.bf16.xpose.msra.mxu0 0
        %2655 = vmatprep.subr.bf16.mxu0 0
        %2656 = vmatpush1.bf16.xpose.msra.mxu0 0
        %2657 = vmatprep.subr.bf16.mxu0 0
        %2658 = vmatpush1.bf16.xpose.msra.mxu0 0
        %2659 = vmatprep.subr.bf16.mxu0 0
        %2660 = vmatpush1.bf16.xpose.msra.mxu0 0
        %2661 = vmatprep.mubr.bf16.mxu0 0
        %2662 = vmatmul.mubr.bf16.gmra.mrb[0].mxu0 %v2624
        %v2663 = vpop.f32.mrb[0].mxu0
        %v2664 = vadd.f32 0.0, %v2663
        %v2665 = vpop.f32.mrb[0].mxu0
        %v2666 = vpop.f32.mrb[0].mxu0
        %v2667 = vpop.f32.mrb[0].mxu0
        %2668 = vdwg.mxu0
        %v2670 = vsel %vm2484, %v1318, 0
        %v2673 = vsel %vm2484, %v1878, 0
        %2675 = vmatprep.subr.bf16.mxu0 0
        %2676 = vmatpush1.bf16.xpose.msra.mxu0 %v2673
        %2677 = vmatprep.subr.bf16.mxu0 0
        %2678 = vmatpush1.bf16.xpose.msra.mxu0 0
        %2679 = vmatprep.subr.bf16.mxu0 0
        %2680 = vmatpush1.bf16.xpose.msra.mxu0 0
        %2681 = vmatprep.subr.bf16.mxu0 0
        %2682 = vmatpush1.bf16.xpose.msra.mxu0 0
        %2683 = vmatprep.subr.bf16.mxu0 0
        %2684 = vmatpush1.bf16.xpose.msra.mxu0 0
        %2685 = vmatprep.subr.bf16.mxu0 0
        %2686 = vmatpush1.bf16.xpose.msra.mxu0 0
        %2687 = vmatprep.subr.bf16.mxu0 0
        %2688 = vmatpush1.bf16.xpose.msra.mxu0 0
        %2689 = vmatprep.subr.bf16.mxu0 0
        %2690 = vmatpush1.bf16.xpose.msra.mxu0 0
        %2691 = vmatprep.subr.bf16.mxu0 0
        %2692 = vmatpush1.bf16.xpose.msra.mxu0 0
        %2693 = vmatprep.subr.bf16.mxu0 0
        %2694 = vmatpush1.bf16.xpose.msra.mxu0 0
        %2695 = vmatprep.subr.bf16.mxu0 0
        %2696 = vmatpush1.bf16.xpose.msra.mxu0 0
        %2697 = vmatprep.subr.bf16.mxu0 0
        %2698 = vmatpush1.bf16.xpose.msra.mxu0 0
        %2699 = vmatprep.subr.bf16.mxu0 0
        %2700 = vmatpush1.bf16.xpose.msra.mxu0 0
        %2701 = vmatprep.subr.bf16.mxu0 0
        %2702 = vmatpush1.bf16.xpose.msra.mxu0 0
        %2703 = vmatprep.subr.bf16.mxu0 0
        %2704 = vmatpush1.bf16.xpose.msra.mxu0 0
        %2705 = vmatprep.subr.bf16.mxu0 0
        %2706 = vmatpush1.bf16.xpose.msra.mxu0 0
        %2707 = vmatprep.mubr.bf16.mxu0 0
        %2708 = vmatmul.mubr.bf16.gmra.mrb[0].mxu0 %v2670
        %v2709 = vpop.f32.mrb[0].mxu0
        %v2710 = vadd.f32 0.0, %v2709
        %v2711 = vpop.f32.mrb[0].mxu0
        %v2712 = vpop.f32.mrb[0].mxu0
        %v2713 = vpop.f32.mrb[0].mxu0
        %2714 = vdwg.mxu0
        %v2716 = vsel %vm2484, %v1321, 0
        %v2719 = vsel %vm2484, %v1881, 0
        %2721 = vmatprep.subr.bf16.mxu0 0
        %2722 = vmatpush1.bf16.xpose.msra.mxu0 %v2719
        %2723 = vmatprep.subr.bf16.mxu0 0
        %2724 = vmatpush1.bf16.xpose.msra.mxu0 0
        %2725 = vmatprep.subr.bf16.mxu0 0
        %2726 = vmatpush1.bf16.xpose.msra.mxu0 0
        %2727 = vmatprep.subr.bf16.mxu0 0
        %2728 = vmatpush1.bf16.xpose.msra.mxu0 0
        %2729 = vmatprep.subr.bf16.mxu0 0
        %2730 = vmatpush1.bf16.xpose.msra.mxu0 0
        %2731 = vmatprep.subr.bf16.mxu0 0
        %2732 = vmatpush1.bf16.xpose.msra.mxu0 0
        %2733 = vmatprep.subr.bf16.mxu0 0
        %2734 = vmatpush1.bf16.xpose.msra.mxu0 0
        %2735 = vmatprep.subr.bf16.mxu0 0
        %2736 = vmatpush1.bf16.xpose.msra.mxu0 0
        %2737 = vmatprep.subr.bf16.mxu0 0
        %2738 = vmatpush1.bf16.xpose.msra.mxu0 0
        %2739 = vmatprep.subr.bf16.mxu0 0
        %2740 = vmatpush1.bf16.xpose.msra.mxu0 0
        %2741 = vmatprep.subr.bf16.mxu0 0
        %2742 = vmatpush1.bf16.xpose.msra.mxu0 0
        %2743 = vmatprep.subr.bf16.mxu0 0
        %2744 = vmatpush1.bf16.xpose.msra.mxu0 0
        %2745 = vmatprep.subr.bf16.mxu0 0
        %2746 = vmatpush1.bf16.xpose.msra.mxu0 0
        %2747 = vmatprep.subr.bf16.mxu0 0
        %2748 = vmatpush1.bf16.xpose.msra.mxu0 0
        %2749 = vmatprep.subr.bf16.mxu0 0
        %2750 = vmatpush1.bf16.xpose.msra.mxu0 0
        %2751 = vmatprep.subr.bf16.mxu0 0
        %2752 = vmatpush1.bf16.xpose.msra.mxu0 0
        %2753 = vmatprep.mubr.bf16.mxu0 0
        %2754 = vmatmul.mubr.bf16.gmra.mrb[0].mxu0 %v2716
        %v2755 = vpop.f32.mrb[0].mxu0
        %v2756 = vadd.f32 0.0, %v2755
        %v2757 = vpop.f32.mrb[0].mxu0
        %v2758 = vpop.f32.mrb[0].mxu0
        %v2759 = vpop.f32.mrb[0].mxu0
        %2760 = vdwg.mxu0
        %v2762 = vsel %vm2484, %v1324, 0
        %v2765 = vsel %vm2484, %v1884, 0
        %2767 = vmatprep.subr.bf16.mxu0 0
        %2768 = vmatpush1.bf16.xpose.msra.mxu0 %v2765
        %2769 = vmatprep.subr.bf16.mxu0 0
        %2770 = vmatpush1.bf16.xpose.msra.mxu0 0
        %2771 = vmatprep.subr.bf16.mxu0 0
        %2772 = vmatpush1.bf16.xpose.msra.mxu0 0
        %2773 = vmatprep.subr.bf16.mxu0 0
        %2774 = vmatpush1.bf16.xpose.msra.mxu0 0
        %2775 = vmatprep.subr.bf16.mxu0 0
        %2776 = vmatpush1.bf16.xpose.msra.mxu0 0
        %2777 = vmatprep.subr.bf16.mxu0 0
        %2778 = vmatpush1.bf16.xpose.msra.mxu0 0
        %2779 = vmatprep.subr.bf16.mxu0 0
        %2780 = vmatpush1.bf16.xpose.msra.mxu0 0
        %2781 = vmatprep.subr.bf16.mxu0 0
        %2782 = vmatpush1.bf16.xpose.msra.mxu0 0
        %2783 = vmatprep.subr.bf16.mxu0 0
        %2784 = vmatpush1.bf16.xpose.msra.mxu0 0
        %2785 = vmatprep.subr.bf16.mxu0 0
        %2786 = vmatpush1.bf16.xpose.msra.mxu0 0
        %2787 = vmatprep.subr.bf16.mxu0 0
        %2788 = vmatpush1.bf16.xpose.msra.mxu0 0
        %2789 = vmatprep.subr.bf16.mxu0 0
        %2790 = vmatpush1.bf16.xpose.msra.mxu0 0
        %2791 = vmatprep.subr.bf16.mxu0 0
        %2792 = vmatpush1.bf16.xpose.msra.mxu0 0
        %2793 = vmatprep.subr.bf16.mxu0 0
        %2794 = vmatpush1.bf16.xpose.msra.mxu0 0
        %2795 = vmatprep.subr.bf16.mxu0 0
        %2796 = vmatpush1.bf16.xpose.msra.mxu0 0
        %2797 = vmatprep.subr.bf16.mxu0 0
        %2798 = vmatpush1.bf16.xpose.msra.mxu0 0
        %2799 = vmatprep.mubr.bf16.mxu0 0
        %2800 = vmatmul.mubr.bf16.gmra.mrb[0].mxu0 %v2762
        %v2801 = vpop.f32.mrb[0].mxu0
        %v2802 = vadd.f32 0.0, %v2801
        %v2803 = vpop.f32.mrb[0].mxu0
        %v2804 = vpop.f32.mrb[0].mxu0
        %v2805 = vpop.f32.mrb[0].mxu0
        %2806 = vdwg.mxu0
        %v2808 = vsel %vm2484, %v1327, 0
        %v2811 = vsel %vm2484, %v1887, 0
        %2813 = vmatprep.subr.bf16.mxu0 0
        %2814 = vmatpush1.bf16.xpose.msra.mxu0 %v2811
        %2815 = vmatprep.subr.bf16.mxu0 0
        %2816 = vmatpush1.bf16.xpose.msra.mxu0 0
        %2817 = vmatprep.subr.bf16.mxu0 0
        %2818 = vmatpush1.bf16.xpose.msra.mxu0 0
        %2819 = vmatprep.subr.bf16.mxu0 0
        %2820 = vmatpush1.bf16.xpose.msra.mxu0 0
        %2821 = vmatprep.subr.bf16.mxu0 0
        %2822 = vmatpush1.bf16.xpose.msra.mxu0 0
        %2823 = vmatprep.subr.bf16.mxu0 0
        %2824 = vmatpush1.bf16.xpose.msra.mxu0 0
        %2825 = vmatprep.subr.bf16.mxu0 0
        %2826 = vmatpush1.bf16.xpose.msra.mxu0 0
        %2827 = vmatprep.subr.bf16.mxu0 0
        %2828 = vmatpush1.bf16.xpose.msra.mxu0 0
        %2829 = vmatprep.subr.bf16.mxu0 0
        %2830 = vmatpush1.bf16.xpose.msra.mxu0 0
        %2831 = vmatprep.subr.bf16.mxu0 0
        %2832 = vmatpush1.bf16.xpose.msra.mxu0 0
        %2833 = vmatprep.subr.bf16.mxu0 0
        %2834 = vmatpush1.bf16.xpose.msra.mxu0 0
        %2835 = vmatprep.subr.bf16.mxu0 0
        %2836 = vmatpush1.bf16.xpose.msra.mxu0 0
        %2837 = vmatprep.subr.bf16.mxu0 0
        %2838 = vmatpush1.bf16.xpose.msra.mxu0 0
        %2839 = vmatprep.subr.bf16.mxu0 0
        %2840 = vmatpush1.bf16.xpose.msra.mxu0 0
        %2841 = vmatprep.subr.bf16.mxu0 0
        %2842 = vmatpush1.bf16.xpose.msra.mxu0 0
        %2843 = vmatprep.subr.bf16.mxu0 0
        %2844 = vmatpush1.bf16.xpose.msra.mxu0 0
        %2845 = vmatprep.mubr.bf16.mxu0 0
        %2846 = vmatmul.mubr.bf16.gmra.mrb[0].mxu0 %v2808
        %v2847 = vpop.f32.mrb[0].mxu0
        %v2848 = vadd.f32 0.0, %v2847
        %v2849 = vpop.f32.mrb[0].mxu0
        %v2850 = vpop.f32.mrb[0].mxu0
        %v2851 = vpop.f32.mrb[0].mxu0
        %2852 = vdwg.mxu0
        %v2854 = vsel %vm2484, %v1330, 0
        %v2857 = vsel %vm2484, %v1890, 0
        %2859 = vmatprep.subr.bf16.mxu0 0
        %2860 = vmatpush1.bf16.xpose.msra.mxu0 %v2857
        %2861 = vmatprep.subr.bf16.mxu0 0
        %2862 = vmatpush1.bf16.xpose.msra.mxu0 0
        %2863 = vmatprep.subr.bf16.mxu0 0
        %2864 = vmatpush1.bf16.xpose.msra.mxu0 0
        %2865 = vmatprep.subr.bf16.mxu0 0
        %2866 = vmatpush1.bf16.xpose.msra.mxu0 0
        %2867 = vmatprep.subr.bf16.mxu0 0
        %2868 = vmatpush1.bf16.xpose.msra.mxu0 0
        %2869 = vmatprep.subr.bf16.mxu0 0
        %2870 = vmatpush1.bf16.xpose.msra.mxu0 0
        %2871 = vmatprep.subr.bf16.mxu0 0
        %2872 = vmatpush1.bf16.xpose.msra.mxu0 0
        %2873 = vmatprep.subr.bf16.mxu0 0
        %2874 = vmatpush1.bf16.xpose.msra.mxu0 0
        %2875 = vmatprep.subr.bf16.mxu0 0
        %2876 = vmatpush1.bf16.xpose.msra.mxu0 0
        %2877 = vmatprep.subr.bf16.mxu0 0
        %2878 = vmatpush1.bf16.xpose.msra.mxu0 0
        %2879 = vmatprep.subr.bf16.mxu0 0
        %2880 = vmatpush1.bf16.xpose.msra.mxu0 0
        %2881 = vmatprep.subr.bf16.mxu0 0
        %2882 = vmatpush1.bf16.xpose.msra.mxu0 0
        %2883 = vmatprep.subr.bf16.mxu0 0
        %2884 = vmatpush1.bf16.xpose.msra.mxu0 0
        %2885 = vmatprep.subr.bf16.mxu0 0
        %2886 = vmatpush1.bf16.xpose.msra.mxu0 0
        %2887 = vmatprep.subr.bf16.mxu0 0
        %2888 = vmatpush1.bf16.xpose.msra.mxu0 0
        %2889 = vmatprep.subr.bf16.mxu0 0
        %2890 = vmatpush1.bf16.xpose.msra.mxu0 0
        %2891 = vmatprep.mubr.bf16.mxu0 0
        %2892 = vmatmul.mubr.bf16.gmra.mrb[0].mxu0 %v2854
        %v2893 = vpop.f32.mrb[0].mxu0
        %v2894 = vadd.f32 0.0, %v2893
        %v2895 = vpop.f32.mrb[0].mxu0
        %v2896 = vpop.f32.mrb[0].mxu0
        %v2897 = vpop.f32.mrb[0].mxu0
        %2898 = vdwg.mxu0
        %v2900 = vsel %vm2484, %v1333, 0
        %v2903 = vsel %vm2484, %v1893, 0
        %2905 = vmatprep.subr.bf16.mxu0 0
        %2906 = vmatpush1.bf16.xpose.msra.mxu0 %v2903
        %2907 = vmatprep.subr.bf16.mxu0 0
        %2908 = vmatpush1.bf16.xpose.msra.mxu0 0
        %2909 = vmatprep.subr.bf16.mxu0 0
        %2910 = vmatpush1.bf16.xpose.msra.mxu0 0
        %2911 = vmatprep.subr.bf16.mxu0 0
        %2912 = vmatpush1.bf16.xpose.msra.mxu0 0
        %2913 = vmatprep.subr.bf16.mxu0 0
        %2914 = vmatpush1.bf16.xpose.msra.mxu0 0
        %2915 = vmatprep.subr.bf16.mxu0 0
        %2916 = vmatpush1.bf16.xpose.msra.mxu0 0
        %2917 = vmatprep.subr.bf16.mxu0 0
        %2918 = vmatpush1.bf16.xpose.msra.mxu0 0
        %2919 = vmatprep.subr.bf16.mxu0 0
        %2920 = vmatpush1.bf16.xpose.msra.mxu0 0
        %2921 = vmatprep.subr.bf16.mxu0 0
        %2922 = vmatpush1.bf16.xpose.msra.mxu0 0
        %2923 = vmatprep.subr.bf16.mxu0 0
        %2924 = vmatpush1.bf16.xpose.msra.mxu0 0
        %2925 = vmatprep.subr.bf16.mxu0 0
        %2926 = vmatpush1.bf16.xpose.msra.mxu0 0
        %2927 = vmatprep.subr.bf16.mxu0 0
        %2928 = vmatpush1.bf16.xpose.msra.mxu0 0
        %2929 = vmatprep.subr.bf16.mxu0 0
        %2930 = vmatpush1.bf16.xpose.msra.mxu0 0
        %2931 = vmatprep.subr.bf16.mxu0 0
        %2932 = vmatpush1.bf16.xpose.msra.mxu0 0
        %2933 = vmatprep.subr.bf16.mxu0 0
        %2934 = vmatpush1.bf16.xpose.msra.mxu0 0
        %2935 = vmatprep.subr.bf16.mxu0 0
        %2936 = vmatpush1.bf16.xpose.msra.mxu0 0
        %2937 = vmatprep.mubr.bf16.mxu0 0
        %2938 = vmatmul.mubr.bf16.gmra.mrb[0].mxu0 %v2900
        %v2939 = vpop.f32.mrb[0].mxu0
        %v2940 = vadd.f32 0.0, %v2939
        %v2941 = vpop.f32.mrb[0].mxu0
        %v2942 = vpop.f32.mrb[0].mxu0
        %v2943 = vpop.f32.mrb[0].mxu0
        %2944 = vdwg.mxu0
        %v2946 = vsel %vm2484, %v1336, 0
        %v2949 = vsel %vm2484, %v1896, 0
        %2951 = vmatprep.subr.bf16.mxu0 0
        %2952 = vmatpush1.bf16.xpose.msra.mxu0 %v2949
        %2953 = vmatprep.subr.bf16.mxu0 0
        %2954 = vmatpush1.bf16.xpose.msra.mxu0 0
        %2955 = vmatprep.subr.bf16.mxu0 0
        %2956 = vmatpush1.bf16.xpose.msra.mxu0 0
        %2957 = vmatprep.subr.bf16.mxu0 0
        %2958 = vmatpush1.bf16.xpose.msra.mxu0 0
        %2959 = vmatprep.subr.bf16.mxu0 0
        %2960 = vmatpush1.bf16.xpose.msra.mxu0 0
        %2961 = vmatprep.subr.bf16.mxu0 0
        %2962 = vmatpush1.bf16.xpose.msra.mxu0 0
        %2963 = vmatprep.subr.bf16.mxu0 0
        %2964 = vmatpush1.bf16.xpose.msra.mxu0 0
        %2965 = vmatprep.subr.bf16.mxu0 0
        %2966 = vmatpush1.bf16.xpose.msra.mxu0 0
        %2967 = vmatprep.subr.bf16.mxu0 0
        %2968 = vmatpush1.bf16.xpose.msra.mxu0 0
        %2969 = vmatprep.subr.bf16.mxu0 0
        %2970 = vmatpush1.bf16.xpose.msra.mxu0 0
        %2971 = vmatprep.subr.bf16.mxu0 0
        %2972 = vmatpush1.bf16.xpose.msra.mxu0 0
        %2973 = vmatprep.subr.bf16.mxu0 0
        %2974 = vmatpush1.bf16.xpose.msra.mxu0 0
        %2975 = vmatprep.subr.bf16.mxu0 0
        %2976 = vmatpush1.bf16.xpose.msra.mxu0 0
        %2977 = vmatprep.subr.bf16.mxu0 0
        %2978 = vmatpush1.bf16.xpose.msra.mxu0 0
        %2979 = vmatprep.subr.bf16.mxu0 0
        %2980 = vmatpush1.bf16.xpose.msra.mxu0 0
        %2981 = vmatprep.subr.bf16.mxu0 0
        %2982 = vmatpush1.bf16.xpose.msra.mxu0 0
        %2983 = vmatprep.mubr.bf16.mxu0 0
        %2984 = vmatmul.mubr.bf16.gmra.mrb[0].mxu0 %v2946
        %v2985 = vpop.f32.mrb[0].mxu0
        %v2986 = vadd.f32 0.0, %v2985
        %v2987 = vpop.f32.mrb[0].mxu0
        %v2988 = vpop.f32.mrb[0].mxu0
        %v2989 = vpop.f32.mrb[0].mxu0
        %2990 = vdwg.mxu0
        %v2992 = vsel %vm2484, %v1339, 0
        %v2995 = vsel %vm2484, %v1899, 0
        %2997 = vmatprep.subr.bf16.mxu0 0
        %2998 = vmatpush1.bf16.xpose.msra.mxu0 %v2995
        %2999 = vmatprep.subr.bf16.mxu0 0
        %3000 = vmatpush1.bf16.xpose.msra.mxu0 0
        %3001 = vmatprep.subr.bf16.mxu0 0
        %3002 = vmatpush1.bf16.xpose.msra.mxu0 0
        %3003 = vmatprep.subr.bf16.mxu0 0
        %3004 = vmatpush1.bf16.xpose.msra.mxu0 0
        %3005 = vmatprep.subr.bf16.mxu0 0
        %3006 = vmatpush1.bf16.xpose.msra.mxu0 0
        %3007 = vmatprep.subr.bf16.mxu0 0
        %3008 = vmatpush1.bf16.xpose.msra.mxu0 0
        %3009 = vmatprep.subr.bf16.mxu0 0
        %3010 = vmatpush1.bf16.xpose.msra.mxu0 0
        %3011 = vmatprep.subr.bf16.mxu0 0
        %3012 = vmatpush1.bf16.xpose.msra.mxu0 0
        %3013 = vmatprep.subr.bf16.mxu0 0
        %3014 = vmatpush1.bf16.xpose.msra.mxu0 0
        %3015 = vmatprep.subr.bf16.mxu0 0
        %3016 = vmatpush1.bf16.xpose.msra.mxu0 0
        %3017 = vmatprep.subr.bf16.mxu0 0
        %3018 = vmatpush1.bf16.xpose.msra.mxu0 0
        %3019 = vmatprep.subr.bf16.mxu0 0
        %3020 = vmatpush1.bf16.xpose.msra.mxu0 0
        %3021 = vmatprep.subr.bf16.mxu0 0
        %3022 = vmatpush1.bf16.xpose.msra.mxu0 0
        %3023 = vmatprep.subr.bf16.mxu0 0
        %3024 = vmatpush1.bf16.xpose.msra.mxu0 0
        %3025 = vmatprep.subr.bf16.mxu0 0
        %3026 = vmatpush1.bf16.xpose.msra.mxu0 0
        %3027 = vmatprep.subr.bf16.mxu0 0
        %3028 = vmatpush1.bf16.xpose.msra.mxu0 0
        %3029 = vmatprep.mubr.bf16.mxu0 0
        %3030 = vmatmul.mubr.bf16.gmra.mrb[0].mxu0 %v2992
        %v3031 = vpop.f32.mrb[0].mxu0
        %v3032 = vadd.f32 0.0, %v3031
        %v3033 = vpop.f32.mrb[0].mxu0
        %v3034 = vpop.f32.mrb[0].mxu0
        %v3035 = vpop.f32.mrb[0].mxu0
        %3036 = vdwg.mxu0
        %v3038 = vsel %vm2484, %v1342, 0
        %v3041 = vsel %vm2484, %v1902, 0
        %3043 = vmatprep.subr.bf16.mxu0 0
        %3044 = vmatpush1.bf16.xpose.msra.mxu0 %v3041
        %3045 = vmatprep.subr.bf16.mxu0 0
        %3046 = vmatpush1.bf16.xpose.msra.mxu0 0
        %3047 = vmatprep.subr.bf16.mxu0 0
        %3048 = vmatpush1.bf16.xpose.msra.mxu0 0
        %3049 = vmatprep.subr.bf16.mxu0 0
        %3050 = vmatpush1.bf16.xpose.msra.mxu0 0
        %3051 = vmatprep.subr.bf16.mxu0 0
        %3052 = vmatpush1.bf16.xpose.msra.mxu0 0
        %3053 = vmatprep.subr.bf16.mxu0 0
        %3054 = vmatpush1.bf16.xpose.msra.mxu0 0
        %3055 = vmatprep.subr.bf16.mxu0 0
        %3056 = vmatpush1.bf16.xpose.msra.mxu0 0
        %3057 = vmatprep.subr.bf16.mxu0 0
        %3058 = vmatpush1.bf16.xpose.msra.mxu0 0
        %3059 = vmatprep.subr.bf16.mxu0 0
        %3060 = vmatpush1.bf16.xpose.msra.mxu0 0
        %3061 = vmatprep.subr.bf16.mxu0 0
        %3062 = vmatpush1.bf16.xpose.msra.mxu0 0
        %3063 = vmatprep.subr.bf16.mxu0 0
        %3064 = vmatpush1.bf16.xpose.msra.mxu0 0
        %3065 = vmatprep.subr.bf16.mxu0 0
        %3066 = vmatpush1.bf16.xpose.msra.mxu0 0
        %3067 = vmatprep.subr.bf16.mxu0 0
        %3068 = vmatpush1.bf16.xpose.msra.mxu0 0
        %3069 = vmatprep.subr.bf16.mxu0 0
        %3070 = vmatpush1.bf16.xpose.msra.mxu0 0
        %3071 = vmatprep.subr.bf16.mxu0 0
        %3072 = vmatpush1.bf16.xpose.msra.mxu0 0
        %3073 = vmatprep.subr.bf16.mxu0 0
        %3074 = vmatpush1.bf16.xpose.msra.mxu0 0
        %3075 = vmatprep.mubr.bf16.mxu0 0
        %3076 = vmatmul.mubr.bf16.gmra.mrb[0].mxu0 %v3038
        %v3077 = vpop.f32.mrb[0].mxu0
        %v3078 = vadd.f32 0.0, %v3077
        %v3079 = vpop.f32.mrb[0].mxu0
        %v3080 = vpop.f32.mrb[0].mxu0
        %v3081 = vpop.f32.mrb[0].mxu0
        %3082 = vdwg.mxu0
        %v3084 = vsel %vm2484, %v1345, 0
        %v3087 = vsel %vm2484, %v1905, 0
        %3089 = vmatprep.subr.bf16.mxu0 0
        %3090 = vmatpush1.bf16.xpose.msra.mxu0 %v3087
        %3091 = vmatprep.subr.bf16.mxu0 0
        %3092 = vmatpush1.bf16.xpose.msra.mxu0 0
        %3093 = vmatprep.subr.bf16.mxu0 0
        %3094 = vmatpush1.bf16.xpose.msra.mxu0 0
        %3095 = vmatprep.subr.bf16.mxu0 0
        %3096 = vmatpush1.bf16.xpose.msra.mxu0 0
        %3097 = vmatprep.subr.bf16.mxu0 0
        %3098 = vmatpush1.bf16.xpose.msra.mxu0 0
        %3099 = vmatprep.subr.bf16.mxu0 0
        %3100 = vmatpush1.bf16.xpose.msra.mxu0 0
        %3101 = vmatprep.subr.bf16.mxu0 0
        %3102 = vmatpush1.bf16.xpose.msra.mxu0 0
        %3103 = vmatprep.subr.bf16.mxu0 0
        %3104 = vmatpush1.bf16.xpose.msra.mxu0 0
        %3105 = vmatprep.subr.bf16.mxu0 0
        %3106 = vmatpush1.bf16.xpose.msra.mxu0 0
        %3107 = vmatprep.subr.bf16.mxu0 0
        %3108 = vmatpush1.bf16.xpose.msra.mxu0 0
        %3109 = vmatprep.subr.bf16.mxu0 0
        %3110 = vmatpush1.bf16.xpose.msra.mxu0 0
        %3111 = vmatprep.subr.bf16.mxu0 0
        %3112 = vmatpush1.bf16.xpose.msra.mxu0 0
        %3113 = vmatprep.subr.bf16.mxu0 0
        %3114 = vmatpush1.bf16.xpose.msra.mxu0 0
        %3115 = vmatprep.subr.bf16.mxu0 0
        %3116 = vmatpush1.bf16.xpose.msra.mxu0 0
        %3117 = vmatprep.subr.bf16.mxu0 0
        %3118 = vmatpush1.bf16.xpose.msra.mxu0 0
        %3119 = vmatprep.subr.bf16.mxu0 0
        %3120 = vmatpush1.bf16.xpose.msra.mxu0 0
        %3121 = vmatprep.mubr.bf16.mxu0 0
        %3122 = vmatmul.mubr.bf16.gmra.mrb[0].mxu0 %v3084
        %v3123 = vpop.f32.mrb[0].mxu0
        %v3124 = vadd.f32 0.0, %v3123
        %v3125 = vpop.f32.mrb[0].mxu0
        %v3126 = vpop.f32.mrb[0].mxu0
        %v3127 = vpop.f32.mrb[0].mxu0
        %3128 = vdwg.mxu0
        %v3130 = vsel %vm2484, %v1348, 0
        %v3133 = vsel %vm2484, %v1908, 0
        %3135 = vmatprep.subr.bf16.mxu0 0
        %3136 = vmatpush1.bf16.xpose.msra.mxu0 %v3133
        %3137 = vmatprep.subr.bf16.mxu0 0
        %3138 = vmatpush1.bf16.xpose.msra.mxu0 0
        %3139 = vmatprep.subr.bf16.mxu0 0
        %3140 = vmatpush1.bf16.xpose.msra.mxu0 0
        %3141 = vmatprep.subr.bf16.mxu0 0
        %3142 = vmatpush1.bf16.xpose.msra.mxu0 0
        %3143 = vmatprep.subr.bf16.mxu0 0
        %3144 = vmatpush1.bf16.xpose.msra.mxu0 0
        %3145 = vmatprep.subr.bf16.mxu0 0
        %3146 = vmatpush1.bf16.xpose.msra.mxu0 0
        %3147 = vmatprep.subr.bf16.mxu0 0
        %3148 = vmatpush1.bf16.xpose.msra.mxu0 0
        %3149 = vmatprep.subr.bf16.mxu0 0
        %3150 = vmatpush1.bf16.xpose.msra.mxu0 0
        %3151 = vmatprep.subr.bf16.mxu0 0
        %3152 = vmatpush1.bf16.xpose.msra.mxu0 0
        %3153 = vmatprep.subr.bf16.mxu0 0
        %3154 = vmatpush1.bf16.xpose.msra.mxu0 0
        %3155 = vmatprep.subr.bf16.mxu0 0
        %3156 = vmatpush1.bf16.xpose.msra.mxu0 0
        %3157 = vmatprep.subr.bf16.mxu0 0
        %3158 = vmatpush1.bf16.xpose.msra.mxu0 0
        %3159 = vmatprep.subr.bf16.mxu0 0
        %3160 = vmatpush1.bf16.xpose.msra.mxu0 0
        %3161 = vmatprep.subr.bf16.mxu0 0
        %3162 = vmatpush1.bf16.xpose.msra.mxu0 0
        %3163 = vmatprep.subr.bf16.mxu0 0
        %3164 = vmatpush1.bf16.xpose.msra.mxu0 0
        %3165 = vmatprep.subr.bf16.mxu0 0
        %3166 = vmatpush1.bf16.xpose.msra.mxu0 0
        %3167 = vmatprep.mubr.bf16.mxu0 0
        %3168 = vmatmul.mubr.bf16.gmra.mrb[0].mxu0 %v3130
        %v3169 = vpop.f32.mrb[0].mxu0
        %v3170 = vadd.f32 0.0, %v3169
        %v3171 = vpop.f32.mrb[0].mxu0
        %v3172 = vpop.f32.mrb[0].mxu0
        %v3173 = vpop.f32.mrb[0].mxu0
        %3174 = vdwg.mxu0
        %v3176 = vsel %vm2484, %v1351, 0
        %v3179 = vsel %vm2484, %v1911, 0
        %3181 = vmatprep.subr.bf16.mxu0 0
        %3182 = vmatpush1.bf16.xpose.msra.mxu0 %v3179
        %3183 = vmatprep.subr.bf16.mxu0 0
        %3184 = vmatpush1.bf16.xpose.msra.mxu0 0
        %3185 = vmatprep.subr.bf16.mxu0 0
        %3186 = vmatpush1.bf16.xpose.msra.mxu0 0
        %3187 = vmatprep.subr.bf16.mxu0 0
        %3188 = vmatpush1.bf16.xpose.msra.mxu0 0
        %3189 = vmatprep.subr.bf16.mxu0 0
        %3190 = vmatpush1.bf16.xpose.msra.mxu0 0
        %3191 = vmatprep.subr.bf16.mxu0 0
        %3192 = vmatpush1.bf16.xpose.msra.mxu0 0
        %3193 = vmatprep.subr.bf16.mxu0 0
        %3194 = vmatpush1.bf16.xpose.msra.mxu0 0
        %3195 = vmatprep.subr.bf16.mxu0 0
        %3196 = vmatpush1.bf16.xpose.msra.mxu0 0
        %3197 = vmatprep.subr.bf16.mxu0 0
        %3198 = vmatpush1.bf16.xpose.msra.mxu0 0
        %3199 = vmatprep.subr.bf16.mxu0 0
        %3200 = vmatpush1.bf16.xpose.msra.mxu0 0
        %3201 = vmatprep.subr.bf16.mxu0 0
        %3202 = vmatpush1.bf16.xpose.msra.mxu0 0
        %3203 = vmatprep.subr.bf16.mxu0 0
        %3204 = vmatpush1.bf16.xpose.msra.mxu0 0
        %3205 = vmatprep.subr.bf16.mxu0 0
        %3206 = vmatpush1.bf16.xpose.msra.mxu0 0
        %3207 = vmatprep.subr.bf16.mxu0 0
        %3208 = vmatpush1.bf16.xpose.msra.mxu0 0
        %3209 = vmatprep.subr.bf16.mxu0 0
        %3210 = vmatpush1.bf16.xpose.msra.mxu0 0
        %3211 = vmatprep.subr.bf16.mxu0 0
        %3212 = vmatpush1.bf16.xpose.msra.mxu0 0
        %3213 = vmatprep.mubr.bf16.mxu0 0
        %3214 = vmatmul.mubr.bf16.gmra.mrb[0].mxu0 %v3176
        %v3215 = vpop.f32.mrb[0].mxu0
        %v3216 = vadd.f32 0.0, %v3215
        %v3217 = vpop.f32.mrb[0].mxu0
        %v3218 = vpop.f32.mrb[0].mxu0
        %v3219 = vpop.f32.mrb[0].mxu0
        %3220 = vdwg.mxu0
        %v3221 = vmul.f32 %v2526, 0.35355338
        %v3222 = vmul.f32 %v2572, 0.35355338
        %v3223 = vmul.f32 %v2618, 0.35355338
        %v3224 = vmul.f32 %v2664, 0.35355338
        %v3225 = vmul.f32 %v2710, 0.35355338
        %v3226 = vmul.f32 %v2756, 0.35355338
        %v3227 = vmul.f32 %v2802, 0.35355338
        %v3228 = vmul.f32 %v2848, 0.35355338
        %v3229 = vmul.f32 %v2894, 0.35355338
        %v3230 = vmul.f32 %v2940, 0.35355338
        %v3231 = vmul.f32 %v2986, 0.35355338
        %v3232 = vmul.f32 %v3032, 0.35355338
        %v3233 = vmul.f32 %v3078, 0.35355338
        %v3234 = vmul.f32 %v3124, 0.35355338
        %v3235 = vmul.f32 %v3170, 0.35355338
        %v3236 = vmul.f32 %v3216, 0.35355338
        %v3241 = vlaneseq
        %v3242 = vshrl.u32 %v3241, 7
        %v3243 = vsub.s32 0, %v3242
        %v3244 = vrot.slane %v2480, %v3243
        %v3245 = vlaneseq
        %v3246 = vshrl.u32 %v3245, 7
        %v3247 = vsub.s32 0, %v3246
        %v3248 = vrot.slane %v2481, %v3247
        %v3249 = vlaneseq
        %v3250 = vshrl.u32 %v3249, 7
        %v3251 = vsub.s32 0, %v3250
        %v3252 = vrot.slane %v2482, %v3251
        %v3253 = vlaneseq
        %v3254 = vshrl.u32 %v3253, 7
        %v3255 = vsub.s32 0, %v3254
        %v3256 = vrot.slane %v2483, %v3255
        %v3261 = vadd.f32 %v3221, %v3244
        %v3262 = vadd.f32 %v3222, %v3244
        %v3263 = vadd.f32 %v3223, %v3244
        %v3264 = vadd.f32 %v3224, %v3244
        %v3265 = vadd.f32 %v3225, %v3248
        %v3266 = vadd.f32 %v3226, %v3248
        %v3267 = vadd.f32 %v3227, %v3248
        %v3268 = vadd.f32 %v3228, %v3248
        %v3269 = vadd.f32 %v3229, %v3252
        %v3270 = vadd.f32 %v3230, %v3252
        %v3271 = vadd.f32 %v3231, %v3252
        %v3272 = vadd.f32 %v3232, %v3252
        %v3273 = vadd.f32 %v3233, %v3256
        %v3274 = vadd.f32 %v3234, %v3256
        %v3275 = vadd.f32 %v3235, %v3256
        %v3276 = vadd.f32 %v3236, %v3256
        %v3277 = vsel %vm2484, %v3261, -inf
        %3278 = vmax.xlane.f32.xlu0 %v3277
        %v3279 = vpop.xlane.xlu0 %3278
        %v3280 = vsel %vm2484, %v3262, -inf
        %3281 = vmax.xlane.f32.xlu0 %v3280
        %v3282 = vpop.xlane.xlu0 %3281
        %v3283 = vsel %vm2484, %v3263, -inf
        %3284 = vmax.xlane.f32.xlu0 %v3283
        %v3285 = vpop.xlane.xlu0 %3284
        %v3286 = vsel %vm2484, %v3264, -inf
        %3287 = vmax.xlane.f32.xlu0 %v3286
        %v3288 = vpop.xlane.xlu0 %3287
        %v3289 = vsel %vm2484, %v3265, -inf
        %3290 = vmax.xlane.f32.xlu0 %v3289
        %v3291 = vpop.xlane.xlu0 %3290
        %v3292 = vsel %vm2484, %v3266, -inf
        %3293 = vmax.xlane.f32.xlu0 %v3292
        %v3294 = vpop.xlane.xlu0 %3293
        %v3295 = vsel %vm2484, %v3267, -inf
        %3296 = vmax.xlane.f32.xlu0 %v3295
        %v3297 = vpop.xlane.xlu0 %3296
        %v3298 = vsel %vm2484, %v3268, -inf
        %3299 = vmax.xlane.f32.xlu0 %v3298
        %v3300 = vpop.xlane.xlu0 %3299
        %v3301 = vsel %vm2484, %v3269, -inf
        %3302 = vmax.xlane.f32.xlu0 %v3301
        %v3303 = vpop.xlane.xlu0 %3302
        %v3304 = vsel %vm2484, %v3270, -inf
        %3305 = vmax.xlane.f32.xlu0 %v3304
        %v3306 = vpop.xlane.xlu0 %3305
        %v3307 = vsel %vm2484, %v3271, -inf
        %3308 = vmax.xlane.f32.xlu0 %v3307
        %v3309 = vpop.xlane.xlu0 %3308
        %v3310 = vsel %vm2484, %v3272, -inf
        %3311 = vmax.xlane.f32.xlu0 %v3310
        %v3312 = vpop.xlane.xlu0 %3311
        %v3313 = vsel %vm2484, %v3273, -inf
        %3314 = vmax.xlane.f32.xlu0 %v3313
        %v3315 = vpop.xlane.xlu0 %3314
        %v3316 = vsel %vm2484, %v3274, -inf
        %3317 = vmax.xlane.f32.xlu0 %v3316
        %v3318 = vpop.xlane.xlu0 %3317
        %v3319 = vsel %vm2484, %v3275, -inf
        %3320 = vmax.xlane.f32.xlu0 %v3319
        %v3321 = vpop.xlane.xlu0 %3320
        %v3322 = vsel %vm2484, %v3276, -inf
        %3323 = vmax.xlane.f32.xlu0 %v3322
        %v3324 = vpop.xlane.xlu0 %3323
        %v3325 = vsub.f32 %v3261, %v3279
        %v3326 = vsub.f32 %v3262, %v3282
        %v3327 = vsub.f32 %v3263, %v3285
        %v3328 = vsub.f32 %v3264, %v3288
        %v3329 = vsub.f32 %v3265, %v3291
        %v3330 = vsub.f32 %v3266, %v3294
        %v3331 = vsub.f32 %v3267, %v3297
        %v3332 = vsub.f32 %v3268, %v3300
        %v3333 = vsub.f32 %v3269, %v3303
        %v3334 = vsub.f32 %v3270, %v3306
        %v3335 = vsub.f32 %v3271, %v3309
        %v3336 = vsub.f32 %v3272, %v3312
        %v3337 = vsub.f32 %v3273, %v3315
        %v3338 = vsub.f32 %v3274, %v3318
        %v3339 = vsub.f32 %v3275, %v3321
        %v3340 = vsub.f32 %v3276, %v3324
        %v3341 = vmul.f32 %v3325, 1.442695
        %v3342 = vpow.pop %v3341
        %v3343 = vmul.f32 %v3326, 1.442695
        %v3344 = vpow.pop %v3343
        %v3345 = vmul.f32 %v3327, 1.442695
        %v3346 = vpow.pop %v3345
        %v3347 = vmul.f32 %v3328, 1.442695
        %v3348 = vpow.pop %v3347
        %v3349 = vmul.f32 %v3329, 1.442695
        %v3350 = vpow.pop %v3349
        %v3351 = vmul.f32 %v3330, 1.442695
        %v3352 = vpow.pop %v3351
        %v3353 = vmul.f32 %v3331, 1.442695
        %v3354 = vpow.pop %v3353
        %v3355 = vmul.f32 %v3332, 1.442695
        %v3356 = vpow.pop %v3355
        %v3357 = vmul.f32 %v3333, 1.442695
        %v3358 = vpow.pop %v3357
        %v3359 = vmul.f32 %v3334, 1.442695
        %v3360 = vpow.pop %v3359
        %v3361 = vmul.f32 %v3335, 1.442695
        %v3362 = vpow.pop %v3361
        %v3363 = vmul.f32 %v3336, 1.442695
        %v3364 = vpow.pop %v3363
        %v3365 = vmul.f32 %v3337, 1.442695
        %v3366 = vpow.pop %v3365
        %v3367 = vmul.f32 %v3338, 1.442695
        %v3368 = vpow.pop %v3367
        %v3369 = vmul.f32 %v3339, 1.442695
        %v3370 = vpow.pop %v3369
        %v3371 = vmul.f32 %v3340, 1.442695
        %v3372 = vpow.pop %v3371
        %v3373 = vsel %vm2484, %v3342, 0.0
        %3374 = vadd.xlane.f32.xlu0 %v3373
        %v3375 = vpop.xlane.xlu0 %3374
        %v3376 = vsel %vm2484, %v3344, 0.0
        %3377 = vadd.xlane.f32.xlu0 %v3376
        %v3378 = vpop.xlane.xlu0 %3377
        %v3379 = vsel %vm2484, %v3346, 0.0
        %3380 = vadd.xlane.f32.xlu0 %v3379
        %v3381 = vpop.xlane.xlu0 %3380
        %v3382 = vsel %vm2484, %v3348, 0.0
        %3383 = vadd.xlane.f32.xlu0 %v3382
        %v3384 = vpop.xlane.xlu0 %3383
        %v3385 = vsel %vm2484, %v3350, 0.0
        %3386 = vadd.xlane.f32.xlu0 %v3385
        %v3387 = vpop.xlane.xlu0 %3386
        %v3388 = vsel %vm2484, %v3352, 0.0
        %3389 = vadd.xlane.f32.xlu0 %v3388
        %v3390 = vpop.xlane.xlu0 %3389
        %v3391 = vsel %vm2484, %v3354, 0.0
        %3392 = vadd.xlane.f32.xlu0 %v3391
        %v3393 = vpop.xlane.xlu0 %3392
        %v3394 = vsel %vm2484, %v3356, 0.0
        %3395 = vadd.xlane.f32.xlu0 %v3394
        %v3396 = vpop.xlane.xlu0 %3395
        %v3397 = vsel %vm2484, %v3358, 0.0
        %3398 = vadd.xlane.f32.xlu0 %v3397
        %v3399 = vpop.xlane.xlu0 %3398
        %v3400 = vsel %vm2484, %v3360, 0.0
        %3401 = vadd.xlane.f32.xlu0 %v3400
        %v3402 = vpop.xlane.xlu0 %3401
        %v3403 = vsel %vm2484, %v3362, 0.0
        %3404 = vadd.xlane.f32.xlu0 %v3403
        %v3405 = vpop.xlane.xlu0 %3404
        %v3406 = vsel %vm2484, %v3364, 0.0
        %3407 = vadd.xlane.f32.xlu0 %v3406
        %v3408 = vpop.xlane.xlu0 %3407
        %v3409 = vsel %vm2484, %v3366, 0.0
        %3410 = vadd.xlane.f32.xlu0 %v3409
        %v3411 = vpop.xlane.xlu0 %3410
        %v3412 = vsel %vm2484, %v3368, 0.0
        %3413 = vadd.xlane.f32.xlu0 %v3412
        %v3414 = vpop.xlane.xlu0 %3413
        %v3415 = vsel %vm2484, %v3370, 0.0
        %3416 = vadd.xlane.f32.xlu0 %v3415
        %v3417 = vpop.xlane.xlu0 %3416
        %v3418 = vsel %vm2484, %v3372, 0.0
        %3419 = vadd.xlane.f32.xlu0 %v3418
        %v3420 = vpop.xlane.xlu0 %3419
        %v3421 = vrcp.pop %v3375
        %v3422 = vrcp.pop %v3378
        %v3423 = vrcp.pop %v3381
        %v3424 = vrcp.pop %v3384
        %v3425 = vrcp.pop %v3387
        %v3426 = vrcp.pop %v3390
        %v3427 = vrcp.pop %v3393
        %v3428 = vrcp.pop %v3396
        %v3429 = vrcp.pop %v3399
        %v3430 = vrcp.pop %v3402
        %v3431 = vrcp.pop %v3405
        %v3432 = vrcp.pop %v3408
        %v3433 = vrcp.pop %v3411
        %v3434 = vrcp.pop %v3414
        %v3435 = vrcp.pop %v3417
        %v3436 = vrcp.pop %v3420
        %v3437 = vmul.f32 %v3342, %v3421
        %v3438 = vmul.f32 %v3344, %v3422
        %v3439 = vmul.f32 %v3346, %v3423
        %v3440 = vmul.f32 %v3348, %v3424
        %v3441 = vmul.f32 %v3350, %v3425
        %v3442 = vmul.f32 %v3352, %v3426
        %v3443 = vmul.f32 %v3354, %v3427
        %v3444 = vmul.f32 %v3356, %v3428
        %v3445 = vmul.f32 %v3358, %v3429
        %v3446 = vmul.f32 %v3360, %v3430
        %v3447 = vmul.f32 %v3362, %v3431
        %v3448 = vmul.f32 %v3364, %v3432
        %v3449 = vmul.f32 %v3366, %v3433
        %v3450 = vmul.f32 %v3368, %v3434
        %v3451 = vmul.f32 %v3370, %v3435
        %v3452 = vmul.f32 %v3372, %v3436
        %v3453 = vpack.c.bf16 %v3437, %v3437
        %v3454 = vpack.c.bf16 %v3438, %v3438
        %v3455 = vpack.c.bf16 %v3439, %v3439
        %v3456 = vpack.c.bf16 %v3440, %v3440
        %v3457 = vpack.c.bf16 %v3441, %v3441
        %v3458 = vpack.c.bf16 %v3442, %v3442
        %v3459 = vpack.c.bf16 %v3443, %v3443
        %v3460 = vpack.c.bf16 %v3444, %v3444
        %v3461 = vpack.c.bf16 %v3445, %v3445
        %v3462 = vpack.c.bf16 %v3446, %v3446
        %v3463 = vpack.c.bf16 %v3447, %v3447
        %v3464 = vpack.c.bf16 %v3448, %v3448
        %v3465 = vpack.c.bf16 %v3449, %v3449
        %v3466 = vpack.c.bf16 %v3450, %v3450
        %v3467 = vpack.c.bf16 %v3451, %v3451
        %v3468 = vpack.c.bf16 %v3452, %v3452
        %v3470 = vsel %vm2484, %v3453, 0
        %vm3472 = vcmask 1043456
        %v3474 = vsel %vm3472, %v2426, 0
        %3476 = vmatprep.subr.bf16.mxu0 0
        %3477 = vmatpush1.bf16.msra.mxu0 %v3474
        %3478 = vmatprep.subr.bf16.mxu0 0
        %3479 = vmatpush1.bf16.msra.mxu0 0
        %3480 = vmatprep.subr.bf16.mxu0 0
        %3481 = vmatpush1.bf16.msra.mxu0 0
        %3482 = vmatprep.subr.bf16.mxu0 0
        %3483 = vmatpush1.bf16.msra.mxu0 0
        %3484 = vmatprep.subr.bf16.mxu0 0
        %3485 = vmatpush1.bf16.msra.mxu0 0
        %3486 = vmatprep.subr.bf16.mxu0 0
        %3487 = vmatpush1.bf16.msra.mxu0 0
        %3488 = vmatprep.subr.bf16.mxu0 0
        %3489 = vmatpush1.bf16.msra.mxu0 0
        %3490 = vmatprep.subr.bf16.mxu0 0
        %3491 = vmatpush1.bf16.msra.mxu0 0
        %3492 = vmatprep.subr.bf16.mxu0 0
        %3493 = vmatpush1.bf16.msra.mxu0 0
        %3494 = vmatprep.subr.bf16.mxu0 0
        %3495 = vmatpush1.bf16.msra.mxu0 0
        %3496 = vmatprep.subr.bf16.mxu0 0
        %3497 = vmatpush1.bf16.msra.mxu0 0
        %3498 = vmatprep.subr.bf16.mxu0 0
        %3499 = vmatpush1.bf16.msra.mxu0 0
        %3500 = vmatprep.subr.bf16.mxu0 0
        %3501 = vmatpush1.bf16.msra.mxu0 0
        %3502 = vmatprep.subr.bf16.mxu0 0
        %3503 = vmatpush1.bf16.msra.mxu0 0
        %3504 = vmatprep.subr.bf16.mxu0 0
        %3505 = vmatpush1.bf16.msra.mxu0 0
        %3506 = vmatprep.subr.bf16.mxu0 0
        %3507 = vmatpush1.bf16.msra.mxu0 0
        %3508 = vmatprep.mubr.bf16.mxu0 0
        %3509 = vmatmul.mubr.bf16.gmra.mrb[0].mxu0 %v3470
        %v3510 = vpop.f32.mrb[0].mxu0
        %v3511 = vadd.f32 0.0, %v3510
        %v3512 = vpop.f32.mrb[0].mxu0
        %v3513 = vpop.f32.mrb[0].mxu0
        %v3514 = vpop.f32.mrb[0].mxu0
        %3515 = vdwg.mxu0
        %v3517 = vsel %vm2484, %v3454, 0
        %v3520 = vsel %vm3472, %v2429, 0
        %3522 = vmatprep.subr.bf16.mxu0 0
        %3523 = vmatpush1.bf16.msra.mxu0 %v3520
        %3524 = vmatprep.subr.bf16.mxu0 0
        %3525 = vmatpush1.bf16.msra.mxu0 0
        %3526 = vmatprep.subr.bf16.mxu0 0
        %3527 = vmatpush1.bf16.msra.mxu0 0
        %3528 = vmatprep.subr.bf16.mxu0 0
        %3529 = vmatpush1.bf16.msra.mxu0 0
        %3530 = vmatprep.subr.bf16.mxu0 0
        %3531 = vmatpush1.bf16.msra.mxu0 0
        %3532 = vmatprep.subr.bf16.mxu0 0
        %3533 = vmatpush1.bf16.msra.mxu0 0
        %3534 = vmatprep.subr.bf16.mxu0 0
        %3535 = vmatpush1.bf16.msra.mxu0 0
        %3536 = vmatprep.subr.bf16.mxu0 0
        %3537 = vmatpush1.bf16.msra.mxu0 0
        %3538 = vmatprep.subr.bf16.mxu0 0
        %3539 = vmatpush1.bf16.msra.mxu0 0
        %3540 = vmatprep.subr.bf16.mxu0 0
        %3541 = vmatpush1.bf16.msra.mxu0 0
        %3542 = vmatprep.subr.bf16.mxu0 0
        %3543 = vmatpush1.bf16.msra.mxu0 0
        %3544 = vmatprep.subr.bf16.mxu0 0
        %3545 = vmatpush1.bf16.msra.mxu0 0
        %3546 = vmatprep.subr.bf16.mxu0 0
        %3547 = vmatpush1.bf16.msra.mxu0 0
        %3548 = vmatprep.subr.bf16.mxu0 0
        %3549 = vmatpush1.bf16.msra.mxu0 0
        %3550 = vmatprep.subr.bf16.mxu0 0
        %3551 = vmatpush1.bf16.msra.mxu0 0
        %3552 = vmatprep.subr.bf16.mxu0 0
        %3553 = vmatpush1.bf16.msra.mxu0 0
        %3554 = vmatprep.mubr.bf16.mxu0 0
        %3555 = vmatmul.mubr.bf16.gmra.mrb[0].mxu0 %v3517
        %v3556 = vpop.f32.mrb[0].mxu0
        %v3557 = vadd.f32 0.0, %v3556
        %v3558 = vpop.f32.mrb[0].mxu0
        %v3559 = vpop.f32.mrb[0].mxu0
        %v3560 = vpop.f32.mrb[0].mxu0
        %3561 = vdwg.mxu0
        %v3563 = vsel %vm2484, %v3455, 0
        %v3566 = vsel %vm3472, %v2432, 0
        %3568 = vmatprep.subr.bf16.mxu0 0
        %3569 = vmatpush1.bf16.msra.mxu0 %v3566
        %3570 = vmatprep.subr.bf16.mxu0 0
        %3571 = vmatpush1.bf16.msra.mxu0 0
        %3572 = vmatprep.subr.bf16.mxu0 0
        %3573 = vmatpush1.bf16.msra.mxu0 0
        %3574 = vmatprep.subr.bf16.mxu0 0
        %3575 = vmatpush1.bf16.msra.mxu0 0
        %3576 = vmatprep.subr.bf16.mxu0 0
        %3577 = vmatpush1.bf16.msra.mxu0 0
        %3578 = vmatprep.subr.bf16.mxu0 0
        %3579 = vmatpush1.bf16.msra.mxu0 0
        %3580 = vmatprep.subr.bf16.mxu0 0
        %3581 = vmatpush1.bf16.msra.mxu0 0
        %3582 = vmatprep.subr.bf16.mxu0 0
        %3583 = vmatpush1.bf16.msra.mxu0 0
        %3584 = vmatprep.subr.bf16.mxu0 0
        %3585 = vmatpush1.bf16.msra.mxu0 0
        %3586 = vmatprep.subr.bf16.mxu0 0
        %3587 = vmatpush1.bf16.msra.mxu0 0
        %3588 = vmatprep.subr.bf16.mxu0 0
        %3589 = vmatpush1.bf16.msra.mxu0 0
        %3590 = vmatprep.subr.bf16.mxu0 0
        %3591 = vmatpush1.bf16.msra.mxu0 0
        %3592 = vmatprep.subr.bf16.mxu0 0
        %3593 = vmatpush1.bf16.msra.mxu0 0
        %3594 = vmatprep.subr.bf16.mxu0 0
        %3595 = vmatpush1.bf16.msra.mxu0 0
        %3596 = vmatprep.subr.bf16.mxu0 0
        %3597 = vmatpush1.bf16.msra.mxu0 0
        %3598 = vmatprep.subr.bf16.mxu0 0
        %3599 = vmatpush1.bf16.msra.mxu0 0
        %3600 = vmatprep.mubr.bf16.mxu0 0
        %3601 = vmatmul.mubr.bf16.gmra.mrb[0].mxu0 %v3563
        %v3602 = vpop.f32.mrb[0].mxu0
        %v3603 = vadd.f32 0.0, %v3602
        %v3604 = vpop.f32.mrb[0].mxu0
        %v3605 = vpop.f32.mrb[0].mxu0
        %v3606 = vpop.f32.mrb[0].mxu0
        %3607 = vdwg.mxu0
        %v3609 = vsel %vm2484, %v3456, 0
        %v3612 = vsel %vm3472, %v2435, 0
        %3614 = vmatprep.subr.bf16.mxu0 0
        %3615 = vmatpush1.bf16.msra.mxu0 %v3612
        %3616 = vmatprep.subr.bf16.mxu0 0
        %3617 = vmatpush1.bf16.msra.mxu0 0
        %3618 = vmatprep.subr.bf16.mxu0 0
        %3619 = vmatpush1.bf16.msra.mxu0 0
        %3620 = vmatprep.subr.bf16.mxu0 0
        %3621 = vmatpush1.bf16.msra.mxu0 0
        %3622 = vmatprep.subr.bf16.mxu0 0
        %3623 = vmatpush1.bf16.msra.mxu0 0
        %3624 = vmatprep.subr.bf16.mxu0 0
        %3625 = vmatpush1.bf16.msra.mxu0 0
        %3626 = vmatprep.subr.bf16.mxu0 0
        %3627 = vmatpush1.bf16.msra.mxu0 0
        %3628 = vmatprep.subr.bf16.mxu0 0
        %3629 = vmatpush1.bf16.msra.mxu0 0
        %3630 = vmatprep.subr.bf16.mxu0 0
        %3631 = vmatpush1.bf16.msra.mxu0 0
        %3632 = vmatprep.subr.bf16.mxu0 0
        %3633 = vmatpush1.bf16.msra.mxu0 0
        %3634 = vmatprep.subr.bf16.mxu0 0
        %3635 = vmatpush1.bf16.msra.mxu0 0
        %3636 = vmatprep.subr.bf16.mxu0 0
        %3637 = vmatpush1.bf16.msra.mxu0 0
        %3638 = vmatprep.subr.bf16.mxu0 0
        %3639 = vmatpush1.bf16.msra.mxu0 0
        %3640 = vmatprep.subr.bf16.mxu0 0
        %3641 = vmatpush1.bf16.msra.mxu0 0
        %3642 = vmatprep.subr.bf16.mxu0 0
        %3643 = vmatpush1.bf16.msra.mxu0 0
        %3644 = vmatprep.subr.bf16.mxu0 0
        %3645 = vmatpush1.bf16.msra.mxu0 0
        %3646 = vmatprep.mubr.bf16.mxu0 0
        %3647 = vmatmul.mubr.bf16.gmra.mrb[0].mxu0 %v3609
        %v3648 = vpop.f32.mrb[0].mxu0
        %v3649 = vadd.f32 0.0, %v3648
        %v3650 = vpop.f32.mrb[0].mxu0
        %v3651 = vpop.f32.mrb[0].mxu0
        %v3652 = vpop.f32.mrb[0].mxu0
        %3653 = vdwg.mxu0
        %v3655 = vsel %vm2484, %v3457, 0
        %v3658 = vsel %vm3472, %v2438, 0
        %3660 = vmatprep.subr.bf16.mxu0 0
        %3661 = vmatpush1.bf16.msra.mxu0 %v3658
        %3662 = vmatprep.subr.bf16.mxu0 0
        %3663 = vmatpush1.bf16.msra.mxu0 0
        %3664 = vmatprep.subr.bf16.mxu0 0
        %3665 = vmatpush1.bf16.msra.mxu0 0
        %3666 = vmatprep.subr.bf16.mxu0 0
        %3667 = vmatpush1.bf16.msra.mxu0 0
        %3668 = vmatprep.subr.bf16.mxu0 0
        %3669 = vmatpush1.bf16.msra.mxu0 0
        %3670 = vmatprep.subr.bf16.mxu0 0
        %3671 = vmatpush1.bf16.msra.mxu0 0
        %3672 = vmatprep.subr.bf16.mxu0 0
        %3673 = vmatpush1.bf16.msra.mxu0 0
        %3674 = vmatprep.subr.bf16.mxu0 0
        %3675 = vmatpush1.bf16.msra.mxu0 0
        %3676 = vmatprep.subr.bf16.mxu0 0
        %3677 = vmatpush1.bf16.msra.mxu0 0
        %3678 = vmatprep.subr.bf16.mxu0 0
        %3679 = vmatpush1.bf16.msra.mxu0 0
        %3680 = vmatprep.subr.bf16.mxu0 0
        %3681 = vmatpush1.bf16.msra.mxu0 0
        %3682 = vmatprep.subr.bf16.mxu0 0
        %3683 = vmatpush1.bf16.msra.mxu0 0
        %3684 = vmatprep.subr.bf16.mxu0 0
        %3685 = vmatpush1.bf16.msra.mxu0 0
        %3686 = vmatprep.subr.bf16.mxu0 0
        %3687 = vmatpush1.bf16.msra.mxu0 0
        %3688 = vmatprep.subr.bf16.mxu0 0
        %3689 = vmatpush1.bf16.msra.mxu0 0
        %3690 = vmatprep.subr.bf16.mxu0 0
        %3691 = vmatpush1.bf16.msra.mxu0 0
        %3692 = vmatprep.mubr.bf16.mxu0 0
        %3693 = vmatmul.mubr.bf16.gmra.mrb[0].mxu0 %v3655
        %v3694 = vpop.f32.mrb[0].mxu0
        %v3695 = vadd.f32 0.0, %v3694
        %v3696 = vpop.f32.mrb[0].mxu0
        %v3697 = vpop.f32.mrb[0].mxu0
        %v3698 = vpop.f32.mrb[0].mxu0
        %3699 = vdwg.mxu0
        %v3701 = vsel %vm2484, %v3458, 0
        %v3704 = vsel %vm3472, %v2441, 0
        %3706 = vmatprep.subr.bf16.mxu0 0
        %3707 = vmatpush1.bf16.msra.mxu0 %v3704
        %3708 = vmatprep.subr.bf16.mxu0 0
        %3709 = vmatpush1.bf16.msra.mxu0 0
        %3710 = vmatprep.subr.bf16.mxu0 0
        %3711 = vmatpush1.bf16.msra.mxu0 0
        %3712 = vmatprep.subr.bf16.mxu0 0
        %3713 = vmatpush1.bf16.msra.mxu0 0
        %3714 = vmatprep.subr.bf16.mxu0 0
        %3715 = vmatpush1.bf16.msra.mxu0 0
        %3716 = vmatprep.subr.bf16.mxu0 0
        %3717 = vmatpush1.bf16.msra.mxu0 0
        %3718 = vmatprep.subr.bf16.mxu0 0
        %3719 = vmatpush1.bf16.msra.mxu0 0
        %3720 = vmatprep.subr.bf16.mxu0 0
        %3721 = vmatpush1.bf16.msra.mxu0 0
        %3722 = vmatprep.subr.bf16.mxu0 0
        %3723 = vmatpush1.bf16.msra.mxu0 0
        %3724 = vmatprep.subr.bf16.mxu0 0
        %3725 = vmatpush1.bf16.msra.mxu0 0
        %3726 = vmatprep.subr.bf16.mxu0 0
        %3727 = vmatpush1.bf16.msra.mxu0 0
        %3728 = vmatprep.subr.bf16.mxu0 0
        %3729 = vmatpush1.bf16.msra.mxu0 0
        %3730 = vmatprep.subr.bf16.mxu0 0
        %3731 = vmatpush1.bf16.msra.mxu0 0
        %3732 = vmatprep.subr.bf16.mxu0 0
        %3733 = vmatpush1.bf16.msra.mxu0 0
        %3734 = vmatprep.subr.bf16.mxu0 0
        %3735 = vmatpush1.bf16.msra.mxu0 0
        %3736 = vmatprep.subr.bf16.mxu0 0
        %3737 = vmatpush1.bf16.msra.mxu0 0
        %3738 = vmatprep.mubr.bf16.mxu0 0
        %3739 = vmatmul.mubr.bf16.gmra.mrb[0].mxu0 %v3701
        %v3740 = vpop.f32.mrb[0].mxu0
        %v3741 = vadd.f32 0.0, %v3740
        %v3742 = vpop.f32.mrb[0].mxu0
        %v3743 = vpop.f32.mrb[0].mxu0
        %v3744 = vpop.f32.mrb[0].mxu0
        %3745 = vdwg.mxu0
        %v3747 = vsel %vm2484, %v3459, 0
        %v3750 = vsel %vm3472, %v2444, 0
        %3752 = vmatprep.subr.bf16.mxu0 0
        %3753 = vmatpush1.bf16.msra.mxu0 %v3750
        %3754 = vmatprep.subr.bf16.mxu0 0
        %3755 = vmatpush1.bf16.msra.mxu0 0
        %3756 = vmatprep.subr.bf16.mxu0 0
        %3757 = vmatpush1.bf16.msra.mxu0 0
        %3758 = vmatprep.subr.bf16.mxu0 0
        %3759 = vmatpush1.bf16.msra.mxu0 0
        %3760 = vmatprep.subr.bf16.mxu0 0
        %3761 = vmatpush1.bf16.msra.mxu0 0
        %3762 = vmatprep.subr.bf16.mxu0 0
        %3763 = vmatpush1.bf16.msra.mxu0 0
        %3764 = vmatprep.subr.bf16.mxu0 0
        %3765 = vmatpush1.bf16.msra.mxu0 0
        %3766 = vmatprep.subr.bf16.mxu0 0
        %3767 = vmatpush1.bf16.msra.mxu0 0
        %3768 = vmatprep.subr.bf16.mxu0 0
        %3769 = vmatpush1.bf16.msra.mxu0 0
        %3770 = vmatprep.subr.bf16.mxu0 0
        %3771 = vmatpush1.bf16.msra.mxu0 0
        %3772 = vmatprep.subr.bf16.mxu0 0
        %3773 = vmatpush1.bf16.msra.mxu0 0
        %3774 = vmatprep.subr.bf16.mxu0 0
        %3775 = vmatpush1.bf16.msra.mxu0 0
        %3776 = vmatprep.subr.bf16.mxu0 0
        %3777 = vmatpush1.bf16.msra.mxu0 0
        %3778 = vmatprep.subr.bf16.mxu0 0
        %3779 = vmatpush1.bf16.msra.mxu0 0
        %3780 = vmatprep.subr.bf16.mxu0 0
        %3781 = vmatpush1.bf16.msra.mxu0 0
        %3782 = vmatprep.subr.bf16.mxu0 0
        %3783 = vmatpush1.bf16.msra.mxu0 0
        %3784 = vmatprep.mubr.bf16.mxu0 0
        %3785 = vmatmul.mubr.bf16.gmra.mrb[0].mxu0 %v3747
        %v3786 = vpop.f32.mrb[0].mxu0
        %v3787 = vadd.f32 0.0, %v3786
        %v3788 = vpop.f32.mrb[0].mxu0
        %v3789 = vpop.f32.mrb[0].mxu0
        %v3790 = vpop.f32.mrb[0].mxu0
        %3791 = vdwg.mxu0
        %v3793 = vsel %vm2484, %v3460, 0
        %v3796 = vsel %vm3472, %v2447, 0
        %3798 = vmatprep.subr.bf16.mxu0 0
        %3799 = vmatpush1.bf16.msra.mxu0 %v3796
        %3800 = vmatprep.subr.bf16.mxu0 0
        %3801 = vmatpush1.bf16.msra.mxu0 0
        %3802 = vmatprep.subr.bf16.mxu0 0
        %3803 = vmatpush1.bf16.msra.mxu0 0
        %3804 = vmatprep.subr.bf16.mxu0 0
        %3805 = vmatpush1.bf16.msra.mxu0 0
        %3806 = vmatprep.subr.bf16.mxu0 0
        %3807 = vmatpush1.bf16.msra.mxu0 0
        %3808 = vmatprep.subr.bf16.mxu0 0
        %3809 = vmatpush1.bf16.msra.mxu0 0
        %3810 = vmatprep.subr.bf16.mxu0 0
        %3811 = vmatpush1.bf16.msra.mxu0 0
        %3812 = vmatprep.subr.bf16.mxu0 0
        %3813 = vmatpush1.bf16.msra.mxu0 0
        %3814 = vmatprep.subr.bf16.mxu0 0
        %3815 = vmatpush1.bf16.msra.mxu0 0
        %3816 = vmatprep.subr.bf16.mxu0 0
        %3817 = vmatpush1.bf16.msra.mxu0 0
        %3818 = vmatprep.subr.bf16.mxu0 0
        %3819 = vmatpush1.bf16.msra.mxu0 0
        %3820 = vmatprep.subr.bf16.mxu0 0
        %3821 = vmatpush1.bf16.msra.mxu0 0
        %3822 = vmatprep.subr.bf16.mxu0 0
        %3823 = vmatpush1.bf16.msra.mxu0 0
        %3824 = vmatprep.subr.bf16.mxu0 0
        %3825 = vmatpush1.bf16.msra.mxu0 0
        %3826 = vmatprep.subr.bf16.mxu0 0
        %3827 = vmatpush1.bf16.msra.mxu0 0
        %3828 = vmatprep.subr.bf16.mxu0 0
        %3829 = vmatpush1.bf16.msra.mxu0 0
        %3830 = vmatprep.mubr.bf16.mxu0 0
        %3831 = vmatmul.mubr.bf16.gmra.mrb[0].mxu0 %v3793
        %v3832 = vpop.f32.mrb[0].mxu0
        %v3833 = vadd.f32 0.0, %v3832
        %v3834 = vpop.f32.mrb[0].mxu0
        %v3835 = vpop.f32.mrb[0].mxu0
        %v3836 = vpop.f32.mrb[0].mxu0
        %3837 = vdwg.mxu0
        %v3839 = vsel %vm2484, %v3461, 0
        %v3842 = vsel %vm3472, %v2450, 0
        %3844 = vmatprep.subr.bf16.mxu0 0
        %3845 = vmatpush1.bf16.msra.mxu0 %v3842
        %3846 = vmatprep.subr.bf16.mxu0 0
        %3847 = vmatpush1.bf16.msra.mxu0 0
        %3848 = vmatprep.subr.bf16.mxu0 0
        %3849 = vmatpush1.bf16.msra.mxu0 0
        %3850 = vmatprep.subr.bf16.mxu0 0
        %3851 = vmatpush1.bf16.msra.mxu0 0
        %3852 = vmatprep.subr.bf16.mxu0 0
        %3853 = vmatpush1.bf16.msra.mxu0 0
        %3854 = vmatprep.subr.bf16.mxu0 0
        %3855 = vmatpush1.bf16.msra.mxu0 0
        %3856 = vmatprep.subr.bf16.mxu0 0
        %3857 = vmatpush1.bf16.msra.mxu0 0
        %3858 = vmatprep.subr.bf16.mxu0 0
        %3859 = vmatpush1.bf16.msra.mxu0 0
        %3860 = vmatprep.subr.bf16.mxu0 0
        %3861 = vmatpush1.bf16.msra.mxu0 0
        %3862 = vmatprep.subr.bf16.mxu0 0
        %3863 = vmatpush1.bf16.msra.mxu0 0
        %3864 = vmatprep.subr.bf16.mxu0 0
        %3865 = vmatpush1.bf16.msra.mxu0 0
        %3866 = vmatprep.subr.bf16.mxu0 0
        %3867 = vmatpush1.bf16.msra.mxu0 0
        %3868 = vmatprep.subr.bf16.mxu0 0
        %3869 = vmatpush1.bf16.msra.mxu0 0
        %3870 = vmatprep.subr.bf16.mxu0 0
        %3871 = vmatpush1.bf16.msra.mxu0 0
        %3872 = vmatprep.subr.bf16.mxu0 0
        %3873 = vmatpush1.bf16.msra.mxu0 0
        %3874 = vmatprep.subr.bf16.mxu0 0
        %3875 = vmatpush1.bf16.msra.mxu0 0
        %3876 = vmatprep.mubr.bf16.mxu0 0
        %3877 = vmatmul.mubr.bf16.gmra.mrb[0].mxu0 %v3839
        %v3878 = vpop.f32.mrb[0].mxu0
        %v3879 = vadd.f32 0.0, %v3878
        %v3880 = vpop.f32.mrb[0].mxu0
        %v3881 = vpop.f32.mrb[0].mxu0
        %v3882 = vpop.f32.mrb[0].mxu0
        %3883 = vdwg.mxu0
        %v3885 = vsel %vm2484, %v3462, 0
        %v3888 = vsel %vm3472, %v2453, 0
        %3890 = vmatprep.subr.bf16.mxu0 0
        %3891 = vmatpush1.bf16.msra.mxu0 %v3888
        %3892 = vmatprep.subr.bf16.mxu0 0
        %3893 = vmatpush1.bf16.msra.mxu0 0
        %3894 = vmatprep.subr.bf16.mxu0 0
        %3895 = vmatpush1.bf16.msra.mxu0 0
        %3896 = vmatprep.subr.bf16.mxu0 0
        %3897 = vmatpush1.bf16.msra.mxu0 0
        %3898 = vmatprep.subr.bf16.mxu0 0
        %3899 = vmatpush1.bf16.msra.mxu0 0
        %3900 = vmatprep.subr.bf16.mxu0 0
        %3901 = vmatpush1.bf16.msra.mxu0 0
        %3902 = vmatprep.subr.bf16.mxu0 0
        %3903 = vmatpush1.bf16.msra.mxu0 0
        %3904 = vmatprep.subr.bf16.mxu0 0
        %3905 = vmatpush1.bf16.msra.mxu0 0
        %3906 = vmatprep.subr.bf16.mxu0 0
        %3907 = vmatpush1.bf16.msra.mxu0 0
        %3908 = vmatprep.subr.bf16.mxu0 0
        %3909 = vmatpush1.bf16.msra.mxu0 0
        %3910 = vmatprep.subr.bf16.mxu0 0
        %3911 = vmatpush1.bf16.msra.mxu0 0
        %3912 = vmatprep.subr.bf16.mxu0 0
        %3913 = vmatpush1.bf16.msra.mxu0 0
        %3914 = vmatprep.subr.bf16.mxu0 0
        %3915 = vmatpush1.bf16.msra.mxu0 0
        %3916 = vmatprep.subr.bf16.mxu0 0
        %3917 = vmatpush1.bf16.msra.mxu0 0
        %3918 = vmatprep.subr.bf16.mxu0 0
        %3919 = vmatpush1.bf16.msra.mxu0 0
        %3920 = vmatprep.subr.bf16.mxu0 0
        %3921 = vmatpush1.bf16.msra.mxu0 0
        %3922 = vmatprep.mubr.bf16.mxu0 0
        %3923 = vmatmul.mubr.bf16.gmra.mrb[0].mxu0 %v3885
        %v3924 = vpop.f32.mrb[0].mxu0
        %v3925 = vadd.f32 0.0, %v3924
        %v3926 = vpop.f32.mrb[0].mxu0
        %v3927 = vpop.f32.mrb[0].mxu0
        %v3928 = vpop.f32.mrb[0].mxu0
        %3929 = vdwg.mxu0
        %v3931 = vsel %vm2484, %v3463, 0
        %v3934 = vsel %vm3472, %v2456, 0
        %3936 = vmatprep.subr.bf16.mxu0 0
        %3937 = vmatpush1.bf16.msra.mxu0 %v3934
        %3938 = vmatprep.subr.bf16.mxu0 0
        %3939 = vmatpush1.bf16.msra.mxu0 0
        %3940 = vmatprep.subr.bf16.mxu0 0
        %3941 = vmatpush1.bf16.msra.mxu0 0
        %3942 = vmatprep.subr.bf16.mxu0 0
        %3943 = vmatpush1.bf16.msra.mxu0 0
        %3944 = vmatprep.subr.bf16.mxu0 0
        %3945 = vmatpush1.bf16.msra.mxu0 0
        %3946 = vmatprep.subr.bf16.mxu0 0
        %3947 = vmatpush1.bf16.msra.mxu0 0
        %3948 = vmatprep.subr.bf16.mxu0 0
        %3949 = vmatpush1.bf16.msra.mxu0 0
        %3950 = vmatprep.subr.bf16.mxu0 0
        %3951 = vmatpush1.bf16.msra.mxu0 0
        %3952 = vmatprep.subr.bf16.mxu0 0
        %3953 = vmatpush1.bf16.msra.mxu0 0
        %3954 = vmatprep.subr.bf16.mxu0 0
        %3955 = vmatpush1.bf16.msra.mxu0 0
        %3956 = vmatprep.subr.bf16.mxu0 0
        %3957 = vmatpush1.bf16.msra.mxu0 0
        %3958 = vmatprep.subr.bf16.mxu0 0
        %3959 = vmatpush1.bf16.msra.mxu0 0
        %3960 = vmatprep.subr.bf16.mxu0 0
        %3961 = vmatpush1.bf16.msra.mxu0 0
        %3962 = vmatprep.subr.bf16.mxu0 0
        %3963 = vmatpush1.bf16.msra.mxu0 0
        %3964 = vmatprep.subr.bf16.mxu0 0
        %3965 = vmatpush1.bf16.msra.mxu0 0
        %3966 = vmatprep.subr.bf16.mxu0 0
        %3967 = vmatpush1.bf16.msra.mxu0 0
        %3968 = vmatprep.mubr.bf16.mxu0 0
        %3969 = vmatmul.mubr.bf16.gmra.mrb[0].mxu0 %v3931
        %v3970 = vpop.f32.mrb[0].mxu0
        %v3971 = vadd.f32 0.0, %v3970
        %v3972 = vpop.f32.mrb[0].mxu0
        %v3973 = vpop.f32.mrb[0].mxu0
        %v3974 = vpop.f32.mrb[0].mxu0
        %3975 = vdwg.mxu0
        %v3977 = vsel %vm2484, %v3464, 0
        %v3980 = vsel %vm3472, %v2459, 0
        %3982 = vmatprep.subr.bf16.mxu0 0
        %3983 = vmatpush1.bf16.msra.mxu0 %v3980
        %3984 = vmatprep.subr.bf16.mxu0 0
        %3985 = vmatpush1.bf16.msra.mxu0 0
        %3986 = vmatprep.subr.bf16.mxu0 0
        %3987 = vmatpush1.bf16.msra.mxu0 0
        %3988 = vmatprep.subr.bf16.mxu0 0
        %3989 = vmatpush1.bf16.msra.mxu0 0
        %3990 = vmatprep.subr.bf16.mxu0 0
        %3991 = vmatpush1.bf16.msra.mxu0 0
        %3992 = vmatprep.subr.bf16.mxu0 0
        %3993 = vmatpush1.bf16.msra.mxu0 0
        %3994 = vmatprep.subr.bf16.mxu0 0
        %3995 = vmatpush1.bf16.msra.mxu0 0
        %3996 = vmatprep.subr.bf16.mxu0 0
        %3997 = vmatpush1.bf16.msra.mxu0 0
        %3998 = vmatprep.subr.bf16.mxu0 0
        %3999 = vmatpush1.bf16.msra.mxu0 0
        %4000 = vmatprep.subr.bf16.mxu0 0
        %4001 = vmatpush1.bf16.msra.mxu0 0
        %4002 = vmatprep.subr.bf16.mxu0 0
        %4003 = vmatpush1.bf16.msra.mxu0 0
        %4004 = vmatprep.subr.bf16.mxu0 0
        %4005 = vmatpush1.bf16.msra.mxu0 0
        %4006 = vmatprep.subr.bf16.mxu0 0
        %4007 = vmatpush1.bf16.msra.mxu0 0
        %4008 = vmatprep.subr.bf16.mxu0 0
        %4009 = vmatpush1.bf16.msra.mxu0 0
        %4010 = vmatprep.subr.bf16.mxu0 0
        %4011 = vmatpush1.bf16.msra.mxu0 0
        %4012 = vmatprep.subr.bf16.mxu0 0
        %4013 = vmatpush1.bf16.msra.mxu0 0
        %4014 = vmatprep.mubr.bf16.mxu0 0
        %4015 = vmatmul.mubr.bf16.gmra.mrb[0].mxu0 %v3977
        %v4016 = vpop.f32.mrb[0].mxu0
        %v4017 = vadd.f32 0.0, %v4016
        %v4018 = vpop.f32.mrb[0].mxu0
        %v4019 = vpop.f32.mrb[0].mxu0
        %v4020 = vpop.f32.mrb[0].mxu0
        %4021 = vdwg.mxu0
        %v4023 = vsel %vm2484, %v3465, 0
        %v4026 = vsel %vm3472, %v2462, 0
        %4028 = vmatprep.subr.bf16.mxu0 0
        %4029 = vmatpush1.bf16.msra.mxu0 %v4026
        %4030 = vmatprep.subr.bf16.mxu0 0
        %4031 = vmatpush1.bf16.msra.mxu0 0
        %4032 = vmatprep.subr.bf16.mxu0 0
        %4033 = vmatpush1.bf16.msra.mxu0 0
        %4034 = vmatprep.subr.bf16.mxu0 0
        %4035 = vmatpush1.bf16.msra.mxu0 0
        %4036 = vmatprep.subr.bf16.mxu0 0
        %4037 = vmatpush1.bf16.msra.mxu0 0
        %4038 = vmatprep.subr.bf16.mxu0 0
        %4039 = vmatpush1.bf16.msra.mxu0 0
        %4040 = vmatprep.subr.bf16.mxu0 0
        %4041 = vmatpush1.bf16.msra.mxu0 0
        %4042 = vmatprep.subr.bf16.mxu0 0
        %4043 = vmatpush1.bf16.msra.mxu0 0
        %4044 = vmatprep.subr.bf16.mxu0 0
        %4045 = vmatpush1.bf16.msra.mxu0 0
        %4046 = vmatprep.subr.bf16.mxu0 0
        %4047 = vmatpush1.bf16.msra.mxu0 0
        %4048 = vmatprep.subr.bf16.mxu0 0
        %4049 = vmatpush1.bf16.msra.mxu0 0
        %4050 = vmatprep.subr.bf16.mxu0 0
        %4051 = vmatpush1.bf16.msra.mxu0 0
        %4052 = vmatprep.subr.bf16.mxu0 0
        %4053 = vmatpush1.bf16.msra.mxu0 0
        %4054 = vmatprep.subr.bf16.mxu0 0
        %4055 = vmatpush1.bf16.msra.mxu0 0
        %4056 = vmatprep.subr.bf16.mxu0 0
        %4057 = vmatpush1.bf16.msra.mxu0 0
        %4058 = vmatprep.subr.bf16.mxu0 0
        %4059 = vmatpush1.bf16.msra.mxu0 0
        %4060 = vmatprep.mubr.bf16.mxu0 0
        %4061 = vmatmul.mubr.bf16.gmra.mrb[0].mxu0 %v4023
        %v4062 = vpop.f32.mrb[0].mxu0
        %v4063 = vadd.f32 0.0, %v4062
        %v4064 = vpop.f32.mrb[0].mxu0
        %v4065 = vpop.f32.mrb[0].mxu0
        %v4066 = vpop.f32.mrb[0].mxu0
        %4067 = vdwg.mxu0
        %v4069 = vsel %vm2484, %v3466, 0
        %v4072 = vsel %vm3472, %v2465, 0
        %4074 = vmatprep.subr.bf16.mxu0 0
        %4075 = vmatpush1.bf16.msra.mxu0 %v4072
        %4076 = vmatprep.subr.bf16.mxu0 0
        %4077 = vmatpush1.bf16.msra.mxu0 0
        %4078 = vmatprep.subr.bf16.mxu0 0
        %4079 = vmatpush1.bf16.msra.mxu0 0
        %4080 = vmatprep.subr.bf16.mxu0 0
        %4081 = vmatpush1.bf16.msra.mxu0 0
        %4082 = vmatprep.subr.bf16.mxu0 0
        %4083 = vmatpush1.bf16.msra.mxu0 0
        %4084 = vmatprep.subr.bf16.mxu0 0
        %4085 = vmatpush1.bf16.msra.mxu0 0
        %4086 = vmatprep.subr.bf16.mxu0 0
        %4087 = vmatpush1.bf16.msra.mxu0 0
        %4088 = vmatprep.subr.bf16.mxu0 0
        %4089 = vmatpush1.bf16.msra.mxu0 0
        %4090 = vmatprep.subr.bf16.mxu0 0
        %4091 = vmatpush1.bf16.msra.mxu0 0
        %4092 = vmatprep.subr.bf16.mxu0 0
        %4093 = vmatpush1.bf16.msra.mxu0 0
        %4094 = vmatprep.subr.bf16.mxu0 0
        %4095 = vmatpush1.bf16.msra.mxu0 0
        %4096 = vmatprep.subr.bf16.mxu0 0
        %4097 = vmatpush1.bf16.msra.mxu0 0
        %4098 = vmatprep.subr.bf16.mxu0 0
        %4099 = vmatpush1.bf16.msra.mxu0 0
        %4100 = vmatprep.subr.bf16.mxu0 0
        %4101 = vmatpush1.bf16.msra.mxu0 0
        %4102 = vmatprep.subr.bf16.mxu0 0
        %4103 = vmatpush1.bf16.msra.mxu0 0
        %4104 = vmatprep.subr.bf16.mxu0 0
        %4105 = vmatpush1.bf16.msra.mxu0 0
        %4106 = vmatprep.mubr.bf16.mxu0 0
        %4107 = vmatmul.mubr.bf16.gmra.mrb[0].mxu0 %v4069
        %v4108 = vpop.f32.mrb[0].mxu0
        %v4109 = vadd.f32 0.0, %v4108
        %v4110 = vpop.f32.mrb[0].mxu0
        %v4111 = vpop.f32.mrb[0].mxu0
        %v4112 = vpop.f32.mrb[0].mxu0
        %4113 = vdwg.mxu0
        %v4115 = vsel %vm2484, %v3467, 0
        %v4118 = vsel %vm3472, %v2468, 0
        %4120 = vmatprep.subr.bf16.mxu0 0
        %4121 = vmatpush1.bf16.msra.mxu0 %v4118
        %4122 = vmatprep.subr.bf16.mxu0 0
        %4123 = vmatpush1.bf16.msra.mxu0 0
        %4124 = vmatprep.subr.bf16.mxu0 0
        %4125 = vmatpush1.bf16.msra.mxu0 0
        %4126 = vmatprep.subr.bf16.mxu0 0
        %4127 = vmatpush1.bf16.msra.mxu0 0
        %4128 = vmatprep.subr.bf16.mxu0 0
        %4129 = vmatpush1.bf16.msra.mxu0 0
        %4130 = vmatprep.subr.bf16.mxu0 0
        %4131 = vmatpush1.bf16.msra.mxu0 0
        %4132 = vmatprep.subr.bf16.mxu0 0
        %4133 = vmatpush1.bf16.msra.mxu0 0
        %4134 = vmatprep.subr.bf16.mxu0 0
        %4135 = vmatpush1.bf16.msra.mxu0 0
        %4136 = vmatprep.subr.bf16.mxu0 0
        %4137 = vmatpush1.bf16.msra.mxu0 0
        %4138 = vmatprep.subr.bf16.mxu0 0
        %4139 = vmatpush1.bf16.msra.mxu0 0
        %4140 = vmatprep.subr.bf16.mxu0 0
        %4141 = vmatpush1.bf16.msra.mxu0 0
        %4142 = vmatprep.subr.bf16.mxu0 0
        %4143 = vmatpush1.bf16.msra.mxu0 0
        %4144 = vmatprep.subr.bf16.mxu0 0
        %4145 = vmatpush1.bf16.msra.mxu0 0
        %4146 = vmatprep.subr.bf16.mxu0 0
        %4147 = vmatpush1.bf16.msra.mxu0 0
        %4148 = vmatprep.subr.bf16.mxu0 0
        %4149 = vmatpush1.bf16.msra.mxu0 0
        %4150 = vmatprep.subr.bf16.mxu0 0
        %4151 = vmatpush1.bf16.msra.mxu0 0
        %4152 = vmatprep.mubr.bf16.mxu0 0
        %4153 = vmatmul.mubr.bf16.gmra.mrb[0].mxu0 %v4115
        %v4154 = vpop.f32.mrb[0].mxu0
        %v4155 = vadd.f32 0.0, %v4154
        %v4156 = vpop.f32.mrb[0].mxu0
        %v4157 = vpop.f32.mrb[0].mxu0
        %v4158 = vpop.f32.mrb[0].mxu0
        %4159 = vdwg.mxu0
        %v4161 = vsel %vm2484, %v3468, 0
        %v4164 = vsel %vm3472, %v2471, 0
        %4166 = vmatprep.subr.bf16.mxu0 0
        %4167 = vmatpush1.bf16.msra.mxu0 %v4164
        %4168 = vmatprep.subr.bf16.mxu0 0
        %4169 = vmatpush1.bf16.msra.mxu0 0
        %4170 = vmatprep.subr.bf16.mxu0 0
        %4171 = vmatpush1.bf16.msra.mxu0 0
        %4172 = vmatprep.subr.bf16.mxu0 0
        %4173 = vmatpush1.bf16.msra.mxu0 0
        %4174 = vmatprep.subr.bf16.mxu0 0
        %4175 = vmatpush1.bf16.msra.mxu0 0
        %4176 = vmatprep.subr.bf16.mxu0 0
        %4177 = vmatpush1.bf16.msra.mxu0 0
        %4178 = vmatprep.subr.bf16.mxu0 0
        %4179 = vmatpush1.bf16.msra.mxu0 0
        %4180 = vmatprep.subr.bf16.mxu0 0
        %4181 = vmatpush1.bf16.msra.mxu0 0
        %4182 = vmatprep.subr.bf16.mxu0 0
        %4183 = vmatpush1.bf16.msra.mxu0 0
        %4184 = vmatprep.subr.bf16.mxu0 0
        %4185 = vmatpush1.bf16.msra.mxu0 0
        %4186 = vmatprep.subr.bf16.mxu0 0
        %4187 = vmatpush1.bf16.msra.mxu0 0
        %4188 = vmatprep.subr.bf16.mxu0 0
        %4189 = vmatpush1.bf16.msra.mxu0 0
        %4190 = vmatprep.subr.bf16.mxu0 0
        %4191 = vmatpush1.bf16.msra.mxu0 0
        %4192 = vmatprep.subr.bf16.mxu0 0
        %4193 = vmatpush1.bf16.msra.mxu0 0
        %4194 = vmatprep.subr.bf16.mxu0 0
        %4195 = vmatpush1.bf16.msra.mxu0 0
        %4196 = vmatprep.subr.bf16.mxu0 0
        %4197 = vmatpush1.bf16.msra.mxu0 0
        %4198 = vmatprep.mubr.bf16.mxu0 0
        %4199 = vmatmul.mubr.bf16.gmra.mrb[0].mxu0 %v4161
        %v4200 = vpop.f32.mrb[0].mxu0
        %v4201 = vadd.f32 0.0, %v4200
        %v4202 = vpop.f32.mrb[0].mxu0
        %v4203 = vpop.f32.mrb[0].mxu0
        %v4204 = vpop.f32.mrb[0].mxu0
        %4205 = vdwg.mxu0
        %v4206 = vcombine.low %v3511, %v3603
        %v4207 = vcombine.high %v3511, %v3603
        %v4209 = vunpack.c.l.s4 1983009808
        %v4210 = vunpack.c.0.s8 %v4209
        %v4211 = vlaneseq
        %v4212 = vshrl.u32 %v4211, 7
        %v4213 = vsub.s32 %v4210, %v4212
        %v4214 = vrot.slane %v4206, %v4213
        %v4216 = vunpack.c.l.s4 1983009808
        %v4217 = vunpack.c.0.s8 %v4216
        %v4218 = vlaneseq
        %v4219 = vshrl.u32 %v4218, 7
        %v4220 = vsub.s32 %v4217, %v4219
        %v4221 = vrot.slane %v4207, %v4220
        %v4222 = vcombine.low %v3557, %v3649
        %v4223 = vcombine.high %v3557, %v3649
        %v4225 = vunpack.c.l.s4 1983009808
        %v4226 = vunpack.c.0.s8 %v4225
        %v4227 = vlaneseq
        %v4228 = vshrl.u32 %v4227, 7
        %v4229 = vsub.s32 %v4226, %v4228
        %v4230 = vrot.slane %v4222, %v4229
        %v4232 = vunpack.c.l.s4 1983009808
        %v4233 = vunpack.c.0.s8 %v4232
        %v4234 = vlaneseq
        %v4235 = vshrl.u32 %v4234, 7
        %v4236 = vsub.s32 %v4233, %v4235
        %v4237 = vrot.slane %v4223, %v4236
        %v4238 = vcombine.low %v4214, %v4230
        %v4239 = vcombine.high %v4214, %v4230
        %v4241 = vunpack.c.l.s4 1934713408
        %v4242 = vunpack.c.0.s8 %v4241
        %v4243 = vlaneseq
        %v4244 = vshrl.u32 %v4243, 7
        %v4245 = vsub.s32 %v4242, %v4244
        %v4246 = vrot.slane %v4238, %v4245
        %v4248 = vunpack.c.l.s4 1934713408
        %v4249 = vunpack.c.0.s8 %v4248
        %v4250 = vlaneseq
        %v4251 = vshrl.u32 %v4250, 7
        %v4252 = vsub.s32 %v4249, %v4251
        %v4253 = vrot.slane %v4239, %v4252
        %v4254 = vcombine.low %v4221, %v4237
        %v4255 = vcombine.high %v4221, %v4237
        %v4257 = vunpack.c.l.s4 1934713408
        %v4258 = vunpack.c.0.s8 %v4257
        %v4259 = vlaneseq
        %v4260 = vshrl.u32 %v4259, 7
        %v4261 = vsub.s32 %v4258, %v4260
        %v4262 = vrot.slane %v4254, %v4261
        %v4264 = vunpack.c.l.s4 1934713408
        %v4265 = vunpack.c.0.s8 %v4264
        %v4266 = vlaneseq
        %v4267 = vshrl.u32 %v4266, 7
        %v4268 = vsub.s32 %v4265, %v4267
        %v4269 = vrot.slane %v4255, %v4268
        %v4270 = vcombine.high %v4246, 0.0
        %v4271 = vcombine.high %v4253, 0.0
        %v4272 = vcombine.high %v4262, 0.0
        %v4273 = vcombine.high %v4269, 0.0
        %v4274 = vcombine.low %v3695, %v3787
        %v4275 = vcombine.high %v3695, %v3787
        %v4277 = vunpack.c.l.s4 1983009808
        %v4278 = vunpack.c.0.s8 %v4277
        %v4279 = vlaneseq
        %v4280 = vshrl.u32 %v4279, 7
        %v4281 = vsub.s32 %v4278, %v4280
        %v4282 = vrot.slane %v4274, %v4281
        %v4284 = vunpack.c.l.s4 1983009808
        %v4285 = vunpack.c.0.s8 %v4284
        %v4286 = vlaneseq
        %v4287 = vshrl.u32 %v4286, 7
        %v4288 = vsub.s32 %v4285, %v4287
        %v4289 = vrot.slane %v4275, %v4288
        %v4290 = vcombine.low %v3741, %v3833
        %v4291 = vcombine.high %v3741, %v3833
        %v4293 = vunpack.c.l.s4 1983009808
        %v4294 = vunpack.c.0.s8 %v4293
        %v4295 = vlaneseq
        %v4296 = vshrl.u32 %v4295, 7
        %v4297 = vsub.s32 %v4294, %v4296
        %v4298 = vrot.slane %v4290, %v4297
        %v4300 = vunpack.c.l.s4 1983009808
        %v4301 = vunpack.c.0.s8 %v4300
        %v4302 = vlaneseq
        %v4303 = vshrl.u32 %v4302, 7
        %v4304 = vsub.s32 %v4301, %v4303
        %v4305 = vrot.slane %v4291, %v4304
        %v4306 = vcombine.low %v4282, %v4298
        %v4307 = vcombine.high %v4282, %v4298
        %v4309 = vunpack.c.l.s4 1934713408
        %v4310 = vunpack.c.0.s8 %v4309
        %v4311 = vlaneseq
        %v4312 = vshrl.u32 %v4311, 7
        %v4313 = vsub.s32 %v4310, %v4312
        %v4314 = vrot.slane %v4306, %v4313
        %v4316 = vunpack.c.l.s4 1934713408
        %v4317 = vunpack.c.0.s8 %v4316
        %v4318 = vlaneseq
        %v4319 = vshrl.u32 %v4318, 7
        %v4320 = vsub.s32 %v4317, %v4319
        %v4321 = vrot.slane %v4307, %v4320
        %v4322 = vcombine.low %v4289, %v4305
        %v4323 = vcombine.high %v4289, %v4305
        %v4325 = vunpack.c.l.s4 1934713408
        %v4326 = vunpack.c.0.s8 %v4325
        %v4327 = vlaneseq
        %v4328 = vshrl.u32 %v4327, 7
        %v4329 = vsub.s32 %v4326, %v4328
        %v4330 = vrot.slane %v4322, %v4329
        %v4332 = vunpack.c.l.s4 1934713408
        %v4333 = vunpack.c.0.s8 %v4332
        %v4334 = vlaneseq
        %v4335 = vshrl.u32 %v4334, 7
        %v4336 = vsub.s32 %v4333, %v4335
        %v4337 = vrot.slane %v4323, %v4336
        %v4338 = vcombine.high %v4314, 0.0
        %v4339 = vcombine.high %v4321, 0.0
        %v4340 = vcombine.high %v4330, 0.0
        %v4341 = vcombine.high %v4337, 0.0
        %v4342 = vcombine.low %v3879, %v3971
        %v4343 = vcombine.high %v3879, %v3971
        %v4345 = vunpack.c.l.s4 1983009808
        %v4346 = vunpack.c.0.s8 %v4345
        %v4347 = vlaneseq
        %v4348 = vshrl.u32 %v4347, 7
        %v4349 = vsub.s32 %v4346, %v4348
        %v4350 = vrot.slane %v4342, %v4349
        %v4352 = vunpack.c.l.s4 1983009808
        %v4353 = vunpack.c.0.s8 %v4352
        %v4354 = vlaneseq
        %v4355 = vshrl.u32 %v4354, 7
        %v4356 = vsub.s32 %v4353, %v4355
        %v4357 = vrot.slane %v4343, %v4356
        %v4358 = vcombine.low %v3925, %v4017
        %v4359 = vcombine.high %v3925, %v4017
        %v4361 = vunpack.c.l.s4 1983009808
        %v4362 = vunpack.c.0.s8 %v4361
        %v4363 = vlaneseq
        %v4364 = vshrl.u32 %v4363, 7
        %v4365 = vsub.s32 %v4362, %v4364
        %v4366 = vrot.slane %v4358, %v4365
        %v4368 = vunpack.c.l.s4 1983009808
        %v4369 = vunpack.c.0.s8 %v4368
        %v4370 = vlaneseq
        %v4371 = vshrl.u32 %v4370, 7
        %v4372 = vsub.s32 %v4369, %v4371
        %v4373 = vrot.slane %v4359, %v4372
        %v4374 = vcombine.low %v4350, %v4366
        %v4375 = vcombine.high %v4350, %v4366
        %v4377 = vunpack.c.l.s4 1934713408
        %v4378 = vunpack.c.0.s8 %v4377
        %v4379 = vlaneseq
        %v4380 = vshrl.u32 %v4379, 7
        %v4381 = vsub.s32 %v4378, %v4380
        %v4382 = vrot.slane %v4374, %v4381
        %v4384 = vunpack.c.l.s4 1934713408
        %v4385 = vunpack.c.0.s8 %v4384
        %v4386 = vlaneseq
        %v4387 = vshrl.u32 %v4386, 7
        %v4388 = vsub.s32 %v4385, %v4387
        %v4389 = vrot.slane %v4375, %v4388
        %v4390 = vcombine.low %v4357, %v4373
        %v4391 = vcombine.high %v4357, %v4373
        %v4393 = vunpack.c.l.s4 1934713408
        %v4394 = vunpack.c.0.s8 %v4393
        %v4395 = vlaneseq
        %v4396 = vshrl.u32 %v4395, 7
        %v4397 = vsub.s32 %v4394, %v4396
        %v4398 = vrot.slane %v4390, %v4397
        %v4400 = vunpack.c.l.s4 1934713408
        %v4401 = vunpack.c.0.s8 %v4400
        %v4402 = vlaneseq
        %v4403 = vshrl.u32 %v4402, 7
        %v4404 = vsub.s32 %v4401, %v4403
        %v4405 = vrot.slane %v4391, %v4404
        %v4406 = vcombine.high %v4382, 0.0
        %v4407 = vcombine.high %v4389, 0.0
        %v4408 = vcombine.high %v4398, 0.0
        %v4409 = vcombine.high %v4405, 0.0
        %v4410 = vcombine.low %v4063, %v4155
        %v4411 = vcombine.high %v4063, %v4155
        %v4413 = vunpack.c.l.s4 1983009808
        %v4414 = vunpack.c.0.s8 %v4413
        %v4415 = vlaneseq
        %v4416 = vshrl.u32 %v4415, 7
        %v4417 = vsub.s32 %v4414, %v4416
        %v4418 = vrot.slane %v4410, %v4417
        %v4420 = vunpack.c.l.s4 1983009808
        %v4421 = vunpack.c.0.s8 %v4420
        %v4422 = vlaneseq
        %v4423 = vshrl.u32 %v4422, 7
        %v4424 = vsub.s32 %v4421, %v4423
        %v4425 = vrot.slane %v4411, %v4424
        %v4426 = vcombine.low %v4109, %v4201
        %v4427 = vcombine.high %v4109, %v4201
        %v4429 = vunpack.c.l.s4 1983009808
        %v4430 = vunpack.c.0.s8 %v4429
        %v4431 = vlaneseq
        %v4432 = vshrl.u32 %v4431, 7
        %v4433 = vsub.s32 %v4430, %v4432
        %v4434 = vrot.slane %v4426, %v4433
        %v4436 = vunpack.c.l.s4 1983009808
        %v4437 = vunpack.c.0.s8 %v4436
        %v4438 = vlaneseq
        %v4439 = vshrl.u32 %v4438, 7
        %v4440 = vsub.s32 %v4437, %v4439
        %v4441 = vrot.slane %v4427, %v4440
        %v4442 = vcombine.low %v4418, %v4434
        %v4443 = vcombine.high %v4418, %v4434
        %v4445 = vunpack.c.l.s4 1934713408
        %v4446 = vunpack.c.0.s8 %v4445
        %v4447 = vlaneseq
        %v4448 = vshrl.u32 %v4447, 7
        %v4449 = vsub.s32 %v4446, %v4448
        %v4450 = vrot.slane %v4442, %v4449
        %v4452 = vunpack.c.l.s4 1934713408
        %v4453 = vunpack.c.0.s8 %v4452
        %v4454 = vlaneseq
        %v4455 = vshrl.u32 %v4454, 7
        %v4456 = vsub.s32 %v4453, %v4455
        %v4457 = vrot.slane %v4443, %v4456
        %v4458 = vcombine.low %v4425, %v4441
        %v4459 = vcombine.high %v4425, %v4441
        %v4461 = vunpack.c.l.s4 1934713408
        %v4462 = vunpack.c.0.s8 %v4461
        %v4463 = vlaneseq
        %v4464 = vshrl.u32 %v4463, 7
        %v4465 = vsub.s32 %v4462, %v4464
        %v4466 = vrot.slane %v4458, %v4465
        %v4468 = vunpack.c.l.s4 1934713408
        %v4469 = vunpack.c.0.s8 %v4468
        %v4470 = vlaneseq
        %v4471 = vshrl.u32 %v4470, 7
        %v4472 = vsub.s32 %v4469, %v4471
        %v4473 = vrot.slane %v4459, %v4472
        %v4474 = vcombine.high %v4450, 0.0
        %v4475 = vcombine.high %v4457, 0.0
        %v4476 = vcombine.high %v4466, 0.0
        %v4477 = vcombine.high %v4473, 0.0
        %v4478 = vcombine.low %v4246, %v4253
        %v4480 = vunpack.c.l.s4 1983009808
        %v4481 = vunpack.c.0.s8 %v4480
        %v4482 = vlaneseq
        %v4483 = vshrl.u32 %v4482, 7
        %v4484 = vsub.s32 %v4481, %v4483
        %v4485 = vrot.slane %v4478, %v4484
        %v4486 = vcombine.low %v4270, %v4271
        %v4488 = vunpack.c.l.s4 1983009808
        %v4489 = vunpack.c.0.s8 %v4488
        %v4490 = vlaneseq
        %v4491 = vshrl.u32 %v4490, 7
        %v4492 = vsub.s32 %v4489, %v4491
        %v4493 = vrot.slane %v4486, %v4492
        %v4494 = vcombine.low %v4262, %v4269
        %v4496 = vunpack.c.l.s4 1983009808
        %v4497 = vunpack.c.0.s8 %v4496
        %v4498 = vlaneseq
        %v4499 = vshrl.u32 %v4498, 7
        %v4500 = vsub.s32 %v4497, %v4499
        %v4501 = vrot.slane %v4494, %v4500
        %v4502 = vcombine.low %v4272, %v4273
        %v4504 = vunpack.c.l.s4 1983009808
        %v4505 = vunpack.c.0.s8 %v4504
        %v4506 = vlaneseq
        %v4507 = vshrl.u32 %v4506, 7
        %v4508 = vsub.s32 %v4505, %v4507
        %v4509 = vrot.slane %v4502, %v4508
        %v4510 = vcombine.low %v4485, %v4493
        %v4511 = vcombine.high %v4485, %v4493
        %v4513 = vunpack.c.l.s4 1934713408
        %v4514 = vunpack.c.0.s8 %v4513
        %v4515 = vlaneseq
        %v4516 = vshrl.u32 %v4515, 7
        %v4517 = vsub.s32 %v4514, %v4516
        %v4518 = vrot.slane %v4510, %v4517
        %v4520 = vunpack.c.l.s4 1934713408
        %v4521 = vunpack.c.0.s8 %v4520
        %v4522 = vlaneseq
        %v4523 = vshrl.u32 %v4522, 7
        %v4524 = vsub.s32 %v4521, %v4523
        %v4525 = vrot.slane %v4511, %v4524
        %v4526 = vcombine.low %v4501, %v4509
        %v4527 = vcombine.high %v4501, %v4509
        %v4529 = vunpack.c.l.s4 1934713408
        %v4530 = vunpack.c.0.s8 %v4529
        %v4531 = vlaneseq
        %v4532 = vshrl.u32 %v4531, 7
        %v4533 = vsub.s32 %v4530, %v4532
        %v4534 = vrot.slane %v4526, %v4533
        %v4536 = vunpack.c.l.s4 1934713408
        %v4537 = vunpack.c.0.s8 %v4536
        %v4538 = vlaneseq
        %v4539 = vshrl.u32 %v4538, 7
        %v4540 = vsub.s32 %v4537, %v4539
        %v4541 = vrot.slane %v4527, %v4540
        %v4542 = vcombine.low %v4518, %v4534
        %v4543 = vcombine.high %v4518, %v4534
        %v4544 = vcombine.low %v4525, %v4541
        %v4545 = vcombine.high %v4525, %v4541
        %v4546 = vcombine.low %v4314, %v4321
        %v4548 = vunpack.c.l.s4 1983009808
        %v4549 = vunpack.c.0.s8 %v4548
        %v4550 = vlaneseq
        %v4551 = vshrl.u32 %v4550, 7
        %v4552 = vsub.s32 %v4549, %v4551
        %v4553 = vrot.slane %v4546, %v4552
        %v4554 = vcombine.low %v4338, %v4339
        %v4556 = vunpack.c.l.s4 1983009808
        %v4557 = vunpack.c.0.s8 %v4556
        %v4558 = vlaneseq
        %v4559 = vshrl.u32 %v4558, 7
        %v4560 = vsub.s32 %v4557, %v4559
        %v4561 = vrot.slane %v4554, %v4560
        %v4562 = vcombine.low %v4330, %v4337
        %v4564 = vunpack.c.l.s4 1983009808
        %v4565 = vunpack.c.0.s8 %v4564
        %v4566 = vlaneseq
        %v4567 = vshrl.u32 %v4566, 7
        %v4568 = vsub.s32 %v4565, %v4567
        %v4569 = vrot.slane %v4562, %v4568
        %v4570 = vcombine.low %v4340, %v4341
        %v4572 = vunpack.c.l.s4 1983009808
        %v4573 = vunpack.c.0.s8 %v4572
        %v4574 = vlaneseq
        %v4575 = vshrl.u32 %v4574, 7
        %v4576 = vsub.s32 %v4573, %v4575
        %v4577 = vrot.slane %v4570, %v4576
        %v4578 = vcombine.low %v4553, %v4561
        %v4579 = vcombine.high %v4553, %v4561
        %v4581 = vunpack.c.l.s4 1934713408
        %v4582 = vunpack.c.0.s8 %v4581
        %v4583 = vlaneseq
        %v4584 = vshrl.u32 %v4583, 7
        %v4585 = vsub.s32 %v4582, %v4584
        %v4586 = vrot.slane %v4578, %v4585
        %v4588 = vunpack.c.l.s4 1934713408
        %v4589 = vunpack.c.0.s8 %v4588
        %v4590 = vlaneseq
        %v4591 = vshrl.u32 %v4590, 7
        %v4592 = vsub.s32 %v4589, %v4591
        %v4593 = vrot.slane %v4579, %v4592
        %v4594 = vcombine.low %v4569, %v4577
        %v4595 = vcombine.high %v4569, %v4577
        %v4597 = vunpack.c.l.s4 1934713408
        %v4598 = vunpack.c.0.s8 %v4597
        %v4599 = vlaneseq
        %v4600 = vshrl.u32 %v4599, 7
        %v4601 = vsub.s32 %v4598, %v4600
        %v4602 = vrot.slane %v4594, %v4601
        %v4604 = vunpack.c.l.s4 1934713408
        %v4605 = vunpack.c.0.s8 %v4604
        %v4606 = vlaneseq
        %v4607 = vshrl.u32 %v4606, 7
        %v4608 = vsub.s32 %v4605, %v4607
        %v4609 = vrot.slane %v4595, %v4608
        %v4610 = vcombine.low %v4586, %v4602
        %v4611 = vcombine.high %v4586, %v4602
        %v4612 = vcombine.low %v4593, %v4609
        %v4613 = vcombine.high %v4593, %v4609
        %v4614 = vcombine.low %v4382, %v4389
        %v4616 = vunpack.c.l.s4 1983009808
        %v4617 = vunpack.c.0.s8 %v4616
        %v4618 = vlaneseq
        %v4619 = vshrl.u32 %v4618, 7
        %v4620 = vsub.s32 %v4617, %v4619
        %v4621 = vrot.slane %v4614, %v4620
        %v4622 = vcombine.low %v4406, %v4407
        %v4624 = vunpack.c.l.s4 1983009808
        %v4625 = vunpack.c.0.s8 %v4624
        %v4626 = vlaneseq
        %v4627 = vshrl.u32 %v4626, 7
        %v4628 = vsub.s32 %v4625, %v4627
        %v4629 = vrot.slane %v4622, %v4628
        %v4630 = vcombine.low %v4398, %v4405
        %v4632 = vunpack.c.l.s4 1983009808
        %v4633 = vunpack.c.0.s8 %v4632
        %v4634 = vlaneseq
        %v4635 = vshrl.u32 %v4634, 7
        %v4636 = vsub.s32 %v4633, %v4635
        %v4637 = vrot.slane %v4630, %v4636
        %v4638 = vcombine.low %v4408, %v4409
        %v4640 = vunpack.c.l.s4 1983009808
        %v4641 = vunpack.c.0.s8 %v4640
        %v4642 = vlaneseq
        %v4643 = vshrl.u32 %v4642, 7
        %v4644 = vsub.s32 %v4641, %v4643
        %v4645 = vrot.slane %v4638, %v4644
        %v4646 = vcombine.low %v4621, %v4629
        %v4647 = vcombine.high %v4621, %v4629
        %v4649 = vunpack.c.l.s4 1934713408
        %v4650 = vunpack.c.0.s8 %v4649
        %v4651 = vlaneseq
        %v4652 = vshrl.u32 %v4651, 7
        %v4653 = vsub.s32 %v4650, %v4652
        %v4654 = vrot.slane %v4646, %v4653
        %v4656 = vunpack.c.l.s4 1934713408
        %v4657 = vunpack.c.0.s8 %v4656
        %v4658 = vlaneseq
        %v4659 = vshrl.u32 %v4658, 7
        %v4660 = vsub.s32 %v4657, %v4659
        %v4661 = vrot.slane %v4647, %v4660
        %v4662 = vcombine.low %v4637, %v4645
        %v4663 = vcombine.high %v4637, %v4645
        %v4665 = vunpack.c.l.s4 1934713408
        %v4666 = vunpack.c.0.s8 %v4665
        %v4667 = vlaneseq
        %v4668 = vshrl.u32 %v4667, 7
        %v4669 = vsub.s32 %v4666, %v4668
        %v4670 = vrot.slane %v4662, %v4669
        %v4672 = vunpack.c.l.s4 1934713408
        %v4673 = vunpack.c.0.s8 %v4672
        %v4674 = vlaneseq
        %v4675 = vshrl.u32 %v4674, 7
        %v4676 = vsub.s32 %v4673, %v4675
        %v4677 = vrot.slane %v4663, %v4676
        %v4678 = vcombine.low %v4654, %v4670
        %v4679 = vcombine.high %v4654, %v4670
        %v4680 = vcombine.low %v4661, %v4677
        %v4681 = vcombine.high %v4661, %v4677
        %v4682 = vcombine.low %v4450, %v4457
        %v4684 = vunpack.c.l.s4 1983009808
        %v4685 = vunpack.c.0.s8 %v4684
        %v4686 = vlaneseq
        %v4687 = vshrl.u32 %v4686, 7
        %v4688 = vsub.s32 %v4685, %v4687
        %v4689 = vrot.slane %v4682, %v4688
        %v4690 = vcombine.low %v4474, %v4475
        %v4692 = vunpack.c.l.s4 1983009808
        %v4693 = vunpack.c.0.s8 %v4692
        %v4694 = vlaneseq
        %v4695 = vshrl.u32 %v4694, 7
        %v4696 = vsub.s32 %v4693, %v4695
        %v4697 = vrot.slane %v4690, %v4696
        %v4698 = vcombine.low %v4466, %v4473
        %v4700 = vunpack.c.l.s4 1983009808
        %v4701 = vunpack.c.0.s8 %v4700
        %v4702 = vlaneseq
        %v4703 = vshrl.u32 %v4702, 7
        %v4704 = vsub.s32 %v4701, %v4703
        %v4705 = vrot.slane %v4698, %v4704
        %v4706 = vcombine.low %v4476, %v4477
        %v4708 = vunpack.c.l.s4 1983009808
        %v4709 = vunpack.c.0.s8 %v4708
        %v4710 = vlaneseq
        %v4711 = vshrl.u32 %v4710, 7
        %v4712 = vsub.s32 %v4709, %v4711
        %v4713 = vrot.slane %v4706, %v4712
        %v4714 = vcombine.low %v4689, %v4697
        %v4715 = vcombine.high %v4689, %v4697
        %v4717 = vunpack.c.l.s4 1934713408
        %v4718 = vunpack.c.0.s8 %v4717
        %v4719 = vlaneseq
        %v4720 = vshrl.u32 %v4719, 7
        %v4721 = vsub.s32 %v4718, %v4720
        %v4722 = vrot.slane %v4714, %v4721
        %v4724 = vunpack.c.l.s4 1934713408
        %v4725 = vunpack.c.0.s8 %v4724
        %v4726 = vlaneseq
        %v4727 = vshrl.u32 %v4726, 7
        %v4728 = vsub.s32 %v4725, %v4727
        %v4729 = vrot.slane %v4715, %v4728
        %v4730 = vcombine.low %v4705, %v4713
        %v4731 = vcombine.high %v4705, %v4713
        %v4733 = vunpack.c.l.s4 1934713408
        %v4734 = vunpack.c.0.s8 %v4733
        %v4735 = vlaneseq
        %v4736 = vshrl.u32 %v4735, 7
        %v4737 = vsub.s32 %v4734, %v4736
        %v4738 = vrot.slane %v4730, %v4737
        %v4740 = vunpack.c.l.s4 1934713408
        %v4741 = vunpack.c.0.s8 %v4740
        %v4742 = vlaneseq
        %v4743 = vshrl.u32 %v4742, 7
        %v4744 = vsub.s32 %v4741, %v4743
        %v4745 = vrot.slane %v4731, %v4744
        %v4746 = vcombine.low %v4722, %v4738
        %v4747 = vcombine.high %v4722, %v4738
        %v4748 = vcombine.low %v4729, %v4745
        %v4749 = vcombine.high %v4729, %v4745
        %4754 = vrot.lane.b32.xlu0 %v4543, 8
        %v4755 = vpop.permute.xlu0 %4754
        %4756 = vrot.lane.b32.xlu0 %v4611, 8
        %v4757 = vpop.permute.xlu0 %4756
        %4758 = vrot.lane.b32.xlu0 %v4679, 8
        %v4759 = vpop.permute.xlu0 %4758
        %4760 = vrot.lane.b32.xlu0 %v4747, 8
        %v4761 = vpop.permute.xlu0 %4760
        %4770 = vrot.lane.b32.xlu0 %v4544, 16
        %v4771 = vpop.permute.xlu0 %4770
        %4772 = vrot.lane.b32.xlu0 %v4612, 16
        %v4773 = vpop.permute.xlu0 %4772
        %4774 = vrot.lane.b32.xlu0 %v4680, 16
        %v4775 = vpop.permute.xlu0 %4774
        %4776 = vrot.lane.b32.xlu0 %v4748, 16
        %v4777 = vpop.permute.xlu0 %4776
        %4786 = vrot.lane.b32.xlu0 %v4545, 24
        %v4787 = vpop.permute.xlu0 %4786
        %4788 = vrot.lane.b32.xlu0 %v4613, 24
        %v4789 = vpop.permute.xlu0 %4788
        %4790 = vrot.lane.b32.xlu0 %v4681, 24
        %v4791 = vpop.permute.xlu0 %4790
        %4792 = vrot.lane.b32.xlu0 %v4749, 24
        %v4793 = vpop.permute.xlu0 %4792
        %v4798 = vsel %vm2484, %v4542, %v4755
        %v4799 = vsel %vm2484, %v4610, %v4757
        %v4800 = vsel %vm2484, %v4678, %v4759
        %v4801 = vsel %vm2484, %v4746, %v4761
        %vm4802 = vcmask 130048
        %v4803 = vsel %vm4802, %v4798, %v4771
        %v4804 = vsel %vm4802, %v4799, %v4773
        %v4805 = vsel %vm4802, %v4800, %v4775
        %v4806 = vsel %vm4802, %v4801, %v4777
        %vm4807 = vcmask 195584
        %v4808 = vsel %vm4807, %v4803, %v4787
        %v4809 = vsel %vm4807, %v4804, %v4789
        %v4810 = vsel %vm4807, %v4805, %v4791
        %v4811 = vsel %vm4807, %v4806, %v4793
        %v4812 = vpack.c.bf16 %v4809, %v4808
        %v4813 = vpack.c.bf16 %v4811, %v4810
        %v4814 = vld [vmem:[%s654] sm:$0xf]
        %v4815 = vld [vmem:[%s654 + $0x4] sm:$0xf]
        %v4816 = vld [vmem:[%s654 + $0x8] sm:$0xf]
        %v4817 = vld [vmem:[%s654 + $0xc] sm:$0xf]
        %v4818 = vld [vmem:[%s657] sm:$0x1]
        %v4820 = vlaneseq
        %v4821 = vshrl.u32 %v4820, 7
        %v4822 = vsub.s32 0, %v4821
        %v4823 = vrot.slane %v4818, %v4822
        %v4829 = vunpack.c.l.b16 %v4814
        %v4830 = vunpack.c.l.b16 %v4815
        %v4831 = vunpack.c.l.b16 %v4816
        %v4832 = vunpack.c.l.b16 %v4817
        %v4833 = vpack.c.b16 %v4830, %v4829
        %v4834 = vpack.c.b16 %v4832, %v4831
        %v4838 = vsel %vm730, %v4812, 0
        %v4841 = vsel %vm730, %v4813, 0
        %4843 = vmatprep.subr.bf16.mxu0 0
        %4844 = vmatpush1.bf16.msra.mxu0 %v4833
        %4845 = vmatprep.subr.bf16.mxu0 0
        %4846 = vmatpush1.bf16.msra.mxu0 %v4834
        %4847 = vmatprep.subr.bf16.mxu0 0
        %4848 = vmatpush1.bf16.msra.mxu0 0
        %4849 = vmatprep.subr.bf16.mxu0 0
        %4850 = vmatpush1.bf16.msra.mxu0 0
        %4851 = vmatprep.subr.bf16.mxu0 0
        %4852 = vmatpush1.bf16.msra.mxu0 0
        %4853 = vmatprep.subr.bf16.mxu0 0
        %4854 = vmatpush1.bf16.msra.mxu0 0
        %4855 = vmatprep.subr.bf16.mxu0 0
        %4856 = vmatpush1.bf16.msra.mxu0 0
        %4857 = vmatprep.subr.bf16.mxu0 0
        %4858 = vmatpush1.bf16.msra.mxu0 0
        %4859 = vmatprep.subr.bf16.mxu0 0
        %4860 = vmatpush1.bf16.msra.mxu0 0
        %4861 = vmatprep.subr.bf16.mxu0 0
        %4862 = vmatpush1.bf16.msra.mxu0 0
        %4863 = vmatprep.subr.bf16.mxu0 0
        %4864 = vmatpush1.bf16.msra.mxu0 0
        %4865 = vmatprep.subr.bf16.mxu0 0
        %4866 = vmatpush1.bf16.msra.mxu0 0
        %4867 = vmatprep.subr.bf16.mxu0 0
        %4868 = vmatpush1.bf16.msra.mxu0 0
        %4869 = vmatprep.subr.bf16.mxu0 0
        %4870 = vmatpush1.bf16.msra.mxu0 0
        %4871 = vmatprep.subr.bf16.mxu0 0
        %4872 = vmatpush1.bf16.msra.mxu0 0
        %4873 = vmatprep.subr.bf16.mxu0 0
        %4874 = vmatpush1.bf16.msra.mxu0 0
        %4875 = vmatprep.mubr.bf16.mxu0 0
        %4876 = vmatmul.mubr.bf16.gmra.mrb[0].mxu0 %v4838
        %v4877 = vpop.f32.mrb[0].mxu0
        %v4878 = vadd.f32 %v4823, %v4877
        %v4879 = vpop.f32.mrb[0].mxu0
        %v4880 = vpop.f32.mrb[0].mxu0
        %v4881 = vadd.f32 %v4823, %v4880
        %v4882 = vpop.f32.mrb[0].mxu0
        %4883 = vmatprep.mubr.bf16.mxu0 0
        %4884 = vmatmul.mubr.bf16.gmra.mrb[0].mxu0 %v4841
        %v4885 = vpop.f32.mrb[0].mxu0
        %v4886 = vadd.f32 %v4823, %v4885
        %v4887 = vpop.f32.mrb[0].mxu0
        %v4888 = vpop.f32.mrb[0].mxu0
        %v4889 = vadd.f32 %v4823, %v4888
        %v4890 = vpop.f32.mrb[0].mxu0
        %4891 = vdwg.mxu0
        %v4892 = vadd.f32 %v4878, %v701
        %v4893 = vadd.f32 %v4881, %v702
        %v4894 = vadd.f32 %v4886, %v703
        %v4895 = vadd.f32 %v4889, %v704
        %v4896 = vld [vmem:[%s660] sm:$0x1]
        %v4897 = vld [vmem:[%s663] sm:$0x1]
        %v4898 = vsel %vm730, %v4892, 0.0
        %4899 = vadd.xlane.f32.xlu0 %v4898
        %v4900 = vpop.xlane.xlu0 %4899
        %v4901 = vsel %vm730, %v4893, 0.0
        %4902 = vadd.xlane.f32.xlu0 %v4901
        %v4903 = vpop.xlane.xlu0 %4902
        %v4904 = vsel %vm730, %v4894, 0.0
        %4905 = vadd.xlane.f32.xlu0 %v4904
        %v4906 = vpop.xlane.xlu0 %4905
        %v4907 = vsel %vm730, %v4895, 0.0
        %4908 = vadd.xlane.f32.xlu0 %v4907
        %v4909 = vpop.xlane.xlu0 %4908
        %v4910 = vrcp.pop 32.0
        %v4911 = vmul.f32 %v4900, %v4910
        %v4912 = vmul.f32 %v4903, %v4910
        %v4913 = vmul.f32 %v4906, %v4910
        %v4914 = vmul.f32 %v4909, %v4910
        %v4915 = vsub.f32 %v4892, %v4911
        %v4916 = vsub.f32 %v4893, %v4912
        %v4917 = vsub.f32 %v4894, %v4913
        %v4918 = vsub.f32 %v4895, %v4914
        %v4919 = vmul.f32 %v4915, %v4915
        %v4920 = vmul.f32 %v4916, %v4916
        %v4921 = vmul.f32 %v4917, %v4917
        %v4922 = vmul.f32 %v4918, %v4918
        %v4923 = vsel %vm730, %v4919, 0.0
        %4924 = vadd.xlane.f32.xlu0 %v4923
        %v4925 = vpop.xlane.xlu0 %4924
        %v4926 = vsel %vm730, %v4920, 0.0
        %4927 = vadd.xlane.f32.xlu0 %v4926
        %v4928 = vpop.xlane.xlu0 %4927
        %v4929 = vsel %vm730, %v4921, 0.0
        %4930 = vadd.xlane.f32.xlu0 %v4929
        %v4931 = vpop.xlane.xlu0 %4930
        %v4932 = vsel %vm730, %v4922, 0.0
        %4933 = vadd.xlane.f32.xlu0 %v4932
        %v4934 = vpop.xlane.xlu0 %4933
        %v4935 = vmul.f32 %v4925, %v4910
        %v4936 = vmul.f32 %v4928, %v4910
        %v4937 = vmul.f32 %v4931, %v4910
        %v4938 = vmul.f32 %v4934, %v4910
        %v4939 = vadd.f32 %v4935, 1e-12
        %v4940 = vadd.f32 %v4936, 1e-12
        %v4941 = vadd.f32 %v4937, 1e-12
        %v4942 = vadd.f32 %v4938, 1e-12
        %v4943 = vrsqrt.pop %v4939
        %v4944 = vrsqrt.pop %v4940
        %v4945 = vrsqrt.pop %v4941
        %v4946 = vrsqrt.pop %v4942
        %v4947 = vmul.f32 %v4915, %v4943
        %v4948 = vmul.f32 %v4916, %v4944
        %v4949 = vmul.f32 %v4917, %v4945
        %v4950 = vmul.f32 %v4918, %v4946
        %v4952 = vlaneseq
        %v4953 = vshrl.u32 %v4952, 7
        %v4954 = vsub.s32 0, %v4953
        %v4955 = vrot.slane %v4896, %v4954
        %v4957 = vmul.f32 %v4947, %v4955
        %v4958 = vmul.f32 %v4948, %v4955
        %v4959 = vmul.f32 %v4949, %v4955
        %v4960 = vmul.f32 %v4950, %v4955
        %v4962 = vlaneseq
        %v4963 = vshrl.u32 %v4962, 7
        %v4964 = vsub.s32 0, %v4963
        %v4965 = vrot.slane %v4897, %v4964
        %v4967 = vadd.f32 %v4957, %v4965
        %v4968 = vadd.f32 %v4958, %v4965
        %v4969 = vadd.f32 %v4959, %v4965
        %v4970 = vadd.f32 %v4960, %v4965
        %v4971 = vpack.c.bf16 %v4968, %v4967
        %v4972 = vpack.c.bf16 %v4970, %v4969
        %v4973 = vld [vmem:[%s668] sm:$0xf]
        %v4974 = vld [vmem:[%s668 + $0x4] sm:$0xf]
        %v4975 = vld [vmem:[%s668 + $0x8] sm:$0xf]
        %v4976 = vld [vmem:[%s668 + $0xc] sm:$0xf]
        %v4977 = vld [vmem:[%s671] sm:$0x1]
        %v4979 = vlaneseq
        %v4980 = vshrl.u32 %v4979, 7
        %v4981 = vsub.s32 0, %v4980
        %v4982 = vrot.slane %v4977, %v4981
        %v4988 = vunpack.c.l.b16 %v4973
        %v4989 = vunpack.c.l.b16 %v4974
        %v4990 = vunpack.c.l.b16 %v4975
        %v4991 = vunpack.c.l.b16 %v4976
        %v4992 = vpack.c.b16 %v4989, %v4988
        %v4993 = vpack.c.b16 %v4991, %v4990
        %v4997 = vsel %vm730, %v4971, 0
        %v5000 = vsel %vm730, %v4972, 0
        %5002 = vmatprep.subr.bf16.mxu0 0
        %5003 = vmatpush1.bf16.msra.mxu0 %v4992
        %5004 = vmatprep.subr.bf16.mxu0 0
        %5005 = vmatpush1.bf16.msra.mxu0 %v4993
        %5006 = vmatprep.subr.bf16.mxu0 0
        %5007 = vmatpush1.bf16.msra.mxu0 0
        %5008 = vmatprep.subr.bf16.mxu0 0
        %5009 = vmatpush1.bf16.msra.mxu0 0
        %5010 = vmatprep.subr.bf16.mxu0 0
        %5011 = vmatpush1.bf16.msra.mxu0 0
        %5012 = vmatprep.subr.bf16.mxu0 0
        %5013 = vmatpush1.bf16.msra.mxu0 0
        %5014 = vmatprep.subr.bf16.mxu0 0
        %5015 = vmatpush1.bf16.msra.mxu0 0
        %5016 = vmatprep.subr.bf16.mxu0 0
        %5017 = vmatpush1.bf16.msra.mxu0 0
        %5018 = vmatprep.subr.bf16.mxu0 0
        %5019 = vmatpush1.bf16.msra.mxu0 0
        %5020 = vmatprep.subr.bf16.mxu0 0
        %5021 = vmatpush1.bf16.msra.mxu0 0
        %5022 = vmatprep.subr.bf16.mxu0 0
        %5023 = vmatpush1.bf16.msra.mxu0 0
        %5024 = vmatprep.subr.bf16.mxu0 0
        %5025 = vmatpush1.bf16.msra.mxu0 0
        %5026 = vmatprep.subr.bf16.mxu0 0
        %5027 = vmatpush1.bf16.msra.mxu0 0
        %5028 = vmatprep.subr.bf16.mxu0 0
        %5029 = vmatpush1.bf16.msra.mxu0 0
        %5030 = vmatprep.subr.bf16.mxu0 0
        %5031 = vmatpush1.bf16.msra.mxu0 0
        %5032 = vmatprep.subr.bf16.mxu0 0
        %5033 = vmatpush1.bf16.msra.mxu0 0
        %5034 = vmatprep.mubr.bf16.mxu0 0
        %5035 = vmatmul.mubr.bf16.gmra.mrb[0].mxu0 %v4997
        %v5036 = vpop.f32.mrb[0].mxu0
        %v5037 = vadd.f32 %v4982, %v5036
        %v5038 = vpop.f32.mrb[0].mxu0
        %v5039 = vpop.f32.mrb[0].mxu0
        %v5040 = vadd.f32 %v4982, %v5039
        %v5041 = vpop.f32.mrb[0].mxu0
        %5042 = vmatprep.mubr.bf16.mxu0 0
        %5043 = vmatmul.mubr.bf16.gmra.mrb[0].mxu0 %v5000
        %v5044 = vpop.f32.mrb[0].mxu0
        %v5045 = vadd.f32 %v4982, %v5044
        %v5046 = vpop.f32.mrb[0].mxu0
        %v5047 = vpop.f32.mrb[0].mxu0
        %v5048 = vadd.f32 %v4982, %v5047
        %v5049 = vpop.f32.mrb[0].mxu0
        %5050 = vdwg.mxu0
        %v5051 = vmul.f32 %v5037, 0.5
        %v5052 = vmul.f32 %v5040, 0.5
        %v5053 = vmul.f32 %v5045, 0.5
        %v5054 = vmul.f32 %v5048, 0.5
        %v5055 = vmul.f32 %v5037, 0.044715
        %v5056 = vmul.f32 %v5040, 0.044715
        %v5057 = vmul.f32 %v5045, 0.044715
        %v5058 = vmul.f32 %v5048, 0.044715
        %v5059 = vmul.f32 %v5055, %v5037
        %v5060 = vmul.f32 %v5056, %v5040
        %v5061 = vmul.f32 %v5057, %v5045
        %v5062 = vmul.f32 %v5058, %v5048
        %v5063 = vmul.f32 %v5059, %v5037
        %v5064 = vmul.f32 %v5060, %v5040
        %v5065 = vmul.f32 %v5061, %v5045
        %v5066 = vmul.f32 %v5062, %v5048
        %v5067 = vadd.f32 %v5037, %v5063
        %v5068 = vadd.f32 %v5040, %v5064
        %v5069 = vadd.f32 %v5045, %v5065
        %v5070 = vadd.f32 %v5048, %v5066
        %v5071 = vmul.f32 %v5067, 0.7978846
        %v5072 = vmul.f32 %v5068, 0.7978846
        %v5073 = vmul.f32 %v5069, 0.7978846
        %v5074 = vmul.f32 %v5070, 0.7978846
        %v5075 = vtanh.pop %v5071
        %v5076 = vtanh.pop %v5072
        %v5077 = vtanh.pop %v5073
        %v5078 = vtanh.pop %v5074
        %v5079 = vadd.f32 %v5075, 1.0
        %v5080 = vadd.f32 %v5076, 1.0
        %v5081 = vadd.f32 %v5077, 1.0
        %v5082 = vadd.f32 %v5078, 1.0
        %v5083 = vmul.f32 %v5051, %v5079
        %v5084 = vmul.f32 %v5052, %v5080
        %v5085 = vmul.f32 %v5053, %v5081
        %v5086 = vmul.f32 %v5054, %v5082
        %v5087 = vpack.c.bf16 %v5084, %v5083
        %v5088 = vpack.c.bf16 %v5086, %v5085
        %v5089 = vld [vmem:[%s676] sm:$0xf]
        %v5090 = vld [vmem:[%s676 + $0x4] sm:$0xf]
        %v5091 = vld [vmem:[%s676 + $0x8] sm:$0xf]
        %v5092 = vld [vmem:[%s676 + $0xc] sm:$0xf]
        %v5093 = vld [vmem:[%s676 + $0x10] sm:$0xf]
        %v5094 = vld [vmem:[%s676 + $0x14] sm:$0xf]
        %v5095 = vld [vmem:[%s676 + $0x18] sm:$0xf]
        %v5096 = vld [vmem:[%s676 + $0x1c] sm:$0xf]
        %v5097 = vld [vmem:[%s679] sm:$0x1]
        %v5099 = vlaneseq
        %v5100 = vshrl.u32 %v5099, 7
        %v5101 = vsub.s32 0, %v5100
        %v5102 = vrot.slane %v5097, %v5101
        %v5112 = vunpack.c.l.b16 %v5089
        %v5113 = vunpack.c.l.b16 %v5090
        %v5114 = vunpack.c.l.b16 %v5091
        %v5115 = vunpack.c.l.b16 %v5092
        %v5116 = vunpack.c.l.b16 %v5093
        %v5117 = vunpack.c.l.b16 %v5094
        %v5118 = vunpack.c.l.b16 %v5095
        %v5119 = vunpack.c.l.b16 %v5096
        %v5120 = vpack.c.b16 %v5113, %v5112
        %v5121 = vpack.c.b16 %v5115, %v5114
        %v5122 = vpack.c.b16 %v5117, %v5116
        %v5123 = vpack.c.b16 %v5119, %v5118
        %vm5128 = vcmask 523264
        %v5130 = vsel %vm5128, %v5087, 0
        %v5133 = vsel %vm5128, %v5088, 0
        %5135 = vmatprep.subr.bf16.mxu0 0
        %5136 = vmatpush1.bf16.msra.mxu0 %v5120
        %5137 = vmatprep.subr.bf16.mxu0 0
        %5138 = vmatpush1.bf16.msra.mxu0 %v5121
        %5139 = vmatprep.subr.bf16.mxu0 0
        %5140 = vmatpush1.bf16.msra.mxu0 %v5122
        %5141 = vmatprep.subr.bf16.mxu0 0
        %5142 = vmatpush1.bf16.msra.mxu0 %v5123
        %5143 = vmatprep.subr.bf16.mxu0 0
        %5144 = vmatpush1.bf16.msra.mxu0 0
        %5145 = vmatprep.subr.bf16.mxu0 0
        %5146 = vmatpush1.bf16.msra.mxu0 0
        %5147 = vmatprep.subr.bf16.mxu0 0
        %5148 = vmatpush1.bf16.msra.mxu0 0
        %5149 = vmatprep.subr.bf16.mxu0 0
        %5150 = vmatpush1.bf16.msra.mxu0 0
        %5151 = vmatprep.subr.bf16.mxu0 0
        %5152 = vmatpush1.bf16.msra.mxu0 0
        %5153 = vmatprep.subr.bf16.mxu0 0
        %5154 = vmatpush1.bf16.msra.mxu0 0
        %5155 = vmatprep.subr.bf16.mxu0 0
        %5156 = vmatpush1.bf16.msra.mxu0 0
        %5157 = vmatprep.subr.bf16.mxu0 0
        %5158 = vmatpush1.bf16.msra.mxu0 0
        %5159 = vmatprep.subr.bf16.mxu0 0
        %5160 = vmatpush1.bf16.msra.mxu0 0
        %5161 = vmatprep.subr.bf16.mxu0 0
        %5162 = vmatpush1.bf16.msra.mxu0 0
        %5163 = vmatprep.subr.bf16.mxu0 0
        %5164 = vmatpush1.bf16.msra.mxu0 0
        %5165 = vmatprep.subr.bf16.mxu0 0
        %5166 = vmatpush1.bf16.msra.mxu0 0
        %5167 = vmatprep.mubr.bf16.mxu0 0
        %5168 = vmatmul.mubr.bf16.gmra.mrb[0].mxu0 %v5130
        %v5169 = vpop.f32.mrb[0].mxu0
        %v5170 = vadd.f32 %v5102, %v5169
        %v5171 = vpop.f32.mrb[0].mxu0
        %v5172 = vpop.f32.mrb[0].mxu0
        %v5173 = vadd.f32 %v5102, %v5172
        %v5174 = vpop.f32.mrb[0].mxu0
        %5175 = vmatprep.mubr.bf16.mxu0 0
        %5176 = vmatmul.mubr.bf16.gmra.mrb[0].mxu0 %v5133
        %v5177 = vpop.f32.mrb[0].mxu0
        %v5178 = vadd.f32 %v5102, %v5177
        %v5179 = vpop.f32.mrb[0].mxu0
        %v5180 = vpop.f32.mrb[0].mxu0
        %v5181 = vadd.f32 %v5102, %v5180
        %v5182 = vpop.f32.mrb[0].mxu0
        %5183 = vdwg.mxu0
        %v5184 = vadd.f32 %v5170, %v4967
        %v5185 = vadd.f32 %v5173, %v4968
        %v5186 = vadd.f32 %v5178, %v4969
        %v5187 = vadd.f32 %v5181, %v4970
        %v5188 = vld [vmem:[%s682] sm:$0x1]
        %v5189 = vld [vmem:[%s685] sm:$0x1]
        %v5190 = vsel %vm730, %v5184, 0.0
        %5191 = vadd.xlane.f32.xlu0 %v5190
        %v5192 = vpop.xlane.xlu0 %5191
        %v5193 = vsel %vm730, %v5185, 0.0
        %5194 = vadd.xlane.f32.xlu0 %v5193
        %v5195 = vpop.xlane.xlu0 %5194
        %v5196 = vsel %vm730, %v5186, 0.0
        %5197 = vadd.xlane.f32.xlu0 %v5196
        %v5198 = vpop.xlane.xlu0 %5197
        %v5199 = vsel %vm730, %v5187, 0.0
        %5200 = vadd.xlane.f32.xlu0 %v5199
        %v5201 = vpop.xlane.xlu0 %5200
        %v5202 = vmul.f32 %v5192, %v4910
        %v5203 = vmul.f32 %v5195, %v4910
        %v5204 = vmul.f32 %v5198, %v4910
        %v5205 = vmul.f32 %v5201, %v4910
        %v5206 = vsub.f32 %v5184, %v5202
        %v5207 = vsub.f32 %v5185, %v5203
        %v5208 = vsub.f32 %v5186, %v5204
        %v5209 = vsub.f32 %v5187, %v5205
        %v5210 = vmul.f32 %v5206, %v5206
        %v5211 = vmul.f32 %v5207, %v5207
        %v5212 = vmul.f32 %v5208, %v5208
        %v5213 = vmul.f32 %v5209, %v5209
        %v5214 = vsel %vm730, %v5210, 0.0
        %5215 = vadd.xlane.f32.xlu0 %v5214
        %v5216 = vpop.xlane.xlu0 %5215
        %v5217 = vsel %vm730, %v5211, 0.0
        %5218 = vadd.xlane.f32.xlu0 %v5217
        %v5219 = vpop.xlane.xlu0 %5218
        %v5220 = vsel %vm730, %v5212, 0.0
        %5221 = vadd.xlane.f32.xlu0 %v5220
        %v5222 = vpop.xlane.xlu0 %5221
        %v5223 = vsel %vm730, %v5213, 0.0
        %5224 = vadd.xlane.f32.xlu0 %v5223
        %v5225 = vpop.xlane.xlu0 %5224
        %v5226 = vmul.f32 %v5216, %v4910
        %v5227 = vmul.f32 %v5219, %v4910
        %v5228 = vmul.f32 %v5222, %v4910
        %v5229 = vmul.f32 %v5225, %v4910
        %v5230 = vadd.f32 %v5226, 1e-12
        %v5231 = vadd.f32 %v5227, 1e-12
        %v5232 = vadd.f32 %v5228, 1e-12
        %v5233 = vadd.f32 %v5229, 1e-12
        %v5234 = vrsqrt.pop %v5230
        %v5235 = vrsqrt.pop %v5231
        %v5236 = vrsqrt.pop %v5232
        %v5237 = vrsqrt.pop %v5233
        %v5238 = vmul.f32 %v5206, %v5234
        %v5239 = vmul.f32 %v5207, %v5235
        %v5240 = vmul.f32 %v5208, %v5236
        %v5241 = vmul.f32 %v5209, %v5237
        %v5243 = vlaneseq
        %v5244 = vshrl.u32 %v5243, 7
        %v5245 = vsub.s32 0, %v5244
        %v5246 = vrot.slane %v5188, %v5245
        %v5248 = vmul.f32 %v5238, %v5246
        %v5249 = vmul.f32 %v5239, %v5246
        %v5250 = vmul.f32 %v5240, %v5246
        %v5251 = vmul.f32 %v5241, %v5246
        %v5253 = vlaneseq
        %v5254 = vshrl.u32 %v5253, 7
        %v5255 = vsub.s32 0, %v5254
        %v5256 = vrot.slane %v5189, %v5255
        %v5258 = vadd.f32 %v5248, %v5256
        %v5259 = vadd.f32 %v5249, %v5256
        %v5260 = vadd.f32 %v5250, %v5256
        %v5261 = vadd.f32 %v5251, %v5256
        %5262 = vst.msk [vmem:[#allocation5] sm:$0xff] %vm730, %v5258
        %5263 = vst.msk [vmem:[#allocation5 + $0x8] sm:$0xff] %vm730, %v5259
        %5264 = vst.msk [vmem:[#allocation5 + $0x10] sm:$0xff] %vm730, %v5260
        %5265 = vst.msk [vmem:[#allocation5 + $0x18] sm:$0xff] %vm730, %v5261
        // Predicated region
        $region85: #{_lambda_.1} parent=75 // pred_check
          %p5266 = pneg %p421
        $region86: #{_lambda_.1} parent=75 // pred_check_branch
          %5268 = sbr.rel (%p5266) target = $region88
        $region87: #{_lambda_.1} parent=75 // pred_region
          %s5269 = smul.u32 4, %s31
          %s5271 = ssub.s32 512, 512
          %5272 = vsyncadd [#allocation4], %s5271
          %s5273 = smul.addr %s5269, 128
          %s5274 = scalar_lea.hbm %s14, %s5273
          %s5275 = sshll.u32 [#allocation5], 4
          %s5276 = int_to_ptr.vmem [resolvable:$true] %s5275
          %5281 = dma.vmem_to_hbm [thread:$0]  %s5276, 512, %s5274, [#allocation4], 128, 128, 8
        $region88: #{_lambda_.1} parent=75 // pred_fallthru
          _
        // Predicated region
        $region89: #{_lambda_.1} parent=75 // pred_check
          %p5282 = pneg %p421
        $region90: #{_lambda_.1} parent=75 // pred_check_branch
          %5284 = sbr.rel (%p5282) target = $region92
        $region91: #{_lambda_.1} parent=75 // pred_region
          %5285 = dma.done [#allocation4], 512
        $region92: #{_lambda_.1} parent=75 // pred_fallthru
          _
      $region76: #{_lambda_.1} parent=5 // pred_fallthru
        _
      %p5286 = scmp.le.s32.totalorder 2, %s22
      // Predicated region
      $region93: #{_lambda_.1} parent=5 // pred_check
        %p5287 = pneg %p5286
      $region94: #{_lambda_.1} parent=5 // pred_check_branch
        %5289 = sbr.rel (%p5287) target = $region96
      $region95: #{_lambda_.1} parent=5 // pred_region
        %s5290 = ssub.s32 %s22, 2
      $region96: #{_lambda_.1} parent=5 // pred_fallthru
        _
    $region6: #{_lambda_.1} parent=1 // loop_footer
      %s26 = sadd.s32 1, %s22
    $region7: #{_lambda_.1} parent=1 // loop_footer_branch
      %21 = sbr.rel target = $region3
    $region8: #{_lambda_.1} parent=1 // loop_exit
      _
    %5291 = vsyncpa [#allocation3], 1
    %s5292 = scalar_lea.sflag [#allocation3], 1
    %5293 = vsyncpa %s5292, 1
    %5294 = vsyncpa [#allocation4], 1
    %s5295 = scalar_lea.sflag [#allocation4], 1
    %5296 = vsyncpa %s5295, 1

</llo_original>
